<compile_context>
chip_gen: v7x
topology: tpu7x:2x2x1
jax: 0.10.0
libtpu: 0.0.40
codegen_flags: <defaults>
</compile_context>

<pallas_src>
import math
import numpy as np
import jax
import jax.numpy as jnp
from jax.experimental import pallas as pl
from jax.experimental.pallas import tpu as pltpu

# ----------------------- small, module-consistent sizes -----------------------
B, D = 16, 8            # batch, nb_in
H_EMB = 32              # hidden_embedding (4 layers)
H_INT = 32              # hidden_derivative (4 layers)
EMB_S = 7               # embedding_s
NB_STEPS = 16           # nb_steps (CC quadrature)
NB_FLOW = 1             # nb_flow

NGROUP = EMB_S + 1      # MADE outputs (embedding_s + 1) values per input dimension
NQ = NB_STEPS + 1       # quadrature nodes
DH = D * H_INT          # wide integrand width (per-dim hidden blocks side by side)
M = NQ * B              # batched (node, batch) rows for the integrand MLP

# -------- packed-parameter slab layouts (all row offsets are multiples of 8) --------
WA = 64                                   # slab A lane width
A_W0, A_MWH, A_MB = 0, 8, 104             # (8,32) | 3x(32,32) | (4,32)
A_WEMB, A_BEMB = 112, 144                 # (32,64) | (1,64)
A_WZ0, A_BZ0 = 152, 184                   # (32,8)  | (1,8)   (hoisted z0 selection)
A_RT = 192                                # (M, 2B) node-expansion operator
A_ROWS = A_RT + M                         # 464

WB = 272                                  # slab B lane width (DH=256 weights | M=272-wide cs)
B_WHB, B_WXB, B_BIB = 0, 64, 72           # (64,256) | (8,256) | (4,256)
B_WOB, B_BOB = 80, 336                    # (256,8)  | (1,8)
B_CS = 344                                # (B, M) CC reduction (0.5 factor folded in)
B_ROWS = B_CS + B                         # 360


def _elu(v):
    # exp(min(v,0)) avoids overflow in the discarded branch (safe for future VJPs).
    return jnp.where(v > 0, v, jnp.exp(jnp.minimum(v, 0.0)) - 1.0)


# ------------------------------- Pallas kernel --------------------------------
def umnn_kernel(x_ref, sa_ref, sb_ref, wib_ref, o_ref):
    f32 = jnp.float32
    cdt = wib_ref.dtype                   # integrand-chain MXU operand dtype (bf16 fast path)

    x = x_ref[...]                                                        # (B, D) f32

    # ---------------- MADE embedding network (tiny, f32) ----------------
    mb = sa_ref[A_MB:A_MB + 4, 0:H_EMB]                                   # (4, 32)
    a = _elu(jnp.dot(x, sa_ref[A_W0:A_W0 + D, 0:H_EMB],
                     preferred_element_type=f32) + mb[0:1, :])
    a = _elu(jnp.dot(a, sa_ref[A_MWH:A_MWH + H_EMB, 0:H_EMB],
                     preferred_element_type=f32) + mb[1:2, :])
    a = _elu(jnp.dot(a, sa_ref[A_MWH + H_EMB:A_MWH + 2 * H_EMB, 0:H_EMB],
                     preferred_element_type=f32) + mb[2:3, :])
    a = _elu(jnp.dot(a, sa_ref[A_MWH + 2 * H_EMB:A_MWH + 3 * H_EMB, 0:H_EMB],
                     preferred_element_type=f32) + mb[3:4, :])
    hemb = jnp.dot(a, sa_ref[A_WEMB:A_WEMB + H_EMB, 0:D * NGROUP],
                   preferred_element_type=f32) \
           + sa_ref[A_BEMB:A_BEMB + 1, 0:D * NGROUP]                      # (B, D*NGROUP)

    # ---- z0 (selection hoisted host-side: wemb_z0 = wemb[:, ::NGROUP]) ----
    z0 = jnp.dot(a, sa_ref[A_WZ0:A_WZ0 + H_EMB, 0:D],
                 preferred_element_type=f32) + sa_ref[A_BZ0:A_BZ0 + 1, 0:D]   # (B, D)

    # -------- integrand first layer: node-independent h-part + x-part --------
    bib = sb_ref[B_BIB:B_BIB + 4, 0:DH]                                   # (4, DH) f32
    hproj = jnp.dot(hemb.astype(cdt),
                    sb_ref[B_WHB:B_WHB + D * NGROUP, 0:DH].astype(cdt),
                    preferred_element_type=f32) + bib[0:1, :]             # (B, DH)
    xw = jnp.dot(x.astype(cdt), sb_ref[B_WXB:B_WXB + D, 0:DH].astype(cdt),
                 preferred_element_type=f32)                              # (B, DH)
    hx = jnp.concatenate([hproj, xw], axis=0).astype(cdt)                 # (2B, DH)

    # -------- expand over quadrature nodes with one constant matmul --------
    #   a1[q*B + b, :] = ELU(hproj[b, :] + t[q] * xw[b, :])
    rt = sa_ref[A_RT:A_RT + M, 0:2 * B].astype(cdt)                       # (M, 2B)
    a1 = _elu(jnp.dot(rt, hx, preferred_element_type=f32)).astype(cdt)    # (M, DH)
    a2 = _elu(jnp.dot(a1, wib_ref[0], preferred_element_type=f32) + bib[1:2, :]).astype(cdt)
    a3 = _elu(jnp.dot(a2, wib_ref[1], preferred_element_type=f32) + bib[2:3, :]).astype(cdt)
    a4 = _elu(jnp.dot(a3, wib_ref[2], preferred_element_type=f32) + bib[3:4, :]).astype(cdt)
    f = _elu(jnp.dot(a4, sb_ref[B_WOB:B_WOB + DH, 0:D].astype(cdt),
                     preferred_element_type=f32)
             + sb_ref[B_BOB:B_BOB + 1, 0:D]) + 1.0                        # (M, D) f32

    # ---- Clenshaw-Curtis weighted reduction (0.5 already folded into cs) ----
    integ = jnp.dot(sb_ref[B_CS:B_CS + B, 0:M], f, preferred_element_type=f32)   # (B, D)

    # ---- single full-block store (lane-sparse D=8 tail kept minimal) ----
    o_ref[...] = z0 + x * integ


# --------------------------------- glue (JAX) ----------------------------------
def compute_cc_weights(nb_steps):
    # Exact replica of NeuralIntegral.compute_cc_weights (numpy).
    lam = np.arange(0, nb_steps + 1, 1).reshape(-1, 1)
    lam = np.cos((lam @ lam.T) * math.pi / nb_steps)
    lam[:, 0] = 0.5
    lam[:, -1] = 0.5 * lam[:, -1]
    lam = lam * 2.0 / nb_steps
    W = np.arange(0, nb_steps + 1, 1).reshape(-1, 1)
    W[np.arange(1, nb_steps + 1, 2)] = 0
    W = 2.0 / (1 - W ** 2)
    W[0] = 1
    W[np.arange(1, nb_steps + 1, 2)] = 0
    cc_weights = (lam.T @ W).reshape(-1).astype(np.float32)
    steps = np.cos(np.arange(0, nb_steps + 1).reshape(-1) * math.pi / nb_steps).astype(np.float32)
    return cc_weights, steps


def made_masks(nin, hidden_sizes, ngroup):
    # TODO(synk): hidden-unit degrees use a deterministic cycle (natural ordering, random=False);
    # the reference MADE draws them from a seeded numpy RNG stream.
    m_prev = np.arange(nin)
    masks = []
    for hs in hidden_sizes:
        m_l = np.arange(hs) % max(nin - 1, 1)
        masks.append((m_prev[:, None] <= m_l[None, :]).astype(np.float32))
        m_prev = m_l
    out = (m_prev[:, None] < np.arange(nin)[None, :]).astype(np.float32)     # strict: autoregressive
    masks.append(np.concatenate([out] * ngroup, axis=1))                     # replicate for ngroup outputs/dim
    return masks


def init_params(key):
    keys = jax.random.split(key, 20)
    kit = iter(keys)

    def lin(fan_in, fan_out):
        w = jax.random.normal(next(kit), (fan_in, fan_out), jnp.float32) / np.sqrt(fan_in)
        b = 0.1 * jax.random.normal(next(kit), (1, fan_out), jnp.float32)
        return w, b

    # MADE (5 masked linear layers, ELU between)
    masks = made_masks(D, [H_EMB] * 4, NGROUP)
    dims = [D, H_EMB, H_EMB, H_EMB, H_EMB, NGROUP * D]
    made = []
    for l in range(5):
        w, b = lin(dims[l], dims[l + 1])
        made.append((w * jnp.asarray(masks[l]), b))                          # mask * weight (forward semantics)
    (w0, b0), (w1, b1), (w2, b2), (w3, b3), (w4, b4) = made
    # permute last MADE layer into per-dimension grouping: new col j*NGROUP+k <- old col k*D+j
    perm = np.array([k * D + j for j in range(D) for k in range(NGROUP)])
    wemb, bemb = w4[:, perm], b4[:, perm]

    # Integrand network (per-dim, shared weights): [x_j, h_j(0..NGROUP-1)] -> ... -> 1
    w1i, bi1 = lin(1 + NGROUP, H_INT)
    wx, wh = w1i[0:1, :], w1i[1:, :]
    wi2, bi2 = lin(H_INT, H_INT)
    wi3, bi3 = lin(H_INT, H_INT)
    wi4, bi4 = lin(H_INT, H_INT)
    wo, bo = lin(H_INT, 1)

    return (w0, b0, w1, b1, w2, b2, w3, b3, wemb, bemb,
            wx, wh, bi1, wi2, bi2, wi3, bi3, wi4, bi4, wo, bo)


def build_quadrature_operators(t_nodes_np, cc_np):
    """Constant matrices that expand over / reduce over the NQ quadrature nodes via matmuls.
    The 0.5 prefactor of the CC integral is folded into cs."""
    rt = np.zeros((M, 2 * B), np.float32)       # a1_pre[q*B+b] = hproj[b] + t[q]*xw[b]
    cs = np.zeros((B, M), np.float32)           # integ[b]      = sum_q 0.5*cc[q]*f[q*B+b]
    for q in range(NQ):
        for b in range(B):
            rt[q * B + b, b] = 1.0
            rt[q * B + b, B + b] = t_nodes_np[q]
            cs[b, q * B + b] = 0.5 * cc_np[q]
    return rt, cs


def pack_params(params, rt_np, cs_np, wib_dtype=jnp.bfloat16):
    """Pack everything into: slab_a (f32, MADE + rt), slab_b (f32, integrand edges + cs),
    and the block-diagonal integrand hidden weights wib (wib_dtype)."""
    (w0, b0, w1, b1, w2, b2, w3, b3, wemb, bemb,
     wx, wh, bi1, wi2, bi2, wi3, bi3, wi4, bi4, wo, bo) = [np.asarray(p) for p in params]
    eye = np.eye(D, dtype=np.float32)

    slab_a = np.zeros((A_ROWS, WA), np.float32)
    slab_a[A_W0:A_W0 + D, :H_EMB] = w0
    slab_a[A_MWH:A_MWH + H_EMB, :H_EMB] = w1
    slab_a[A_MWH + H_EMB:A_MWH + 2 * H_EMB, :H_EMB] = w2
    slab_a[A_MWH + 2 * H_EMB:A_MWH + 3 * H_EMB, :H_EMB] = w3
    slab_a[A_MB:A_MB + 4, :H_EMB] = np.concatenate([b0, b1, b2, b3], axis=0)
    slab_a[A_WEMB:A_WEMB + H_EMB, :D * NGROUP] = wemb
    slab_a[A_BEMB, :D * NGROUP] = bemb[0]
    slab_a[A_WZ0:A_WZ0 + H_EMB, :D] = wemb[:, ::NGROUP]          # hoisted z0 selection
    slab_a[A_BZ0, :D] = bemb[0, ::NGROUP]
    slab_a[A_RT:A_RT + M, :2 * B] = rt_np

    slab_b = np.zeros((B_ROWS, WB), np.float32)
    slab_b[B_WHB:B_WHB + D * NGROUP, :DH] = np.kron(eye, wh)     # (64, 256)
    slab_b[B_WXB:B_WXB + D, :DH] = np.kron(eye, wx)              # (8, 256)
    slab_b[B_BIB:B_BIB + 4, :DH] = np.concatenate(
        [np.tile(bi1, (1, D)), np.tile(bi2, (1, D)),
         np.tile(bi3, (1, D)), np.tile(bi4, (1, D))], axis=0)    # (4, 256)
    slab_b[B_WOB:B_WOB + DH, :D] = np.kron(eye, wo)              # (256, 8)
    slab_b[B_BOB, :D] = np.tile(bo, (1, D))[0]
    slab_b[B_CS:B_CS + B, :M] = cs_np

    wib = np.stack([np.kron(eye, wi2), np.kron(eye, wi3), np.kron(eye, wi4)])  # (3, 256, 256)
    return (jnp.asarray(slab_a), jnp.asarray(slab_b), jnp.asarray(wib, dtype=wib_dtype))


def umnnmaf_forward_pallas(x, slab_a, slab_b, wib):
    # No grid: single invocation, whole (<1.5 MB) problem resident in VMEM, no
    # double-buffered pipeline windows.
    return pl.pallas_call(
        umnn_kernel,
        out_shape=jax.ShapeDtypeStruct((B, D), jnp.float32),
        in_specs=[pl.BlockSpec(memory_space=pltpu.MemorySpace.VMEM)] * 4,
        out_specs=pl.BlockSpec(memory_space=pltpu.MemorySpace.VMEM),
    )(x, slab_a, slab_b, wib)


def umnnmaf_flow_forward(x, packed):
    slab_a, slab_b, wib = packed
    # UMNNMAFFlow_.forward: x = net(x)[:, ::-1] per flow, then final [:, ::-1].
    # (For NB_FLOW == 1 the two reversals cancel; kept outside the kernel for fidelity.)
    for _ in range(NB_FLOW):
        x = umnnmaf_forward_pallas(x, slab_a, slab_b, wib)[:, ::-1]
    return x[:, ::-1]


# ------------------------- plain-JAX reference (checking) -----------------------
def umnnmaf_reference(x, params, t, w):
    (w0, b0, w1, b1, w2, b2, w3, b3, wemb, bemb,
     wx, wh, bi1, wi2, bi2, wi3, bi3, wi4, bi4, wo, bo) = params
    a = _elu(x @ w0 + b0)
    a = _elu(a @ w1 + b1)
    a = _elu(a @ w2 + b2)
    a = _elu(a @ w3 + b3)
    hemb = a @ wemb + bemb
    hfeat = hemb.reshape(x.shape[0], D, NGROUP)
    z0 = hfeat[:, :, 0]
    hproj = jnp.einsum('bdg,gh->bdh', hfeat, wh) + bi1[0]
    X = x[:, :, None] * t[None, None, :]                                  # (B, D, NQ)
    a1 = _elu(hproj[:, :, None, :] + X[..., None] * wx[0])
    a2 = _elu(a1 @ wi2 + bi2[0])
    a3 = _elu(a2 @ wi3 + bi3[0])
    a4 = _elu(a3 @ wi4 + bi4[0])
    f = _elu(a4 @ wo + bo[0]) + 1.0                                       # (B, D, NQ, 1)
    integ = (f[..., 0] * w[None, None, :]).sum(-1) * x * 0.5
    return z0 + integ


def flow_reference(x, params, t, w):
    for _ in range(NB_FLOW):
        x = umnnmaf_reference(x, params, t, w)[:, ::-1]
    return x[:, ::-1]


# ------------------------------------ main --------------------------------------
if __name__ == "__main__":
    key = jax.random.PRNGKey(0)
    kx, kp = jax.random.split(key)
    params = init_params(kp)

    cc_w_np, steps_np = compute_cc_weights(NB_STEPS)
    t_nodes_np = ((steps_np + 1.0) * 0.5).astype(np.float32)              # x * t_q = CC node position
    rt_np, cs_np = build_quadrature_operators(t_nodes_np, cc_w_np)

    x = jax.random.normal(kx, (B, D), jnp.float32)
    ref = jax.block_until_ready(
        flow_reference(x, params, jnp.asarray(t_nodes_np), jnp.asarray(cc_w_np)))

    flow_fn = jax.jit(umnnmaf_flow_forward)

    # ---- strict structural check: f32 everywhere ----
    packed_f32 = pack_params(params, rt_np, cs_np, wib_dtype=jnp.float32)
    out_f32 = jax.block_until_ready(flow_fn(x, packed_f32))
    assert out_f32.shape == (B, D) and out_f32.dtype == jnp.float32
    if not np.allclose(np.asarray(out_f32), np.asarray(ref), atol=1e-3, rtol=1e-3):
        raise AssertionError("f32 Pallas kernel does not match reference")

    # ---- fast path: bf16 MXU operands / bf16 wib DMA, f32 accumulation ----
    packed_bf16 = pack_params(params, rt_np, cs_np, wib_dtype=jnp.bfloat16)
    out_bf16 = jax.block_until_ready(flow_fn(x, packed_bf16))
    assert out_bf16.shape == (B, D) and out_bf16.dtype == jnp.float32
    if not np.allclose(np.asarray(out_bf16), np.asarray(ref), atol=5e-2, rtol=5e-2):
        raise AssertionError("bf16 mixed-precision Pallas kernel deviates too much from reference")

    print("KERNEL_OK")
</pallas_src>

<mosaic_0001>
module attributes {stable_mosaic.version = 11 : i64} {
  func.func @umnn_kernel(%arg0: memref<16x8xf32, #tpu.memory_space<vmem>>, %arg1: memref<464x64xf32, #tpu.memory_space<vmem>>, %arg2: memref<360x272xf32, #tpu.memory_space<vmem>>, %arg3: memref<3x256x256xf32, #tpu.memory_space<vmem>>, %arg4: memref<16x8xf32, #tpu.memory_space<vmem>>) attributes {dimension_semantics = [], scalar_prefetch = 0 : i64, scratch_operands = 0 : i64, tpu.core_type = #tpu.core_type<tc>} {
    %c0 = arith.constant 0 : index
    %c0_0 = arith.constant 0 : index
    %0 = vector.load %arg0[%c0, %c0_0] : memref<16x8xf32, #tpu.memory_space<vmem>>, vector<16x8xf32>
    %c104 = arith.constant 104 : index
    %c0_1 = arith.constant 0 : index
    %1 = vector.load %arg1[%c104, %c0_1] : memref<464x64xf32, #tpu.memory_space<vmem>>, vector<4x32xf32>
    %c0_2 = arith.constant 0 : index
    %c0_3 = arith.constant 0 : index
    %2 = vector.load %arg1[%c0_2, %c0_3] : memref<464x64xf32, #tpu.memory_space<vmem>>, vector<8x32xf32>
    %cst = arith.constant dense<0.000000e+00> : vector<16x32xf32>
    %3 = tpu.matmul %0, %2, %cst {dimension_numbers = #tpu.dot_dimension_numbers<[1], [0], [0], [1], [0, 0, 1, 1], [], []>} : vector<16x8xf32>, vector<8x32xf32>, vector<16x32xf32> -> vector<16x32xf32>
    %4 = vector.extract_strided_slice %1 {offsets = [0, 0], sizes = [1, 32], strides = [1, 1]} : vector<4x32xf32> to vector<1x32xf32>
    %5 = vector.broadcast %4 : vector<1x32xf32> to vector<16x32xf32>
    %6 = arith.addf %3, %5 : vector<16x32xf32>
    %cst_4 = arith.constant 0.000000e+00 : f32
    %7 = vector.broadcast %cst_4 : f32 to vector<16x32xf32>
    %8 = arith.cmpf ogt, %6, %7 : vector<16x32xf32>
    %cst_5 = arith.constant 0.000000e+00 : f32
    %9 = vector.broadcast %cst_5 : f32 to vector<16x32xf32>
    %10 = arith.minimumf %6, %9 : vector<16x32xf32>
    %11 = math.exp %10 : vector<16x32xf32>
    %cst_6 = arith.constant 1.000000e+00 : f32
    %12 = vector.broadcast %cst_6 : f32 to vector<16x32xf32>
    %13 = arith.subf %11, %12 : vector<16x32xf32>
    %14 = arith.select %8, %6, %13 : vector<16x32xi1>, vector<16x32xf32>
    %c8 = arith.constant 8 : index
    %c0_7 = arith.constant 0 : index
    %15 = vector.load %arg1[%c8, %c0_7] : memref<464x64xf32, #tpu.memory_space<vmem>>, vector<32x32xf32>
    %cst_8 = arith.constant dense<0.000000e+00> : vector<16x32xf32>
    %16 = tpu.matmul %14, %15, %cst_8 {dimension_numbers = #tpu.dot_dimension_numbers<[1], [0], [0], [1], [0, 0, 1, 1], [], []>} : vector<16x32xf32>, vector<32x32xf32>, vector<16x32xf32> -> vector<16x32xf32>
    %17 = vector.extract_strided_slice %1 {offsets = [1, 0], sizes = [1, 32], strides = [1, 1]} : vector<4x32xf32> to vector<1x32xf32>
    %18 = vector.broadcast %17 : vector<1x32xf32> to vector<16x32xf32>
    %19 = arith.addf %16, %18 : vector<16x32xf32>
    %cst_9 = arith.constant 0.000000e+00 : f32
    %20 = vector.broadcast %cst_9 : f32 to vector<16x32xf32>
    %21 = arith.cmpf ogt, %19, %20 : vector<16x32xf32>
    %cst_10 = arith.constant 0.000000e+00 : f32
    %22 = vector.broadcast %cst_10 : f32 to vector<16x32xf32>
    %23 = arith.minimumf %19, %22 : vector<16x32xf32>
    %24 = math.exp %23 : vector<16x32xf32>
    %cst_11 = arith.constant 1.000000e+00 : f32
    %25 = vector.broadcast %cst_11 : f32 to vector<16x32xf32>
    %26 = arith.subf %24, %25 : vector<16x32xf32>
    %27 = arith.select %21, %19, %26 : vector<16x32xi1>, vector<16x32xf32>
    %c40 = arith.constant 40 : index
    %c0_12 = arith.constant 0 : index
    %28 = vector.load %arg1[%c40, %c0_12] : memref<464x64xf32, #tpu.memory_space<vmem>>, vector<32x32xf32>
    %cst_13 = arith.constant dense<0.000000e+00> : vector<16x32xf32>
    %29 = tpu.matmul %27, %28, %cst_13 {dimension_numbers = #tpu.dot_dimension_numbers<[1], [0], [0], [1], [0, 0, 1, 1], [], []>} : vector<16x32xf32>, vector<32x32xf32>, vector<16x32xf32> -> vector<16x32xf32>
    %30 = vector.extract_strided_slice %1 {offsets = [2, 0], sizes = [1, 32], strides = [1, 1]} : vector<4x32xf32> to vector<1x32xf32>
    %31 = vector.broadcast %30 : vector<1x32xf32> to vector<16x32xf32>
    %32 = arith.addf %29, %31 : vector<16x32xf32>
    %cst_14 = arith.constant 0.000000e+00 : f32
    %33 = vector.broadcast %cst_14 : f32 to vector<16x32xf32>
    %34 = arith.cmpf ogt, %32, %33 : vector<16x32xf32>
    %cst_15 = arith.constant 0.000000e+00 : f32
    %35 = vector.broadcast %cst_15 : f32 to vector<16x32xf32>
    %36 = arith.minimumf %32, %35 : vector<16x32xf32>
    %37 = math.exp %36 : vector<16x32xf32>
    %cst_16 = arith.constant 1.000000e+00 : f32
    %38 = vector.broadcast %cst_16 : f32 to vector<16x32xf32>
    %39 = arith.subf %37, %38 : vector<16x32xf32>
    %40 = arith.select %34, %32, %39 : vector<16x32xi1>, vector<16x32xf32>
    %c72 = arith.constant 72 : index
    %c0_17 = arith.constant 0 : index
    %41 = vector.load %arg1[%c72, %c0_17] : memref<464x64xf32, #tpu.memory_space<vmem>>, vector<32x32xf32>
    %cst_18 = arith.constant dense<0.000000e+00> : vector<16x32xf32>
    %42 = tpu.matmul %40, %41, %cst_18 {dimension_numbers = #tpu.dot_dimension_numbers<[1], [0], [0], [1], [0, 0, 1, 1], [], []>} : vector<16x32xf32>, vector<32x32xf32>, vector<16x32xf32> -> vector<16x32xf32>
    %43 = vector.extract_strided_slice %1 {offsets = [3, 0], sizes = [1, 32], strides = [1, 1]} : vector<4x32xf32> to vector<1x32xf32>
    %44 = vector.broadcast %43 : vector<1x32xf32> to vector<16x32xf32>
    %45 = arith.addf %42, %44 : vector<16x32xf32>
    %cst_19 = arith.constant 0.000000e+00 : f32
    %46 = vector.broadcast %cst_19 : f32 to vector<16x32xf32>
    %47 = arith.cmpf ogt, %45, %46 : vector<16x32xf32>
    %cst_20 = arith.constant 0.000000e+00 : f32
    %48 = vector.broadcast %cst_20 : f32 to vector<16x32xf32>
    %49 = arith.minimumf %45, %48 : vector<16x32xf32>
    %50 = math.exp %49 : vector<16x32xf32>
    %cst_21 = arith.constant 1.000000e+00 : f32
    %51 = vector.broadcast %cst_21 : f32 to vector<16x32xf32>
    %52 = arith.subf %50, %51 : vector<16x32xf32>
    %53 = arith.select %47, %45, %52 : vector<16x32xi1>, vector<16x32xf32>
    %c112 = arith.constant 112 : index
    %c0_22 = arith.constant 0 : index
    %54 = vector.load %arg1[%c112, %c0_22] : memref<464x64xf32, #tpu.memory_space<vmem>>, vector<32x64xf32>
    %cst_23 = arith.constant dense<0.000000e+00> : vector<16x64xf32>
    %55 = tpu.matmul %53, %54, %cst_23 {dimension_numbers = #tpu.dot_dimension_numbers<[1], [0], [0], [1], [0, 0, 1, 1], [], []>} : vector<16x32xf32>, vector<32x64xf32>, vector<16x64xf32> -> vector<16x64xf32>
    %c144 = arith.constant 144 : index
    %c0_24 = arith.constant 0 : index
    %56 = vector.load %arg1[%c144, %c0_24] : memref<464x64xf32, #tpu.memory_space<vmem>>, vector<1x64xf32>
    %57 = vector.broadcast %56 : vector<1x64xf32> to vector<16x64xf32>
    %58 = arith.addf %55, %57 : vector<16x64xf32>
    %c152 = arith.constant 152 : index
    %c0_25 = arith.constant 0 : index
    %59 = vector.load %arg1[%c152, %c0_25] : memref<464x64xf32, #tpu.memory_space<vmem>>, vector<32x8xf32>
    %cst_26 = arith.constant dense<0.000000e+00> : vector<16x8xf32>
    %60 = tpu.matmul %53, %59, %cst_26 {dimension_numbers = #tpu.dot_dimension_numbers<[1], [0], [0], [1], [0, 0, 1, 1], [], []>} : vector<16x32xf32>, vector<32x8xf32>, vector<16x8xf32> -> vector<16x8xf32>
    %c184 = arith.constant 184 : index
    %c0_27 = arith.constant 0 : index
    %61 = vector.load %arg1[%c184, %c0_27] : memref<464x64xf32, #tpu.memory_space<vmem>>, vector<1x8xf32>
    %62 = vector.broadcast %61 : vector<1x8xf32> to vector<16x8xf32>
    %63 = arith.addf %60, %62 : vector<16x8xf32>
    %c72_28 = arith.constant 72 : index
    %c0_29 = arith.constant 0 : index
    %64 = vector.load %arg2[%c72_28, %c0_29] : memref<360x272xf32, #tpu.memory_space<vmem>>, vector<4x256xf32>
    %c0_30 = arith.constant 0 : index
    %c0_31 = arith.constant 0 : index
    %65 = vector.load %arg2[%c0_30, %c0_31] : memref<360x272xf32, #tpu.memory_space<vmem>>, vector<64x256xf32>
    %cst_32 = arith.constant dense<0.000000e+00> : vector<16x256xf32>
    %66 = tpu.matmul %58, %65, %cst_32 {dimension_numbers = #tpu.dot_dimension_numbers<[1], [0], [0], [1], [0, 0, 1, 1], [], []>} : vector<16x64xf32>, vector<64x256xf32>, vector<16x256xf32> -> vector<16x256xf32>
    %67 = vector.extract_strided_slice %64 {offsets = [0, 0], sizes = [1, 256], strides = [1, 1]} : vector<4x256xf32> to vector<1x256xf32>
    %68 = vector.broadcast %67 : vector<1x256xf32> to vector<16x256xf32>
    %69 = arith.addf %66, %68 : vector<16x256xf32>
    %c64 = arith.constant 64 : index
    %c0_33 = arith.constant 0 : index
    %70 = vector.load %arg2[%c64, %c0_33] : memref<360x272xf32, #tpu.memory_space<vmem>>, vector<8x256xf32>
    %cst_34 = arith.constant dense<0.000000e+00> : vector<16x256xf32>
    %71 = tpu.matmul %0, %70, %cst_34 {dimension_numbers = #tpu.dot_dimension_numbers<[1], [0], [0], [1], [0, 0, 1, 1], [], []>} : vector<16x8xf32>, vector<8x256xf32>, vector<16x256xf32> -> vector<16x256xf32>
    %72 = tpu.concatenate %69, %71 in 0 : vector<16x256xf32>, vector<16x256xf32> -> vector<32x256xf32>
    %c192 = arith.constant 192 : index
    %c0_35 = arith.constant 0 : index
    %73 = vector.load %arg1[%c192, %c0_35] : memref<464x64xf32, #tpu.memory_space<vmem>>, vector<272x32xf32>
    %cst_36 = arith.constant dense<0.000000e+00> : vector<272x256xf32>
    %74 = tpu.matmul %73, %72, %cst_36 {dimension_numbers = #tpu.dot_dimension_numbers<[1], [0], [0], [1], [0, 0, 1, 1], [], []>} : vector<272x32xf32>, vector<32x256xf32>, vector<272x256xf32> -> vector<272x256xf32>
    %cst_37 = arith.constant 0.000000e+00 : f32
    %75 = vector.broadcast %cst_37 : f32 to vector<272x256xf32>
    %76 = arith.cmpf ogt, %74, %75 : vector<272x256xf32>
    %cst_38 = arith.constant 0.000000e+00 : f32
    %77 = vector.broadcast %cst_38 : f32 to vector<272x256xf32>
    %78 = arith.minimumf %74, %77 : vector<272x256xf32>
    %79 = math.exp %78 : vector<272x256xf32>
    %cst_39 = arith.constant 1.000000e+00 : f32
    %80 = vector.broadcast %cst_39 : f32 to vector<272x256xf32>
    %81 = arith.subf %79, %80 : vector<272x256xf32>
    %82 = arith.select %76, %74, %81 : vector<272x256xi1>, vector<272x256xf32>
    %c0_40 = arith.constant 0 : index
    %c0_41 = arith.constant 0 : index
    %c0_42 = arith.constant 0 : index
    %83 = vector.load %arg3[%c0_40, %c0_41, %c0_42] : memref<3x256x256xf32, #tpu.memory_space<vmem>>, vector<1x256x256xf32>
    %84 = vector.shape_cast %83 : vector<1x256x256xf32> to vector<256x256xf32>
    %cst_43 = arith.constant dense<0.000000e+00> : vector<272x256xf32>
    %85 = tpu.matmul %82, %84, %cst_43 {dimension_numbers = #tpu.dot_dimension_numbers<[1], [0], [0], [1], [0, 0, 1, 1], [], []>} : vector<272x256xf32>, vector<256x256xf32>, vector<272x256xf32> -> vector<272x256xf32>
    %86 = vector.extract_strided_slice %64 {offsets = [1, 0], sizes = [1, 256], strides = [1, 1]} : vector<4x256xf32> to vector<1x256xf32>
    %87 = vector.broadcast %86 : vector<1x256xf32> to vector<272x256xf32>
    %88 = arith.addf %85, %87 : vector<272x256xf32>
    %cst_44 = arith.constant 0.000000e+00 : f32
    %89 = vector.broadcast %cst_44 : f32 to vector<272x256xf32>
    %90 = arith.cmpf ogt, %88, %89 : vector<272x256xf32>
    %cst_45 = arith.constant 0.000000e+00 : f32
    %91 = vector.broadcast %cst_45 : f32 to vector<272x256xf32>
    %92 = arith.minimumf %88, %91 : vector<272x256xf32>
    %93 = math.exp %92 : vector<272x256xf32>
    %cst_46 = arith.constant 1.000000e+00 : f32
    %94 = vector.broadcast %cst_46 : f32 to vector<272x256xf32>
    %95 = arith.subf %93, %94 : vector<272x256xf32>
    %96 = arith.select %90, %88, %95 : vector<272x256xi1>, vector<272x256xf32>
    %c1 = arith.constant 1 : index
    %c0_47 = arith.constant 0 : index
    %c0_48 = arith.constant 0 : index
    %97 = vector.load %arg3[%c1, %c0_47, %c0_48] : memref<3x256x256xf32, #tpu.memory_space<vmem>>, vector<1x256x256xf32>
    %98 = vector.shape_cast %97 : vector<1x256x256xf32> to vector<256x256xf32>
    %cst_49 = arith.constant dense<0.000000e+00> : vector<272x256xf32>
    %99 = tpu.matmul %96, %98, %cst_49 {dimension_numbers = #tpu.dot_dimension_numbers<[1], [0], [0], [1], [0, 0, 1, 1], [], []>} : vector<272x256xf32>, vector<256x256xf32>, vector<272x256xf32> -> vector<272x256xf32>
    %100 = vector.extract_strided_slice %64 {offsets = [2, 0], sizes = [1, 256], strides = [1, 1]} : vector<4x256xf32> to vector<1x256xf32>
    %101 = vector.broadcast %100 : vector<1x256xf32> to vector<272x256xf32>
    %102 = arith.addf %99, %101 : vector<272x256xf32>
    %cst_50 = arith.constant 0.000000e+00 : f32
    %103 = vector.broadcast %cst_50 : f32 to vector<272x256xf32>
    %104 = arith.cmpf ogt, %102, %103 : vector<272x256xf32>
    %cst_51 = arith.constant 0.000000e+00 : f32
    %105 = vector.broadcast %cst_51 : f32 to vector<272x256xf32>
    %106 = arith.minimumf %102, %105 : vector<272x256xf32>
    %107 = math.exp %106 : vector<272x256xf32>
    %cst_52 = arith.constant 1.000000e+00 : f32
    %108 = vector.broadcast %cst_52 : f32 to vector<272x256xf32>
    %109 = arith.subf %107, %108 : vector<272x256xf32>
    %110 = arith.select %104, %102, %109 : vector<272x256xi1>, vector<272x256xf32>
    %c2 = arith.constant 2 : index
    %c0_53 = arith.constant 0 : index
    %c0_54 = arith.constant 0 : index
    %111 = vector.load %arg3[%c2, %c0_53, %c0_54] : memref<3x256x256xf32, #tpu.memory_space<vmem>>, vector<1x256x256xf32>
    %112 = vector.shape_cast %111 : vector<1x256x256xf32> to vector<256x256xf32>
    %cst_55 = arith.constant dense<0.000000e+00> : vector<272x256xf32>
    %113 = tpu.matmul %110, %112, %cst_55 {dimension_numbers = #tpu.dot_dimension_numbers<[1], [0], [0], [1], [0, 0, 1, 1], [], []>} : vector<272x256xf32>, vector<256x256xf32>, vector<272x256xf32> -> vector<272x256xf32>
    %114 = vector.extract_strided_slice %64 {offsets = [3, 0], sizes = [1, 256], strides = [1, 1]} : vector<4x256xf32> to vector<1x256xf32>
    %115 = vector.broadcast %114 : vector<1x256xf32> to vector<272x256xf32>
    %116 = arith.addf %113, %115 : vector<272x256xf32>
    %cst_56 = arith.constant 0.000000e+00 : f32
    %117 = vector.broadcast %cst_56 : f32 to vector<272x256xf32>
    %118 = arith.cmpf ogt, %116, %117 : vector<272x256xf32>
    %cst_57 = arith.constant 0.000000e+00 : f32
    %119 = vector.broadcast %cst_57 : f32 to vector<272x256xf32>
    %120 = arith.minimumf %116, %119 : vector<272x256xf32>
    %121 = math.exp %120 : vector<272x256xf32>
    %cst_58 = arith.constant 1.000000e+00 : f32
    %122 = vector.broadcast %cst_58 : f32 to vector<272x256xf32>
    %123 = arith.subf %121, %122 : vector<272x256xf32>
    %124 = arith.select %118, %116, %123 : vector<272x256xi1>, vector<272x256xf32>
    %c80 = arith.constant 80 : index
    %c0_59 = arith.constant 0 : index
    %125 = vector.load %arg2[%c80, %c0_59] : memref<360x272xf32, #tpu.memory_space<vmem>>, vector<256x8xf32>
    %cst_60 = arith.constant dense<0.000000e+00> : vector<272x8xf32>
    %126 = tpu.matmul %124, %125, %cst_60 {dimension_numbers = #tpu.dot_dimension_numbers<[1], [0], [0], [1], [0, 0, 1, 1], [], []>} : vector<272x256xf32>, vector<256x8xf32>, vector<272x8xf32> -> vector<272x8xf32>
    %c336 = arith.constant 336 : index
    %c0_61 = arith.constant 0 : index
    %127 = vector.load %arg2[%c336, %c0_61] : memref<360x272xf32, #tpu.memory_space<vmem>>, vector<1x8xf32>
    %128 = vector.broadcast %127 : vector<1x8xf32> to vector<272x8xf32>
    %129 = arith.addf %126, %128 : vector<272x8xf32>
    %cst_62 = arith.constant 0.000000e+00 : f32
    %130 = vector.broadcast %cst_62 : f32 to vector<272x8xf32>
    %131 = arith.cmpf ogt, %129, %130 : vector<272x8xf32>
    %cst_63 = arith.constant 0.000000e+00 : f32
    %132 = vector.broadcast %cst_63 : f32 to vector<272x8xf32>
    %133 = arith.minimumf %129, %132 : vector<272x8xf32>
    %134 = math.exp %133 : vector<272x8xf32>
    %cst_64 = arith.constant 1.000000e+00 : f32
    %135 = vector.broadcast %cst_64 : f32 to vector<272x8xf32>
    %136 = arith.subf %134, %135 : vector<272x8xf32>
    %137 = arith.select %131, %129, %136 : vector<272x8xi1>, vector<272x8xf32>
    %cst_65 = arith.constant 1.000000e+00 : f32
    %138 = vector.broadcast %cst_65 : f32 to vector<272x8xf32>
    %139 = arith.addf %137, %138 : vector<272x8xf32>
    %c344 = arith.constant 344 : index
    %c0_66 = arith.constant 0 : index
    %140 = vector.load %arg2[%c344, %c0_66] : memref<360x272xf32, #tpu.memory_space<vmem>>, vector<16x272xf32>
    %cst_67 = arith.constant dense<0.000000e+00> : vector<16x8xf32>
    %141 = tpu.matmul %140, %139, %cst_67 {dimension_numbers = #tpu.dot_dimension_numbers<[1], [0], [0], [1], [0, 0, 1, 1], [], []>} : vector<16x272xf32>, vector<272x8xf32>, vector<16x8xf32> -> vector<16x8xf32>
    %142 = arith.mulf %0, %141 : vector<16x8xf32>
    %143 = arith.addf %63, %142 : vector<16x8xf32>
    %c0_68 = arith.constant 0 : index
    %c0_69 = arith.constant 0 : index
    %144 = vector.load %arg4[%c0_68, %c0_69] : memref<16x8xf32, #tpu.memory_space<vmem>>, vector<16x8xf32>
    tpu.vector_store %arg4[%c0_68, %c0_69], %143 {strides = array<i32>} : memref<16x8xf32, #tpu.memory_space<vmem>>, vector<16x8xf32>,
    return
  }
}

</mosaic_0001>

<llo_original>
// kernel: umnnmaf_flow_forward.1
$region0: #{umnnmaf_flow_forward.1}
  #allocation0 [shape = 'u32[]', space=smem, size = 0x4, offset = 0x4, fixed_abs, tag = 'smem constant byte address 0x4 - core index']
  #allocation1 [shape = 'u32[144,128]{1,0:T(1,128)}', space=vmem, size = 0x12000, scoped, tag = 'internal scratch']
  %s0 = inlined_call_operand.vmem [shape: f32[16,8], index: 0, kind: input, shape index: {}]
  %s1 = inlined_call_operand.vmem [shape: f32[464,64], index: 1, kind: input, shape index: {}]
  %s2 = inlined_call_operand.vmem [shape: f32[360,272], index: 2, kind: input, shape index: {}]
  %s3 = inlined_call_operand.vmem [shape: f32[3,256,256], index: 3, kind: input, shape index: {}]
  %s4 = inlined_call_operand.vmem [shape: f32[16,8], index: 4, kind: output, shape index: {}]
  %s5 = sld [smem:[#allocation0]]
  $region26: #{umnnmaf_flow_forward.1} parent=0
    _
  %s7 = ssub.s32 1, %s5
  %s8 = scalar_select 0, %s7, %s5
  // Predicated region
  $region2: #{umnnmaf_flow_forward.1} parent=0 // pred_check
    _
  $region3: #{umnnmaf_flow_forward.1} parent=0 // pred_check_branch
    %10 = sbr.rel (0) target = $region5
  $region4: #{umnnmaf_flow_forward.1} parent=0 // pred_region
    _
  $region5: #{umnnmaf_flow_forward.1} parent=0 // pred_fallthru
    _
  // Predicated region
  $region6: #{umnnmaf_flow_forward.1} parent=0 // pred_check
    _
  $region7: #{umnnmaf_flow_forward.1} parent=0 // pred_check_branch
    %12 = sbr.rel (0) target = $region9
  $region8: #{umnnmaf_flow_forward.1} parent=0 // pred_region
    _
  $region9: #{umnnmaf_flow_forward.1} parent=0 // pred_fallthru
    _
  // Predicated region
  $region10: #{umnnmaf_flow_forward.1} parent=0 // pred_check
    _
  $region11: #{umnnmaf_flow_forward.1} parent=0 // pred_check_branch
    %14 = sbr.rel (0) target = $region13
  $region12: #{umnnmaf_flow_forward.1} parent=0 // pred_region
    _
  $region13: #{umnnmaf_flow_forward.1} parent=0 // pred_fallthru
    _
  // Predicated region
  $region14: #{umnnmaf_flow_forward.1} parent=0 // pred_check
    _
  $region15: #{umnnmaf_flow_forward.1} parent=0 // pred_check_branch
    %16 = sbr.rel (0) target = $region17
  $region16: #{umnnmaf_flow_forward.1} parent=0 // pred_region
    _
  $region17: #{umnnmaf_flow_forward.1} parent=0 // pred_fallthru
    _
  %v17 = vld [vmem:[%s0] sm:$0xff]
  %v18 = vld [vmem:[%s0 + $0x8] sm:$0xff]
  %v19 = vld [vmem:[%s1 + $0x68] sm:$0xf]
  %v20 = vld [vmem:[%s1] sm:$0xff]
  %v21 = vlaneseq
  %v22 = vshrl.u32 %v21, 7
  %v23 = vsub.s32 0, %v22
  %v24 = vrot.slane %v19, %v23
  %vm25 = vcmask 64512
  %v27 = vsel %vm25, %v17, 0
  %v30 = vsel %vm25, %v18, 0
  %32 = vmatprep.subr.mxu0 0.0
  %33 = vmatpush1.msra.mxu0 %v20
  %34 = vmatprep.subr.mxu0 0.0
  %35 = vmatpush1.msra.mxu0 0.0
  %36 = vmatprep.subr.mxu0 0.0
  %37 = vmatpush1.msra.mxu0 0.0
  %38 = vmatprep.subr.mxu0 0.0
  %39 = vmatpush1.msra.mxu0 0.0
  %40 = vmatprep.subr.mxu0 0.0
  %41 = vmatpush1.msra.mxu0 0.0
  %42 = vmatprep.subr.mxu0 0.0
  %43 = vmatpush1.msra.mxu0 0.0
  %44 = vmatprep.subr.mxu0 0.0
  %45 = vmatpush1.msra.mxu0 0.0
  %46 = vmatprep.subr.mxu0 0.0
  %47 = vmatpush1.msra.mxu0 0.0
  %48 = vmatprep.subr.mxu0 0.0
  %49 = vmatpush1.msra.mxu0 0.0
  %50 = vmatprep.subr.mxu0 0.0
  %51 = vmatpush1.msra.mxu0 0.0
  %52 = vmatprep.subr.mxu0 0.0
  %53 = vmatpush1.msra.mxu0 0.0
  %54 = vmatprep.subr.mxu0 0.0
  %55 = vmatpush1.msra.mxu0 0.0
  %56 = vmatprep.subr.mxu0 0.0
  %57 = vmatpush1.msra.mxu0 0.0
  %58 = vmatprep.subr.mxu0 0.0
  %59 = vmatpush1.msra.mxu0 0.0
  %60 = vmatprep.subr.mxu0 0.0
  %61 = vmatpush1.msra.mxu0 0.0
  %62 = vmatprep.subr.mxu0 0.0
  %63 = vmatpush1.msra.mxu0 0.0
  %64 = vmatprep.subr.mxu0 0.0
  %65 = vmatpush1.msra.mxu0 0.0
  %66 = vmatprep.subr.mxu0 0.0
  %67 = vmatpush1.msra.mxu0 0.0
  %68 = vmatprep.subr.mxu0 0.0
  %69 = vmatpush1.msra.mxu0 0.0
  %70 = vmatprep.subr.mxu0 0.0
  %71 = vmatpush1.msra.mxu0 0.0
  %72 = vmatprep.subr.mxu0 0.0
  %73 = vmatpush1.msra.mxu0 0.0
  %74 = vmatprep.subr.mxu0 0.0
  %75 = vmatpush1.msra.mxu0 0.0
  %76 = vmatprep.subr.mxu0 0.0
  %77 = vmatpush1.msra.mxu0 0.0
  %78 = vmatprep.subr.mxu0 0.0
  %79 = vmatpush1.msra.mxu0 0.0
  %80 = vmatprep.subr.mxu0 0.0
  %81 = vmatpush1.msra.mxu0 0.0
  %82 = vmatprep.subr.mxu0 0.0
  %83 = vmatpush1.msra.mxu0 0.0
  %84 = vmatprep.subr.mxu0 0.0
  %85 = vmatpush1.msra.mxu0 0.0
  %86 = vmatprep.subr.mxu0 0.0
  %87 = vmatpush1.msra.mxu0 0.0
  %88 = vmatprep.subr.mxu0 0.0
  %89 = vmatpush1.msra.mxu0 0.0
  %90 = vmatprep.subr.mxu0 0.0
  %91 = vmatpush1.msra.mxu0 0.0
  %92 = vmatprep.subr.mxu0 0.0
  %93 = vmatpush1.msra.mxu0 0.0
  %94 = vmatprep.subr.mxu0 0.0
  %95 = vmatpush1.msra.mxu0 0.0
  %96 = vmatprep.mubr.f32.mxu0 0.0
  %97 = vmatmul.mubr.f32.gmra.mrb[0].mxu0 %v27
  %v98 = vpop.f32.mrb[0].mxu0
  %v99 = vadd.f32 %v24, %v98
  %v100 = vpop.f32.mrb[0].mxu0
  %101 = vmatprep.mubr.f32.mxu0 0.0
  %102 = vmatmul.mubr.f32.gmra.mrb[0].mxu0 %v30
  %v103 = vpop.f32.mrb[0].mxu0
  %v104 = vadd.f32 %v24, %v103
  %v105 = vpop.f32.mrb[0].mxu0
  %106 = vdwg.mxu0
  %vm107 = vcmp.gt.f32.partialorder %v99, 0.0
  %vm108 = vcmp.gt.f32.partialorder %v104, 0.0
  %v109 = vmin.f32 %v99, 0.0
  %v110 = vmin.f32 %v104, 0.0
  %v111 = vmul.f32 %v109, 1.442695
  %v112 = vpow.pop %v111
  %v113 = vmul.f32 %v110, 1.442695
  %v114 = vpow.pop %v113
  %v115 = vsub.f32 %v112, 1.0
  %v116 = vsub.f32 %v114, 1.0
  %v117 = vsel %vm107, %v99, %v115
  %v118 = vsel %vm108, %v104, %v116
  %v119 = vld [vmem:[%s1 + $0x8] sm:$0xff]
  %v120 = vld [vmem:[%s1 + $0x10] sm:$0xff]
  %v121 = vld [vmem:[%s1 + $0x18] sm:$0xff]
  %v122 = vld [vmem:[%s1 + $0x20] sm:$0xff]
  %v123 = vlaneseq
  %v124 = vshrl.u32 %v123, 7
  %v125 = vsub.s32 1, %v124
  %v126 = vrot.slane %v19, %v125
  %vm127 = vcmask 261120
  %v129 = vsel %vm127, %v117, 0
  %v132 = vsel %vm127, %v118, 0
  %134 = vmatprep.subr.mxu0 0.0
  %135 = vmatpush1.msra.mxu0 %v119
  %136 = vmatprep.subr.mxu0 0.0
  %137 = vmatpush1.msra.mxu0 %v120
  %138 = vmatprep.subr.mxu0 0.0
  %139 = vmatpush1.msra.mxu0 %v121
  %140 = vmatprep.subr.mxu0 0.0
  %141 = vmatpush1.msra.mxu0 %v122
  %142 = vmatprep.subr.mxu0 0.0
  %143 = vmatpush1.msra.mxu0 0.0
  %144 = vmatprep.subr.mxu0 0.0
  %145 = vmatpush1.msra.mxu0 0.0
  %146 = vmatprep.subr.mxu0 0.0
  %147 = vmatpush1.msra.mxu0 0.0
  %148 = vmatprep.subr.mxu0 0.0
  %149 = vmatpush1.msra.mxu0 0.0
  %150 = vmatprep.subr.mxu0 0.0
  %151 = vmatpush1.msra.mxu0 0.0
  %152 = vmatprep.subr.mxu0 0.0
  %153 = vmatpush1.msra.mxu0 0.0
  %154 = vmatprep.subr.mxu0 0.0
  %155 = vmatpush1.msra.mxu0 0.0
  %156 = vmatprep.subr.mxu0 0.0
  %157 = vmatpush1.msra.mxu0 0.0
  %158 = vmatprep.subr.mxu0 0.0
  %159 = vmatpush1.msra.mxu0 0.0
  %160 = vmatprep.subr.mxu0 0.0
  %161 = vmatpush1.msra.mxu0 0.0
  %162 = vmatprep.subr.mxu0 0.0
  %163 = vmatpush1.msra.mxu0 0.0
  %164 = vmatprep.subr.mxu0 0.0
  %165 = vmatpush1.msra.mxu0 0.0
  %166 = vmatprep.subr.mxu0 0.0
  %167 = vmatpush1.msra.mxu0 0.0
  %168 = vmatprep.subr.mxu0 0.0
  %169 = vmatpush1.msra.mxu0 0.0
  %170 = vmatprep.subr.mxu0 0.0
  %171 = vmatpush1.msra.mxu0 0.0
  %172 = vmatprep.subr.mxu0 0.0
  %173 = vmatpush1.msra.mxu0 0.0
  %174 = vmatprep.subr.mxu0 0.0
  %175 = vmatpush1.msra.mxu0 0.0
  %176 = vmatprep.subr.mxu0 0.0
  %177 = vmatpush1.msra.mxu0 0.0
  %178 = vmatprep.subr.mxu0 0.0
  %179 = vmatpush1.msra.mxu0 0.0
  %180 = vmatprep.subr.mxu0 0.0
  %181 = vmatpush1.msra.mxu0 0.0
  %182 = vmatprep.subr.mxu0 0.0
  %183 = vmatpush1.msra.mxu0 0.0
  %184 = vmatprep.subr.mxu0 0.0
  %185 = vmatpush1.msra.mxu0 0.0
  %186 = vmatprep.subr.mxu0 0.0
  %187 = vmatpush1.msra.mxu0 0.0
  %188 = vmatprep.subr.mxu0 0.0
  %189 = vmatpush1.msra.mxu0 0.0
  %190 = vmatprep.subr.mxu0 0.0
  %191 = vmatpush1.msra.mxu0 0.0
  %192 = vmatprep.subr.mxu0 0.0
  %193 = vmatpush1.msra.mxu0 0.0
  %194 = vmatprep.subr.mxu0 0.0
  %195 = vmatpush1.msra.mxu0 0.0
  %196 = vmatprep.subr.mxu0 0.0
  %197 = vmatpush1.msra.mxu0 0.0
  %198 = vmatprep.mubr.f32.mxu0 0.0
  %199 = vmatmul.mubr.f32.gmra.mrb[0].mxu0 %v129
  %v200 = vpop.f32.mrb[0].mxu0
  %v201 = vadd.f32 %v126, %v200
  %v202 = vpop.f32.mrb[0].mxu0
  %203 = vmatprep.mubr.f32.mxu0 0.0
  %204 = vmatmul.mubr.f32.gmra.mrb[0].mxu0 %v132
  %v205 = vpop.f32.mrb[0].mxu0
  %v206 = vadd.f32 %v126, %v205
  %v207 = vpop.f32.mrb[0].mxu0
  %208 = vdwg.mxu0
  %vm209 = vcmp.gt.f32.partialorder %v201, 0.0
  %vm210 = vcmp.gt.f32.partialorder %v206, 0.0
  %v211 = vmin.f32 %v201, 0.0
  %v212 = vmin.f32 %v206, 0.0
  %v213 = vmul.f32 %v211, 1.442695
  %v214 = vpow.pop %v213
  %v215 = vmul.f32 %v212, 1.442695
  %v216 = vpow.pop %v215
  %v217 = vsub.f32 %v214, 1.0
  %v218 = vsub.f32 %v216, 1.0
  %v219 = vsel %vm209, %v201, %v217
  %v220 = vsel %vm210, %v206, %v218
  %v221 = vld [vmem:[%s1 + $0x28] sm:$0xff]
  %v222 = vld [vmem:[%s1 + $0x30] sm:$0xff]
  %v223 = vld [vmem:[%s1 + $0x38] sm:$0xff]
  %v224 = vld [vmem:[%s1 + $0x40] sm:$0xff]
  %v225 = vlaneseq
  %v226 = vshrl.u32 %v225, 7
  %v227 = vsub.s32 2, %v226
  %v228 = vrot.slane %v19, %v227
  %v230 = vsel %vm127, %v219, 0
  %v233 = vsel %vm127, %v220, 0
  %235 = vmatprep.subr.mxu0 0.0
  %236 = vmatpush1.msra.mxu0 %v221
  %237 = vmatprep.subr.mxu0 0.0
  %238 = vmatpush1.msra.mxu0 %v222
  %239 = vmatprep.subr.mxu0 0.0
  %240 = vmatpush1.msra.mxu0 %v223
  %241 = vmatprep.subr.mxu0 0.0
  %242 = vmatpush1.msra.mxu0 %v224
  %243 = vmatprep.subr.mxu0 0.0
  %244 = vmatpush1.msra.mxu0 0.0
  %245 = vmatprep.subr.mxu0 0.0
  %246 = vmatpush1.msra.mxu0 0.0
  %247 = vmatprep.subr.mxu0 0.0
  %248 = vmatpush1.msra.mxu0 0.0
  %249 = vmatprep.subr.mxu0 0.0
  %250 = vmatpush1.msra.mxu0 0.0
  %251 = vmatprep.subr.mxu0 0.0
  %252 = vmatpush1.msra.mxu0 0.0
  %253 = vmatprep.subr.mxu0 0.0
  %254 = vmatpush1.msra.mxu0 0.0
  %255 = vmatprep.subr.mxu0 0.0
  %256 = vmatpush1.msra.mxu0 0.0
  %257 = vmatprep.subr.mxu0 0.0
  %258 = vmatpush1.msra.mxu0 0.0
  %259 = vmatprep.subr.mxu0 0.0
  %260 = vmatpush1.msra.mxu0 0.0
  %261 = vmatprep.subr.mxu0 0.0
  %262 = vmatpush1.msra.mxu0 0.0
  %263 = vmatprep.subr.mxu0 0.0
  %264 = vmatpush1.msra.mxu0 0.0
  %265 = vmatprep.subr.mxu0 0.0
  %266 = vmatpush1.msra.mxu0 0.0
  %267 = vmatprep.subr.mxu0 0.0
  %268 = vmatpush1.msra.mxu0 0.0
  %269 = vmatprep.subr.mxu0 0.0
  %270 = vmatpush1.msra.mxu0 0.0
  %271 = vmatprep.subr.mxu0 0.0
  %272 = vmatpush1.msra.mxu0 0.0
  %273 = vmatprep.subr.mxu0 0.0
  %274 = vmatpush1.msra.mxu0 0.0
  %275 = vmatprep.subr.mxu0 0.0
  %276 = vmatpush1.msra.mxu0 0.0
  %277 = vmatprep.subr.mxu0 0.0
  %278 = vmatpush1.msra.mxu0 0.0
  %279 = vmatprep.subr.mxu0 0.0
  %280 = vmatpush1.msra.mxu0 0.0
  %281 = vmatprep.subr.mxu0 0.0
  %282 = vmatpush1.msra.mxu0 0.0
  %283 = vmatprep.subr.mxu0 0.0
  %284 = vmatpush1.msra.mxu0 0.0
  %285 = vmatprep.subr.mxu0 0.0
  %286 = vmatpush1.msra.mxu0 0.0
  %287 = vmatprep.subr.mxu0 0.0
  %288 = vmatpush1.msra.mxu0 0.0
  %289 = vmatprep.subr.mxu0 0.0
  %290 = vmatpush1.msra.mxu0 0.0
  %291 = vmatprep.subr.mxu0 0.0
  %292 = vmatpush1.msra.mxu0 0.0
  %293 = vmatprep.subr.mxu0 0.0
  %294 = vmatpush1.msra.mxu0 0.0
  %295 = vmatprep.subr.mxu0 0.0
  %296 = vmatpush1.msra.mxu0 0.0
  %297 = vmatprep.subr.mxu0 0.0
  %298 = vmatpush1.msra.mxu0 0.0
  %299 = vmatprep.mubr.f32.mxu0 0.0
  %300 = vmatmul.mubr.f32.gmra.mrb[0].mxu0 %v230
  %v301 = vpop.f32.mrb[0].mxu0
  %v302 = vadd.f32 %v228, %v301
  %v303 = vpop.f32.mrb[0].mxu0
  %304 = vmatprep.mubr.f32.mxu0 0.0
  %305 = vmatmul.mubr.f32.gmra.mrb[0].mxu0 %v233
  %v306 = vpop.f32.mrb[0].mxu0
  %v307 = vadd.f32 %v228, %v306
  %v308 = vpop.f32.mrb[0].mxu0
  %309 = vdwg.mxu0
  %vm310 = vcmp.gt.f32.partialorder %v302, 0.0
  %vm311 = vcmp.gt.f32.partialorder %v307, 0.0
  %v312 = vmin.f32 %v302, 0.0
  %v313 = vmin.f32 %v307, 0.0
  %v314 = vmul.f32 %v312, 1.442695
  %v315 = vpow.pop %v314
  %v316 = vmul.f32 %v313, 1.442695
  %v317 = vpow.pop %v316
  %v318 = vsub.f32 %v315, 1.0
  %v319 = vsub.f32 %v317, 1.0
  %v320 = vsel %vm310, %v302, %v318
  %v321 = vsel %vm311, %v307, %v319
  %v322 = vld [vmem:[%s1 + $0x48] sm:$0xff]
  %v323 = vld [vmem:[%s1 + $0x50] sm:$0xff]
  %v324 = vld [vmem:[%s1 + $0x58] sm:$0xff]
  %v325 = vld [vmem:[%s1 + $0x60] sm:$0xff]
  %v326 = vlaneseq
  %v327 = vshrl.u32 %v326, 7
  %v328 = vsub.s32 3, %v327
  %v329 = vrot.slane %v19, %v328
  %v331 = vsel %vm127, %v320, 0
  %v334 = vsel %vm127, %v321, 0
  %336 = vmatprep.subr.mxu0 0.0
  %337 = vmatpush1.msra.mxu0 %v322
  %338 = vmatprep.subr.mxu0 0.0
  %339 = vmatpush1.msra.mxu0 %v323
  %340 = vmatprep.subr.mxu0 0.0
  %341 = vmatpush1.msra.mxu0 %v324
  %342 = vmatprep.subr.mxu0 0.0
  %343 = vmatpush1.msra.mxu0 %v325
  %344 = vmatprep.subr.mxu0 0.0
  %345 = vmatpush1.msra.mxu0 0.0
  %346 = vmatprep.subr.mxu0 0.0
  %347 = vmatpush1.msra.mxu0 0.0
  %348 = vmatprep.subr.mxu0 0.0
  %349 = vmatpush1.msra.mxu0 0.0
  %350 = vmatprep.subr.mxu0 0.0
  %351 = vmatpush1.msra.mxu0 0.0
  %352 = vmatprep.subr.mxu0 0.0
  %353 = vmatpush1.msra.mxu0 0.0
  %354 = vmatprep.subr.mxu0 0.0
  %355 = vmatpush1.msra.mxu0 0.0
  %356 = vmatprep.subr.mxu0 0.0
  %357 = vmatpush1.msra.mxu0 0.0
  %358 = vmatprep.subr.mxu0 0.0
  %359 = vmatpush1.msra.mxu0 0.0
  %360 = vmatprep.subr.mxu0 0.0
  %361 = vmatpush1.msra.mxu0 0.0
  %362 = vmatprep.subr.mxu0 0.0
  %363 = vmatpush1.msra.mxu0 0.0
  %364 = vmatprep.subr.mxu0 0.0
  %365 = vmatpush1.msra.mxu0 0.0
  %366 = vmatprep.subr.mxu0 0.0
  %367 = vmatpush1.msra.mxu0 0.0
  %368 = vmatprep.subr.mxu0 0.0
  %369 = vmatpush1.msra.mxu0 0.0
  %370 = vmatprep.subr.mxu0 0.0
  %371 = vmatpush1.msra.mxu0 0.0
  %372 = vmatprep.subr.mxu0 0.0
  %373 = vmatpush1.msra.mxu0 0.0
  %374 = vmatprep.subr.mxu0 0.0
  %375 = vmatpush1.msra.mxu0 0.0
  %376 = vmatprep.subr.mxu0 0.0
  %377 = vmatpush1.msra.mxu0 0.0
  %378 = vmatprep.subr.mxu0 0.0
  %379 = vmatpush1.msra.mxu0 0.0
  %380 = vmatprep.subr.mxu0 0.0
  %381 = vmatpush1.msra.mxu0 0.0
  %382 = vmatprep.subr.mxu0 0.0
  %383 = vmatpush1.msra.mxu0 0.0
  %384 = vmatprep.subr.mxu0 0.0
  %385 = vmatpush1.msra.mxu0 0.0
  %386 = vmatprep.subr.mxu0 0.0
  %387 = vmatpush1.msra.mxu0 0.0
  %388 = vmatprep.subr.mxu0 0.0
  %389 = vmatpush1.msra.mxu0 0.0
  %390 = vmatprep.subr.mxu0 0.0
  %391 = vmatpush1.msra.mxu0 0.0
  %392 = vmatprep.subr.mxu0 0.0
  %393 = vmatpush1.msra.mxu0 0.0
  %394 = vmatprep.subr.mxu0 0.0
  %395 = vmatpush1.msra.mxu0 0.0
  %396 = vmatprep.subr.mxu0 0.0
  %397 = vmatpush1.msra.mxu0 0.0
  %398 = vmatprep.subr.mxu0 0.0
  %399 = vmatpush1.msra.mxu0 0.0
  %400 = vmatprep.mubr.f32.mxu0 0.0
  %401 = vmatmul.mubr.f32.gmra.mrb[0].mxu0 %v331
  %v402 = vpop.f32.mrb[0].mxu0
  %v403 = vadd.f32 %v329, %v402
  %v404 = vpop.f32.mrb[0].mxu0
  %405 = vmatprep.mubr.f32.mxu0 0.0
  %406 = vmatmul.mubr.f32.gmra.mrb[0].mxu0 %v334
  %v407 = vpop.f32.mrb[0].mxu0
  %v408 = vadd.f32 %v329, %v407
  %v409 = vpop.f32.mrb[0].mxu0
  %410 = vdwg.mxu0
  %vm411 = vcmp.gt.f32.partialorder %v403, 0.0
  %vm412 = vcmp.gt.f32.partialorder %v408, 0.0
  %v413 = vmin.f32 %v403, 0.0
  %v414 = vmin.f32 %v408, 0.0
  %v415 = vmul.f32 %v413, 1.442695
  %v416 = vpow.pop %v415
  %v417 = vmul.f32 %v414, 1.442695
  %v418 = vpow.pop %v417
  %v419 = vsub.f32 %v416, 1.0
  %v420 = vsub.f32 %v418, 1.0
  %v421 = vsel %vm411, %v403, %v419
  %v422 = vsel %vm412, %v408, %v420
  %v423 = vld [vmem:[%s1 + $0x70] sm:$0xff]
  %v424 = vld [vmem:[%s1 + $0x78] sm:$0xff]
  %v425 = vld [vmem:[%s1 + $0x80] sm:$0xff]
  %v426 = vld [vmem:[%s1 + $0x88] sm:$0xff]
  %v427 = vld [vmem:[%s1 + $0x90] sm:$0x1]
  %v428 = vlaneseq
  %v429 = vshrl.u32 %v428, 7
  %v430 = vsub.s32 0, %v429
  %v431 = vrot.slane %v427, %v430
  %v433 = vsel %vm127, %v421, 0
  %v436 = vsel %vm127, %v422, 0
  %438 = vmatprep.subr.mxu0 0.0
  %439 = vmatpush1.msra.mxu0 %v423
  %440 = vmatprep.subr.mxu0 0.0
  %441 = vmatpush1.msra.mxu0 %v424
  %442 = vmatprep.subr.mxu0 0.0
  %443 = vmatpush1.msra.mxu0 %v425
  %444 = vmatprep.subr.mxu0 0.0
  %445 = vmatpush1.msra.mxu0 %v426
  %446 = vmatprep.subr.mxu0 0.0
  %447 = vmatpush1.msra.mxu0 0.0
  %448 = vmatprep.subr.mxu0 0.0
  %449 = vmatpush1.msra.mxu0 0.0
  %450 = vmatprep.subr.mxu0 0.0
  %451 = vmatpush1.msra.mxu0 0.0
  %452 = vmatprep.subr.mxu0 0.0
  %453 = vmatpush1.msra.mxu0 0.0
  %454 = vmatprep.subr.mxu0 0.0
  %455 = vmatpush1.msra.mxu0 0.0
  %456 = vmatprep.subr.mxu0 0.0
  %457 = vmatpush1.msra.mxu0 0.0
  %458 = vmatprep.subr.mxu0 0.0
  %459 = vmatpush1.msra.mxu0 0.0
  %460 = vmatprep.subr.mxu0 0.0
  %461 = vmatpush1.msra.mxu0 0.0
  %462 = vmatprep.subr.mxu0 0.0
  %463 = vmatpush1.msra.mxu0 0.0
  %464 = vmatprep.subr.mxu0 0.0
  %465 = vmatpush1.msra.mxu0 0.0
  %466 = vmatprep.subr.mxu0 0.0
  %467 = vmatpush1.msra.mxu0 0.0
  %468 = vmatprep.subr.mxu0 0.0
  %469 = vmatpush1.msra.mxu0 0.0
  %470 = vmatprep.subr.mxu0 0.0
  %471 = vmatpush1.msra.mxu0 0.0
  %472 = vmatprep.subr.mxu0 0.0
  %473 = vmatpush1.msra.mxu0 0.0
  %474 = vmatprep.subr.mxu0 0.0
  %475 = vmatpush1.msra.mxu0 0.0
  %476 = vmatprep.subr.mxu0 0.0
  %477 = vmatpush1.msra.mxu0 0.0
  %478 = vmatprep.subr.mxu0 0.0
  %479 = vmatpush1.msra.mxu0 0.0
  %480 = vmatprep.subr.mxu0 0.0
  %481 = vmatpush1.msra.mxu0 0.0
  %482 = vmatprep.subr.mxu0 0.0
  %483 = vmatpush1.msra.mxu0 0.0
  %484 = vmatprep.subr.mxu0 0.0
  %485 = vmatpush1.msra.mxu0 0.0
  %486 = vmatprep.subr.mxu0 0.0
  %487 = vmatpush1.msra.mxu0 0.0
  %488 = vmatprep.subr.mxu0 0.0
  %489 = vmatpush1.msra.mxu0 0.0
  %490 = vmatprep.subr.mxu0 0.0
  %491 = vmatpush1.msra.mxu0 0.0
  %492 = vmatprep.subr.mxu0 0.0
  %493 = vmatpush1.msra.mxu0 0.0
  %494 = vmatprep.subr.mxu0 0.0
  %495 = vmatpush1.msra.mxu0 0.0
  %496 = vmatprep.subr.mxu0 0.0
  %497 = vmatpush1.msra.mxu0 0.0
  %498 = vmatprep.subr.mxu0 0.0
  %499 = vmatpush1.msra.mxu0 0.0
  %500 = vmatprep.subr.mxu0 0.0
  %501 = vmatpush1.msra.mxu0 0.0
  %502 = vmatprep.mubr.f32.mxu0 0.0
  %503 = vmatmul.mubr.f32.gmra.mrb[0].mxu0 %v433
  %v504 = vpop.f32.mrb[0].mxu0
  %v505 = vadd.f32 %v431, %v504
  %v506 = vpop.f32.mrb[0].mxu0
  %507 = vmatprep.mubr.f32.mxu0 0.0
  %508 = vmatmul.mubr.f32.gmra.mrb[0].mxu0 %v436
  %v509 = vpop.f32.mrb[0].mxu0
  %v510 = vadd.f32 %v431, %v509
  %v511 = vpop.f32.mrb[0].mxu0
  %512 = vdwg.mxu0
  %v513 = vld [vmem:[%s1 + $0x98] sm:$0xff]
  %v514 = vld [vmem:[%s1 + $0xa0] sm:$0xff]
  %v515 = vld [vmem:[%s1 + $0xa8] sm:$0xff]
  %v516 = vld [vmem:[%s1 + $0xb0] sm:$0xff]
  %v517 = vld [vmem:[%s1 + $0xb8] sm:$0x1]
  %v518 = vlaneseq
  %v519 = vshrl.u32 %v518, 7
  %v520 = vsub.s32 0, %v519
  %v521 = vrot.slane %v517, %v520
  %522 = vmatprep.subr.mxu0 0.0
  %523 = vmatpush1.msra.mxu0 %v513
  %524 = vmatprep.subr.mxu0 0.0
  %525 = vmatpush1.msra.mxu0 %v514
  %526 = vmatprep.subr.mxu0 0.0
  %527 = vmatpush1.msra.mxu0 %v515
  %528 = vmatprep.subr.mxu0 0.0
  %529 = vmatpush1.msra.mxu0 %v516
  %530 = vmatprep.subr.mxu0 0.0
  %531 = vmatpush1.msra.mxu0 0.0
  %532 = vmatprep.subr.mxu0 0.0
  %533 = vmatpush1.msra.mxu0 0.0
  %534 = vmatprep.subr.mxu0 0.0
  %535 = vmatpush1.msra.mxu0 0.0
  %536 = vmatprep.subr.mxu0 0.0
  %537 = vmatpush1.msra.mxu0 0.0
  %538 = vmatprep.subr.mxu0 0.0
  %539 = vmatpush1.msra.mxu0 0.0
  %540 = vmatprep.subr.mxu0 0.0
  %541 = vmatpush1.msra.mxu0 0.0
  %542 = vmatprep.subr.mxu0 0.0
  %543 = vmatpush1.msra.mxu0 0.0
  %544 = vmatprep.subr.mxu0 0.0
  %545 = vmatpush1.msra.mxu0 0.0
  %546 = vmatprep.subr.mxu0 0.0
  %547 = vmatpush1.msra.mxu0 0.0
  %548 = vmatprep.subr.mxu0 0.0
  %549 = vmatpush1.msra.mxu0 0.0
  %550 = vmatprep.subr.mxu0 0.0
  %551 = vmatpush1.msra.mxu0 0.0
  %552 = vmatprep.subr.mxu0 0.0
  %553 = vmatpush1.msra.mxu0 0.0
  %554 = vmatprep.subr.mxu0 0.0
  %555 = vmatpush1.msra.mxu0 0.0
  %556 = vmatprep.subr.mxu0 0.0
  %557 = vmatpush1.msra.mxu0 0.0
  %558 = vmatprep.subr.mxu0 0.0
  %559 = vmatpush1.msra.mxu0 0.0
  %560 = vmatprep.subr.mxu0 0.0
  %561 = vmatpush1.msra.mxu0 0.0
  %562 = vmatprep.subr.mxu0 0.0
  %563 = vmatpush1.msra.mxu0 0.0
  %564 = vmatprep.subr.mxu0 0.0
  %565 = vmatpush1.msra.mxu0 0.0
  %566 = vmatprep.subr.mxu0 0.0
  %567 = vmatpush1.msra.mxu0 0.0
  %568 = vmatprep.subr.mxu0 0.0
  %569 = vmatpush1.msra.mxu0 0.0
  %570 = vmatprep.subr.mxu0 0.0
  %571 = vmatpush1.msra.mxu0 0.0
  %572 = vmatprep.subr.mxu0 0.0
  %573 = vmatpush1.msra.mxu0 0.0
  %574 = vmatprep.subr.mxu0 0.0
  %575 = vmatpush1.msra.mxu0 0.0
  %576 = vmatprep.subr.mxu0 0.0
  %577 = vmatpush1.msra.mxu0 0.0
  %578 = vmatprep.subr.mxu0 0.0
  %579 = vmatpush1.msra.mxu0 0.0
  %580 = vmatprep.subr.mxu0 0.0
  %581 = vmatpush1.msra.mxu0 0.0
  %582 = vmatprep.subr.mxu0 0.0
  %583 = vmatpush1.msra.mxu0 0.0
  %584 = vmatprep.subr.mxu0 0.0
  %585 = vmatpush1.msra.mxu0 0.0
  %586 = vmatprep.mubr.f32.mxu0 0.0
  %587 = vmatmul.mubr.f32.gmra.mrb[0].mxu0 %v433
  %v588 = vpop.f32.mrb[0].mxu0
  %v589 = vadd.f32 %v521, %v588
  %v590 = vpop.f32.mrb[0].mxu0
  %591 = vmatprep.mubr.f32.mxu0 0.0
  %592 = vmatmul.mubr.f32.gmra.mrb[0].mxu0 %v436
  %v593 = vpop.f32.mrb[0].mxu0
  %v594 = vadd.f32 %v521, %v593
  %v595 = vpop.f32.mrb[0].mxu0
  %596 = vdwg.mxu0
  %v597 = vld [vmem:[%s2 + $0xd8] sm:$0xf]
  %v598 = vld [vmem:[%s2 + $0xe0] sm:$0xf]
  %v599 = vld [vmem:[%s2] sm:$0xff]
  %v600 = vld [vmem:[%s2 + $0x8] sm:$0xff]
  %v601 = vld [vmem:[%s2 + $0x18] sm:$0xff]
  %v602 = vld [vmem:[%s2 + $0x20] sm:$0xff]
  %v603 = vld [vmem:[%s2 + $0x30] sm:$0xff]
  %v604 = vld [vmem:[%s2 + $0x38] sm:$0xff]
  %v605 = vld [vmem:[%s2 + $0x48] sm:$0xff]
  %v606 = vld [vmem:[%s2 + $0x50] sm:$0xff]
  %v607 = vld [vmem:[%s2 + $0x60] sm:$0xff]
  %v608 = vld [vmem:[%s2 + $0x68] sm:$0xff]
  %v609 = vld [vmem:[%s2 + $0x78] sm:$0xff]
  %v610 = vld [vmem:[%s2 + $0x80] sm:$0xff]
  %v611 = vld [vmem:[%s2 + $0x90] sm:$0xff]
  %v612 = vld [vmem:[%s2 + $0x98] sm:$0xff]
  %v613 = vld [vmem:[%s2 + $0xa8] sm:$0xff]
  %v614 = vld [vmem:[%s2 + $0xb0] sm:$0xff]
  %v615 = vlaneseq
  %v616 = vshrl.u32 %v615, 7
  %v617 = vsub.s32 0, %v616
  %v618 = vrot.slane %v597, %v617
  %v619 = vlaneseq
  %v620 = vshrl.u32 %v619, 7
  %v621 = vsub.s32 0, %v620
  %v622 = vrot.slane %v598, %v621
  %vm623 = vcmask 523264
  %v625 = vsel %vm623, %v505, 0
  %v628 = vsel %vm623, %v510, 0
  %630 = vmatprep.subr.mxu0 %v600
  %631 = vmatpush1.msra.mxu0 %v599
  %632 = vmatprep.subr.mxu0 %v602
  %633 = vmatpush1.msra.mxu0 %v601
  %634 = vmatprep.subr.mxu0 %v604
  %635 = vmatpush1.msra.mxu0 %v603
  %636 = vmatprep.subr.mxu0 %v606
  %637 = vmatpush1.msra.mxu0 %v605
  %638 = vmatprep.subr.mxu0 %v608
  %639 = vmatpush1.msra.mxu0 %v607
  %640 = vmatprep.subr.mxu0 %v610
  %641 = vmatpush1.msra.mxu0 %v609
  %642 = vmatprep.subr.mxu0 %v612
  %643 = vmatpush1.msra.mxu0 %v611
  %644 = vmatprep.subr.mxu0 %v614
  %645 = vmatpush1.msra.mxu0 %v613
  %646 = vmatprep.subr.mxu0 0.0
  %647 = vmatpush1.msra.mxu0 0.0
  %648 = vmatprep.subr.mxu0 0.0
  %649 = vmatpush1.msra.mxu0 0.0
  %650 = vmatprep.subr.mxu0 0.0
  %651 = vmatpush1.msra.mxu0 0.0
  %652 = vmatprep.subr.mxu0 0.0
  %653 = vmatpush1.msra.mxu0 0.0
  %654 = vmatprep.subr.mxu0 0.0
  %655 = vmatpush1.msra.mxu0 0.0
  %656 = vmatprep.subr.mxu0 0.0
  %657 = vmatpush1.msra.mxu0 0.0
  %658 = vmatprep.subr.mxu0 0.0
  %659 = vmatpush1.msra.mxu0 0.0
  %660 = vmatprep.subr.mxu0 0.0
  %661 = vmatpush1.msra.mxu0 0.0
  %662 = vmatprep.subr.mxu0 0.0
  %663 = vmatpush1.msra.mxu0 0.0
  %664 = vmatprep.subr.mxu0 0.0
  %665 = vmatpush1.msra.mxu0 0.0
  %666 = vmatprep.subr.mxu0 0.0
  %667 = vmatpush1.msra.mxu0 0.0
  %668 = vmatprep.subr.mxu0 0.0
  %669 = vmatpush1.msra.mxu0 0.0
  %670 = vmatprep.subr.mxu0 0.0
  %671 = vmatpush1.msra.mxu0 0.0
  %672 = vmatprep.subr.mxu0 0.0
  %673 = vmatpush1.msra.mxu0 0.0
  %674 = vmatprep.subr.mxu0 0.0
  %675 = vmatpush1.msra.mxu0 0.0
  %676 = vmatprep.subr.mxu0 0.0
  %677 = vmatpush1.msra.mxu0 0.0
  %678 = vmatprep.subr.mxu0 0.0
  %679 = vmatpush1.msra.mxu0 0.0
  %680 = vmatprep.subr.mxu0 0.0
  %681 = vmatpush1.msra.mxu0 0.0
  %682 = vmatprep.subr.mxu0 0.0
  %683 = vmatpush1.msra.mxu0 0.0
  %684 = vmatprep.subr.mxu0 0.0
  %685 = vmatpush1.msra.mxu0 0.0
  %686 = vmatprep.subr.mxu0 0.0
  %687 = vmatpush1.msra.mxu0 0.0
  %688 = vmatprep.subr.mxu0 0.0
  %689 = vmatpush1.msra.mxu0 0.0
  %690 = vmatprep.subr.mxu0 0.0
  %691 = vmatpush1.msra.mxu0 0.0
  %692 = vmatprep.subr.mxu0 0.0
  %693 = vmatpush1.msra.mxu0 0.0
  %694 = vmatprep.mubr.f32.mxu0 0.0
  %695 = vmatmul.mubr.f32.gmra.mrb[0].mxu0 %v625
  %v696 = vpop.f32.mrb[0].mxu0
  %v697 = vadd.f32 %v618, %v696
  %v698 = vpop.f32.mrb[0].mxu0
  %v699 = vadd.f32 %v622, %v698
  %700 = vmatprep.mubr.f32.mxu0 0.0
  %701 = vmatmul.mubr.f32.gmra.mrb[0].mxu0 %v628
  %v702 = vpop.f32.mrb[0].mxu0
  %v703 = vadd.f32 %v618, %v702
  %v704 = vpop.f32.mrb[0].mxu0
  %v705 = vadd.f32 %v622, %v704
  %706 = vdwg.mxu0
  %v707 = vld [vmem:[%s2 + $0xc0] sm:$0xff]
  %v708 = vld [vmem:[%s2 + $0xc8] sm:$0xff]
  %709 = vmatprep.subr.mxu0 %v708
  %710 = vmatpush1.msra.mxu0 %v707
  %711 = vmatprep.subr.mxu0 0.0
  %712 = vmatpush1.msra.mxu0 0.0
  %713 = vmatprep.subr.mxu0 0.0
  %714 = vmatpush1.msra.mxu0 0.0
  %715 = vmatprep.subr.mxu0 0.0
  %716 = vmatpush1.msra.mxu0 0.0
  %717 = vmatprep.subr.mxu0 0.0
  %718 = vmatpush1.msra.mxu0 0.0
  %719 = vmatprep.subr.mxu0 0.0
  %720 = vmatpush1.msra.mxu0 0.0
  %721 = vmatprep.subr.mxu0 0.0
  %722 = vmatpush1.msra.mxu0 0.0
  %723 = vmatprep.subr.mxu0 0.0
  %724 = vmatpush1.msra.mxu0 0.0
  %725 = vmatprep.subr.mxu0 0.0
  %726 = vmatpush1.msra.mxu0 0.0
  %727 = vmatprep.subr.mxu0 0.0
  %728 = vmatpush1.msra.mxu0 0.0
  %729 = vmatprep.subr.mxu0 0.0
  %730 = vmatpush1.msra.mxu0 0.0
  %731 = vmatprep.subr.mxu0 0.0
  %732 = vmatpush1.msra.mxu0 0.0
  %733 = vmatprep.subr.mxu0 0.0
  %734 = vmatpush1.msra.mxu0 0.0
  %735 = vmatprep.subr.mxu0 0.0
  %736 = vmatpush1.msra.mxu0 0.0
  %737 = vmatprep.subr.mxu0 0.0
  %738 = vmatpush1.msra.mxu0 0.0
  %739 = vmatprep.subr.mxu0 0.0
  %740 = vmatpush1.msra.mxu0 0.0
  %741 = vmatprep.subr.mxu0 0.0
  %742 = vmatpush1.msra.mxu0 0.0
  %743 = vmatprep.subr.mxu0 0.0
  %744 = vmatpush1.msra.mxu0 0.0
  %745 = vmatprep.subr.mxu0 0.0
  %746 = vmatpush1.msra.mxu0 0.0
  %747 = vmatprep.subr.mxu0 0.0
  %748 = vmatpush1.msra.mxu0 0.0
  %749 = vmatprep.subr.mxu0 0.0
  %750 = vmatpush1.msra.mxu0 0.0
  %751 = vmatprep.subr.mxu0 0.0
  %752 = vmatpush1.msra.mxu0 0.0
  %753 = vmatprep.subr.mxu0 0.0
  %754 = vmatpush1.msra.mxu0 0.0
  %755 = vmatprep.subr.mxu0 0.0
  %756 = vmatpush1.msra.mxu0 0.0
  %757 = vmatprep.subr.mxu0 0.0
  %758 = vmatpush1.msra.mxu0 0.0
  %759 = vmatprep.subr.mxu0 0.0
  %760 = vmatpush1.msra.mxu0 0.0
  %761 = vmatprep.subr.mxu0 0.0
  %762 = vmatpush1.msra.mxu0 0.0
  %763 = vmatprep.subr.mxu0 0.0
  %764 = vmatpush1.msra.mxu0 0.0
  %765 = vmatprep.subr.mxu0 0.0
  %766 = vmatpush1.msra.mxu0 0.0
  %767 = vmatprep.subr.mxu0 0.0
  %768 = vmatpush1.msra.mxu0 0.0
  %769 = vmatprep.subr.mxu0 0.0
  %770 = vmatpush1.msra.mxu0 0.0
  %771 = vmatprep.subr.mxu0 0.0
  %772 = vmatpush1.msra.mxu0 0.0
  %773 = vmatprep.mubr.f32.mxu0 0.0
  %774 = vmatmul.mubr.f32.gmra.mrb[0].mxu0 %v27
  %v775 = vpop.f32.mrb[0].mxu0
  %v776 = vadd.f32 0.0, %v775
  %v777 = vpop.f32.mrb[0].mxu0
  %v778 = vadd.f32 0.0, %v777
  %779 = vmatprep.mubr.f32.mxu0 0.0
  %780 = vmatmul.mubr.f32.gmra.mrb[0].mxu0 %v30
  %v781 = vpop.f32.mrb[0].mxu0
  %v782 = vadd.f32 0.0, %v781
  %v783 = vpop.f32.mrb[0].mxu0
  %v784 = vadd.f32 0.0, %v783
  %785 = vdwg.mxu0
  %v786 = vld [vmem:[%s1 + $0xc0] sm:$0xff]
  %v787 = vld [vmem:[%s1 + $0xc8] sm:$0xff]
  %v788 = vld [vmem:[%s1 + $0xd0] sm:$0xff]
  %v789 = vld [vmem:[%s1 + $0xd8] sm:$0xff]
  %v790 = vld [vmem:[%s1 + $0xe0] sm:$0xff]
  %v791 = vld [vmem:[%s1 + $0xe8] sm:$0xff]
  %v792 = vld [vmem:[%s1 + $0xf0] sm:$0xff]
  %v793 = vld [vmem:[%s1 + $0xf8] sm:$0xff]
  %v794 = vld [vmem:[%s1 + $0x100] sm:$0xff]
  %v795 = vld [vmem:[%s1 + $0x108] sm:$0xff]
  %v796 = vld [vmem:[%s1 + $0x110] sm:$0xff]
  %v797 = vld [vmem:[%s1 + $0x118] sm:$0xff]
  %v798 = vld [vmem:[%s1 + $0x120] sm:$0xff]
  %v799 = vld [vmem:[%s1 + $0x128] sm:$0xff]
  %v800 = vld [vmem:[%s1 + $0x130] sm:$0xff]
  %v801 = vld [vmem:[%s1 + $0x138] sm:$0xff]
  %v802 = vld [vmem:[%s1 + $0x140] sm:$0xff]
  %v803 = vld [vmem:[%s1 + $0x148] sm:$0xff]
  %v804 = vld [vmem:[%s1 + $0x150] sm:$0xff]
  %v805 = vld [vmem:[%s1 + $0x158] sm:$0xff]
  %v806 = vld [vmem:[%s1 + $0x160] sm:$0xff]
  %v807 = vld [vmem:[%s1 + $0x168] sm:$0xff]
  %v808 = vld [vmem:[%s1 + $0x170] sm:$0xff]
  %v809 = vld [vmem:[%s1 + $0x178] sm:$0xff]
  %v810 = vld [vmem:[%s1 + $0x180] sm:$0xff]
  %v811 = vld [vmem:[%s1 + $0x188] sm:$0xff]
  %v812 = vld [vmem:[%s1 + $0x190] sm:$0xff]
  %v813 = vld [vmem:[%s1 + $0x198] sm:$0xff]
  %v814 = vld [vmem:[%s1 + $0x1a0] sm:$0xff]
  %v815 = vld [vmem:[%s1 + $0x1a8] sm:$0xff]
  %v816 = vld [vmem:[%s1 + $0x1b0] sm:$0xff]
  %v817 = vld [vmem:[%s1 + $0x1b8] sm:$0xff]
  %v818 = vld [vmem:[%s1 + $0x1c0] sm:$0xff]
  %v819 = vld [vmem:[%s1 + $0x1c8] sm:$0xff]
  %v821 = vsel %vm127, %v786, 0
  %v824 = vsel %vm127, %v787, 0
  %v827 = vsel %vm127, %v788, 0
  %v830 = vsel %vm127, %v789, 0
  %v833 = vsel %vm127, %v790, 0
  %v836 = vsel %vm127, %v791, 0
  %v839 = vsel %vm127, %v792, 0
  %v842 = vsel %vm127, %v793, 0
  %v845 = vsel %vm127, %v794, 0
  %v848 = vsel %vm127, %v795, 0
  %v851 = vsel %vm127, %v796, 0
  %v854 = vsel %vm127, %v797, 0
  %v857 = vsel %vm127, %v798, 0
  %v860 = vsel %vm127, %v799, 0
  %v863 = vsel %vm127, %v800, 0
  %v866 = vsel %vm127, %v801, 0
  %v869 = vsel %vm127, %v802, 0
  %v872 = vsel %vm127, %v803, 0
  %v875 = vsel %vm127, %v804, 0
  %v878 = vsel %vm127, %v805, 0
  %v881 = vsel %vm127, %v806, 0
  %v884 = vsel %vm127, %v807, 0
  %v887 = vsel %vm127, %v808, 0
  %v890 = vsel %vm127, %v809, 0
  %v893 = vsel %vm127, %v810, 0
  %v896 = vsel %vm127, %v811, 0
  %v899 = vsel %vm127, %v812, 0
  %v902 = vsel %vm127, %v813, 0
  %v905 = vsel %vm127, %v814, 0
  %v908 = vsel %vm127, %v815, 0
  %v911 = vsel %vm127, %v816, 0
  %v914 = vsel %vm127, %v817, 0
  %v917 = vsel %vm127, %v818, 0
  %v920 = vsel %vm127, %v819, 0
  %922 = vmatprep.subr.mxu0 %v699
  %923 = vmatpush1.msra.mxu0 %v697
  %924 = vmatprep.subr.mxu0 %v705
  %925 = vmatpush1.msra.mxu0 %v703
  %926 = vmatprep.subr.mxu0 %v778
  %927 = vmatpush1.msra.mxu0 %v776
  %928 = vmatprep.subr.mxu0 %v784
  %929 = vmatpush1.msra.mxu0 %v782
  %930 = vmatprep.subr.mxu0 0.0
  %931 = vmatpush1.msra.mxu0 0.0
  %932 = vmatprep.subr.mxu0 0.0
  %933 = vmatpush1.msra.mxu0 0.0
  %934 = vmatprep.subr.mxu0 0.0
  %935 = vmatpush1.msra.mxu0 0.0
  %936 = vmatprep.subr.mxu0 0.0
  %937 = vmatpush1.msra.mxu0 0.0
  %938 = vmatprep.subr.mxu0 0.0
  %939 = vmatpush1.msra.mxu0 0.0
  %940 = vmatprep.subr.mxu0 0.0
  %941 = vmatpush1.msra.mxu0 0.0
  %942 = vmatprep.subr.mxu0 0.0
  %943 = vmatpush1.msra.mxu0 0.0
  %944 = vmatprep.subr.mxu0 0.0
  %945 = vmatpush1.msra.mxu0 0.0
  %946 = vmatprep.subr.mxu0 0.0
  %947 = vmatpush1.msra.mxu0 0.0
  %948 = vmatprep.subr.mxu0 0.0
  %949 = vmatpush1.msra.mxu0 0.0
  %950 = vmatprep.subr.mxu0 0.0
  %951 = vmatpush1.msra.mxu0 0.0
  %952 = vmatprep.subr.mxu0 0.0
  %953 = vmatpush1.msra.mxu0 0.0
  %954 = vmatprep.subr.mxu0 0.0
  %955 = vmatpush1.msra.mxu0 0.0
  %956 = vmatprep.subr.mxu0 0.0
  %957 = vmatpush1.msra.mxu0 0.0
  %958 = vmatprep.subr.mxu0 0.0
  %959 = vmatpush1.msra.mxu0 0.0
  %960 = vmatprep.subr.mxu0 0.0
  %961 = vmatpush1.msra.mxu0 0.0
  %962 = vmatprep.subr.mxu0 0.0
  %963 = vmatpush1.msra.mxu0 0.0
  %964 = vmatprep.subr.mxu0 0.0
  %965 = vmatpush1.msra.mxu0 0.0
  %966 = vmatprep.subr.mxu0 0.0
  %967 = vmatpush1.msra.mxu0 0.0
  %968 = vmatprep.subr.mxu0 0.0
  %969 = vmatpush1.msra.mxu0 0.0
  %970 = vmatprep.subr.mxu0 0.0
  %971 = vmatpush1.msra.mxu0 0.0
  %972 = vmatprep.subr.mxu0 0.0
  %973 = vmatpush1.msra.mxu0 0.0
  %974 = vmatprep.subr.mxu0 0.0
  %975 = vmatpush1.msra.mxu0 0.0
  %976 = vmatprep.subr.mxu0 0.0
  %977 = vmatpush1.msra.mxu0 0.0
  %978 = vmatprep.subr.mxu0 0.0
  %979 = vmatpush1.msra.mxu0 0.0
  %980 = vmatprep.subr.mxu0 0.0
  %981 = vmatpush1.msra.mxu0 0.0
  %982 = vmatprep.subr.mxu0 0.0
  %983 = vmatpush1.msra.mxu0 0.0
  %984 = vmatprep.subr.mxu0 0.0
  %985 = vmatpush1.msra.mxu0 0.0
  %986 = vmatprep.mubr.f32.mxu0 0.0
  %987 = vmatmul.mubr.f32.gmra.mrb[0].mxu0 %v821
  %v988 = vpop.f32.mrb[0].mxu0
  %v989 = vadd.f32 0.0, %v988
  %v990 = vpop.f32.mrb[0].mxu0
  %v991 = vadd.f32 0.0, %v990
  %992 = vmatprep.mubr.f32.mxu0 0.0
  %993 = vmatmul.mubr.f32.gmra.mrb[0].mxu0 %v824
  %v994 = vpop.f32.mrb[0].mxu0
  %v995 = vadd.f32 0.0, %v994
  %v996 = vpop.f32.mrb[0].mxu0
  %v997 = vadd.f32 0.0, %v996
  %998 = vmatprep.mubr.f32.mxu0 0.0
  %999 = vmatmul.mubr.f32.gmra.mrb[0].mxu0 %v827
  %v1000 = vpop.f32.mrb[0].mxu0
  %v1001 = vadd.f32 0.0, %v1000
  %v1002 = vpop.f32.mrb[0].mxu0
  %v1003 = vadd.f32 0.0, %v1002
  %1004 = vmatprep.mubr.f32.mxu0 0.0
  %1005 = vmatmul.mubr.f32.gmra.mrb[0].mxu0 %v830
  %v1006 = vpop.f32.mrb[0].mxu0
  %v1007 = vadd.f32 0.0, %v1006
  %v1008 = vpop.f32.mrb[0].mxu0
  %v1009 = vadd.f32 0.0, %v1008
  %1010 = vmatprep.mubr.f32.mxu0 0.0
  %1011 = vmatmul.mubr.f32.gmra.mrb[0].mxu0 %v833
  %v1012 = vpop.f32.mrb[0].mxu0
  %v1013 = vadd.f32 0.0, %v1012
  %v1014 = vpop.f32.mrb[0].mxu0
  %v1015 = vadd.f32 0.0, %v1014
  %1016 = vmatprep.mubr.f32.mxu0 0.0
  %1017 = vmatmul.mubr.f32.gmra.mrb[0].mxu0 %v836
  %v1018 = vpop.f32.mrb[0].mxu0
  %v1019 = vadd.f32 0.0, %v1018
  %v1020 = vpop.f32.mrb[0].mxu0
  %v1021 = vadd.f32 0.0, %v1020
  %1022 = vmatprep.mubr.f32.mxu0 0.0
  %1023 = vmatmul.mubr.f32.gmra.mrb[0].mxu0 %v839
  %v1024 = vpop.f32.mrb[0].mxu0
  %v1025 = vadd.f32 0.0, %v1024
  %v1026 = vpop.f32.mrb[0].mxu0
  %v1027 = vadd.f32 0.0, %v1026
  %1028 = vmatprep.mubr.f32.mxu0 0.0
  %1029 = vmatmul.mubr.f32.gmra.mrb[0].mxu0 %v842
  %v1030 = vpop.f32.mrb[0].mxu0
  %v1031 = vadd.f32 0.0, %v1030
  %v1032 = vpop.f32.mrb[0].mxu0
  %v1033 = vadd.f32 0.0, %v1032
  %1034 = vmatprep.mubr.f32.mxu0 0.0
  %1035 = vmatmul.mubr.f32.gmra.mrb[0].mxu0 %v845
  %v1036 = vpop.f32.mrb[0].mxu0
  %v1037 = vadd.f32 0.0, %v1036
  %v1038 = vpop.f32.mrb[0].mxu0
  %v1039 = vadd.f32 0.0, %v1038
  %1040 = vmatprep.mubr.f32.mxu0 0.0
  %1041 = vmatmul.mubr.f32.gmra.mrb[0].mxu0 %v848
  %v1042 = vpop.f32.mrb[0].mxu0
  %v1043 = vadd.f32 0.0, %v1042
  %v1044 = vpop.f32.mrb[0].mxu0
  %v1045 = vadd.f32 0.0, %v1044
  %1046 = vmatprep.mubr.f32.mxu0 0.0
  %1047 = vmatmul.mubr.f32.gmra.mrb[0].mxu0 %v851
  %v1048 = vpop.f32.mrb[0].mxu0
  %v1049 = vadd.f32 0.0, %v1048
  %v1050 = vpop.f32.mrb[0].mxu0
  %v1051 = vadd.f32 0.0, %v1050
  %1052 = vmatprep.mubr.f32.mxu0 0.0
  %1053 = vmatmul.mubr.f32.gmra.mrb[0].mxu0 %v854
  %v1054 = vpop.f32.mrb[0].mxu0
  %v1055 = vadd.f32 0.0, %v1054
  %v1056 = vpop.f32.mrb[0].mxu0
  %v1057 = vadd.f32 0.0, %v1056
  %1058 = vmatprep.mubr.f32.mxu0 0.0
  %1059 = vmatmul.mubr.f32.gmra.mrb[0].mxu0 %v857
  %v1060 = vpop.f32.mrb[0].mxu0
  %v1061 = vadd.f32 0.0, %v1060
  %v1062 = vpop.f32.mrb[0].mxu0
  %v1063 = vadd.f32 0.0, %v1062
  %1064 = vmatprep.mubr.f32.mxu0 0.0
  %1065 = vmatmul.mubr.f32.gmra.mrb[0].mxu0 %v860
  %v1066 = vpop.f32.mrb[0].mxu0
  %v1067 = vadd.f32 0.0, %v1066
  %v1068 = vpop.f32.mrb[0].mxu0
  %v1069 = vadd.f32 0.0, %v1068
  %1070 = vmatprep.mubr.f32.mxu0 0.0
  %1071 = vmatmul.mubr.f32.gmra.mrb[0].mxu0 %v863
  %v1072 = vpop.f32.mrb[0].mxu0
  %v1073 = vadd.f32 0.0, %v1072
  %v1074 = vpop.f32.mrb[0].mxu0
  %v1075 = vadd.f32 0.0, %v1074
  %1076 = vmatprep.mubr.f32.mxu0 0.0
  %1077 = vmatmul.mubr.f32.gmra.mrb[0].mxu0 %v866
  %v1078 = vpop.f32.mrb[0].mxu0
  %v1079 = vadd.f32 0.0, %v1078
  %v1080 = vpop.f32.mrb[0].mxu0
  %v1081 = vadd.f32 0.0, %v1080
  %1082 = vmatprep.mubr.f32.mxu0 0.0
  %1083 = vmatmul.mubr.f32.gmra.mrb[0].mxu0 %v869
  %v1084 = vpop.f32.mrb[0].mxu0
  %v1085 = vadd.f32 0.0, %v1084
  %v1086 = vpop.f32.mrb[0].mxu0
  %v1087 = vadd.f32 0.0, %v1086
  %1088 = vmatprep.mubr.f32.mxu0 0.0
  %1089 = vmatmul.mubr.f32.gmra.mrb[0].mxu0 %v872
  %v1090 = vpop.f32.mrb[0].mxu0
  %v1091 = vadd.f32 0.0, %v1090
  %v1092 = vpop.f32.mrb[0].mxu0
  %v1093 = vadd.f32 0.0, %v1092
  %1094 = vmatprep.mubr.f32.mxu0 0.0
  %1095 = vmatmul.mubr.f32.gmra.mrb[0].mxu0 %v875
  %v1096 = vpop.f32.mrb[0].mxu0
  %v1097 = vadd.f32 0.0, %v1096
  %v1098 = vpop.f32.mrb[0].mxu0
  %v1099 = vadd.f32 0.0, %v1098
  %1100 = vmatprep.mubr.f32.mxu0 0.0
  %1101 = vmatmul.mubr.f32.gmra.mrb[0].mxu0 %v878
  %v1102 = vpop.f32.mrb[0].mxu0
  %v1103 = vadd.f32 0.0, %v1102
  %v1104 = vpop.f32.mrb[0].mxu0
  %v1105 = vadd.f32 0.0, %v1104
  %1106 = vmatprep.mubr.f32.mxu0 0.0
  %1107 = vmatmul.mubr.f32.gmra.mrb[0].mxu0 %v881
  %v1108 = vpop.f32.mrb[0].mxu0
  %v1109 = vadd.f32 0.0, %v1108
  %v1110 = vpop.f32.mrb[0].mxu0
  %v1111 = vadd.f32 0.0, %v1110
  %1112 = vmatprep.mubr.f32.mxu0 0.0
  %1113 = vmatmul.mubr.f32.gmra.mrb[0].mxu0 %v884
  %v1114 = vpop.f32.mrb[0].mxu0
  %v1115 = vadd.f32 0.0, %v1114
  %v1116 = vpop.f32.mrb[0].mxu0
  %v1117 = vadd.f32 0.0, %v1116
  %1118 = vmatprep.mubr.f32.mxu0 0.0
  %1119 = vmatmul.mubr.f32.gmra.mrb[0].mxu0 %v887
  %v1120 = vpop.f32.mrb[0].mxu0
  %v1121 = vadd.f32 0.0, %v1120
  %v1122 = vpop.f32.mrb[0].mxu0
  %v1123 = vadd.f32 0.0, %v1122
  %1124 = vmatprep.mubr.f32.mxu0 0.0
  %1125 = vmatmul.mubr.f32.gmra.mrb[0].mxu0 %v890
  %v1126 = vpop.f32.mrb[0].mxu0
  %v1127 = vadd.f32 0.0, %v1126
  %v1128 = vpop.f32.mrb[0].mxu0
  %v1129 = vadd.f32 0.0, %v1128
  %1130 = vmatprep.mubr.f32.mxu0 0.0
  %1131 = vmatmul.mubr.f32.gmra.mrb[0].mxu0 %v893
  %v1132 = vpop.f32.mrb[0].mxu0
  %v1133 = vadd.f32 0.0, %v1132
  %v1134 = vpop.f32.mrb[0].mxu0
  %v1135 = vadd.f32 0.0, %v1134
  %1136 = vmatprep.mubr.f32.mxu0 0.0
  %1137 = vmatmul.mubr.f32.gmra.mrb[0].mxu0 %v896
  %v1138 = vpop.f32.mrb[0].mxu0
  %v1139 = vadd.f32 0.0, %v1138
  %v1140 = vpop.f32.mrb[0].mxu0
  %v1141 = vadd.f32 0.0, %v1140
  %1142 = vmatprep.mubr.f32.mxu0 0.0
  %1143 = vmatmul.mubr.f32.gmra.mrb[0].mxu0 %v899
  %v1144 = vpop.f32.mrb[0].mxu0
  %v1145 = vadd.f32 0.0, %v1144
  %v1146 = vpop.f32.mrb[0].mxu0
  %v1147 = vadd.f32 0.0, %v1146
  %1148 = vmatprep.mubr.f32.mxu0 0.0
  %1149 = vmatmul.mubr.f32.gmra.mrb[0].mxu0 %v902
  %v1150 = vpop.f32.mrb[0].mxu0
  %v1151 = vadd.f32 0.0, %v1150
  %v1152 = vpop.f32.mrb[0].mxu0
  %v1153 = vadd.f32 0.0, %v1152
  %1154 = vmatprep.mubr.f32.mxu0 0.0
  %1155 = vmatmul.mubr.f32.gmra.mrb[0].mxu0 %v905
  %v1156 = vpop.f32.mrb[0].mxu0
  %v1157 = vadd.f32 0.0, %v1156
  %v1158 = vpop.f32.mrb[0].mxu0
  %v1159 = vadd.f32 0.0, %v1158
  %1160 = vmatprep.mubr.f32.mxu0 0.0
  %1161 = vmatmul.mubr.f32.gmra.mrb[0].mxu0 %v908
  %v1162 = vpop.f32.mrb[0].mxu0
  %v1163 = vadd.f32 0.0, %v1162
  %v1164 = vpop.f32.mrb[0].mxu0
  %v1165 = vadd.f32 0.0, %v1164
  %1166 = vmatprep.mubr.f32.mxu0 0.0
  %1167 = vmatmul.mubr.f32.gmra.mrb[0].mxu0 %v911
  %v1168 = vpop.f32.mrb[0].mxu0
  %v1169 = vadd.f32 0.0, %v1168
  %v1170 = vpop.f32.mrb[0].mxu0
  %v1171 = vadd.f32 0.0, %v1170
  %1172 = vmatprep.mubr.f32.mxu0 0.0
  %1173 = vmatmul.mubr.f32.gmra.mrb[0].mxu0 %v914
  %v1174 = vpop.f32.mrb[0].mxu0
  %v1175 = vadd.f32 0.0, %v1174
  %v1176 = vpop.f32.mrb[0].mxu0
  %v1177 = vadd.f32 0.0, %v1176
  %1178 = vmatprep.mubr.f32.mxu0 0.0
  %1179 = vmatmul.mubr.f32.gmra.mrb[0].mxu0 %v917
  %v1180 = vpop.f32.mrb[0].mxu0
  %v1181 = vadd.f32 0.0, %v1180
  %v1182 = vpop.f32.mrb[0].mxu0
  %v1183 = vadd.f32 0.0, %v1182
  %1184 = vmatprep.mubr.f32.mxu0 0.0
  %1185 = vmatmul.mubr.f32.gmra.mrb[0].mxu0 %v920
  %v1186 = vpop.f32.mrb[0].mxu0
  %v1187 = vadd.f32 0.0, %v1186
  %v1188 = vpop.f32.mrb[0].mxu0
  %v1189 = vadd.f32 0.0, %v1188
  %1190 = vdwg.mxu0
  %vm1191 = vcmp.gt.f32.partialorder %v989, 0.0
  %vm1192 = vcmp.gt.f32.partialorder %v991, 0.0
  %vm1193 = vcmp.gt.f32.partialorder %v995, 0.0
  %vm1194 = vcmp.gt.f32.partialorder %v997, 0.0
  %vm1195 = vcmp.gt.f32.partialorder %v1001, 0.0
  %vm1196 = vcmp.gt.f32.partialorder %v1003, 0.0
  %vm1197 = vcmp.gt.f32.partialorder %v1007, 0.0
  %vm1198 = vcmp.gt.f32.partialorder %v1009, 0.0
  %vm1199 = vcmp.gt.f32.partialorder %v1013, 0.0
  %vm1200 = vcmp.gt.f32.partialorder %v1015, 0.0
  %vm1201 = vcmp.gt.f32.partialorder %v1019, 0.0
  %vm1202 = vcmp.gt.f32.partialorder %v1021, 0.0
  %vm1203 = vcmp.gt.f32.partialorder %v1025, 0.0
  %vm1204 = vcmp.gt.f32.partialorder %v1027, 0.0
  %vm1205 = vcmp.gt.f32.partialorder %v1031, 0.0
  %vm1206 = vcmp.gt.f32.partialorder %v1033, 0.0
  %vm1207 = vcmp.gt.f32.partialorder %v1037, 0.0
  %vm1208 = vcmp.gt.f32.partialorder %v1039, 0.0
  %vm1209 = vcmp.gt.f32.partialorder %v1043, 0.0
  %vm1210 = vcmp.gt.f32.partialorder %v1045, 0.0
  %vm1211 = vcmp.gt.f32.partialorder %v1049, 0.0
  %vm1212 = vcmp.gt.f32.partialorder %v1051, 0.0
  %vm1213 = vcmp.gt.f32.partialorder %v1055, 0.0
  %vm1214 = vcmp.gt.f32.partialorder %v1057, 0.0
  %vm1215 = vcmp.gt.f32.partialorder %v1061, 0.0
  %vm1216 = vcmp.gt.f32.partialorder %v1063, 0.0
  %vm1217 = vcmp.gt.f32.partialorder %v1067, 0.0
  %vm1218 = vcmp.gt.f32.partialorder %v1069, 0.0
  %vm1219 = vcmp.gt.f32.partialorder %v1073, 0.0
  %vm1220 = vcmp.gt.f32.partialorder %v1075, 0.0
  %vm1221 = vcmp.gt.f32.partialorder %v1079, 0.0
  %vm1222 = vcmp.gt.f32.partialorder %v1081, 0.0
  %vm1223 = vcmp.gt.f32.partialorder %v1085, 0.0
  %vm1224 = vcmp.gt.f32.partialorder %v1087, 0.0
  %vm1225 = vcmp.gt.f32.partialorder %v1091, 0.0
  %vm1226 = vcmp.gt.f32.partialorder %v1093, 0.0
  %vm1227 = vcmp.gt.f32.partialorder %v1097, 0.0
  %vm1228 = vcmp.gt.f32.partialorder %v1099, 0.0
  %vm1229 = vcmp.gt.f32.partialorder %v1103, 0.0
  %vm1230 = vcmp.gt.f32.partialorder %v1105, 0.0
  %vm1231 = vcmp.gt.f32.partialorder %v1109, 0.0
  %vm1232 = vcmp.gt.f32.partialorder %v1111, 0.0
  %vm1233 = vcmp.gt.f32.partialorder %v1115, 0.0
  %vm1234 = vcmp.gt.f32.partialorder %v1117, 0.0
  %vm1235 = vcmp.gt.f32.partialorder %v1121, 0.0
  %vm1236 = vcmp.gt.f32.partialorder %v1123, 0.0
  %vm1237 = vcmp.gt.f32.partialorder %v1127, 0.0
  %vm1238 = vcmp.gt.f32.partialorder %v1129, 0.0
  %vm1239 = vcmp.gt.f32.partialorder %v1133, 0.0
  %vm1240 = vcmp.gt.f32.partialorder %v1135, 0.0
  %vm1241 = vcmp.gt.f32.partialorder %v1139, 0.0
  %vm1242 = vcmp.gt.f32.partialorder %v1141, 0.0
  %vm1243 = vcmp.gt.f32.partialorder %v1145, 0.0
  %vm1244 = vcmp.gt.f32.partialorder %v1147, 0.0
  %vm1245 = vcmp.gt.f32.partialorder %v1151, 0.0
  %vm1246 = vcmp.gt.f32.partialorder %v1153, 0.0
  %vm1247 = vcmp.gt.f32.partialorder %v1157, 0.0
  %vm1248 = vcmp.gt.f32.partialorder %v1159, 0.0
  %vm1249 = vcmp.gt.f32.partialorder %v1163, 0.0
  %vm1250 = vcmp.gt.f32.partialorder %v1165, 0.0
  %vm1251 = vcmp.gt.f32.partialorder %v1169, 0.0
  %vm1252 = vcmp.gt.f32.partialorder %v1171, 0.0
  %vm1253 = vcmp.gt.f32.partialorder %v1175, 0.0
  %vm1254 = vcmp.gt.f32.partialorder %v1177, 0.0
  %vm1255 = vcmp.gt.f32.partialorder %v1181, 0.0
  %vm1256 = vcmp.gt.f32.partialorder %v1183, 0.0
  %vm1257 = vcmp.gt.f32.partialorder %v1187, 0.0
  %vm1258 = vcmp.gt.f32.partialorder %v1189, 0.0
  %v1259 = vmin.f32 %v989, 0.0
  %v1260 = vmin.f32 %v991, 0.0
  %v1261 = vmin.f32 %v995, 0.0
  %v1262 = vmin.f32 %v997, 0.0
  %v1263 = vmin.f32 %v1001, 0.0
  %v1264 = vmin.f32 %v1003, 0.0
  %v1265 = vmin.f32 %v1007, 0.0
  %v1266 = vmin.f32 %v1009, 0.0
  %v1267 = vmin.f32 %v1013, 0.0
  %v1268 = vmin.f32 %v1015, 0.0
  %v1269 = vmin.f32 %v1019, 0.0
  %v1270 = vmin.f32 %v1021, 0.0
  %v1271 = vmin.f32 %v1025, 0.0
  %v1272 = vmin.f32 %v1027, 0.0
  %v1273 = vmin.f32 %v1031, 0.0
  %v1274 = vmin.f32 %v1033, 0.0
  %v1275 = vmin.f32 %v1037, 0.0
  %v1276 = vmin.f32 %v1039, 0.0
  %v1277 = vmin.f32 %v1043, 0.0
  %v1278 = vmin.f32 %v1045, 0.0
  %v1279 = vmin.f32 %v1049, 0.0
  %v1280 = vmin.f32 %v1051, 0.0
  %v1281 = vmin.f32 %v1055, 0.0
  %v1282 = vmin.f32 %v1057, 0.0
  %v1283 = vmin.f32 %v1061, 0.0
  %v1284 = vmin.f32 %v1063, 0.0
  %v1285 = vmin.f32 %v1067, 0.0
  %v1286 = vmin.f32 %v1069, 0.0
  %v1287 = vmin.f32 %v1073, 0.0
  %v1288 = vmin.f32 %v1075, 0.0
  %v1289 = vmin.f32 %v1079, 0.0
  %v1290 = vmin.f32 %v1081, 0.0
  %v1291 = vmin.f32 %v1085, 0.0
  %v1292 = vmin.f32 %v1087, 0.0
  %v1293 = vmin.f32 %v1091, 0.0
  %v1294 = vmin.f32 %v1093, 0.0
  %v1295 = vmin.f32 %v1097, 0.0
  %v1296 = vmin.f32 %v1099, 0.0
  %v1297 = vmin.f32 %v1103, 0.0
  %v1298 = vmin.f32 %v1105, 0.0
  %v1299 = vmin.f32 %v1109, 0.0
  %v1300 = vmin.f32 %v1111, 0.0
  %v1301 = vmin.f32 %v1115, 0.0
  %v1302 = vmin.f32 %v1117, 0.0
  %v1303 = vmin.f32 %v1121, 0.0
  %v1304 = vmin.f32 %v1123, 0.0
  %v1305 = vmin.f32 %v1127, 0.0
  %v1306 = vmin.f32 %v1129, 0.0
  %v1307 = vmin.f32 %v1133, 0.0
  %v1308 = vmin.f32 %v1135, 0.0
  %v1309 = vmin.f32 %v1139, 0.0
  %v1310 = vmin.f32 %v1141, 0.0
  %v1311 = vmin.f32 %v1145, 0.0
  %v1312 = vmin.f32 %v1147, 0.0
  %v1313 = vmin.f32 %v1151, 0.0
  %v1314 = vmin.f32 %v1153, 0.0
  %v1315 = vmin.f32 %v1157, 0.0
  %v1316 = vmin.f32 %v1159, 0.0
  %v1317 = vmin.f32 %v1163, 0.0
  %v1318 = vmin.f32 %v1165, 0.0
  %v1319 = vmin.f32 %v1169, 0.0
  %v1320 = vmin.f32 %v1171, 0.0
  %v1321 = vmin.f32 %v1175, 0.0
  %v1322 = vmin.f32 %v1177, 0.0
  %v1323 = vmin.f32 %v1181, 0.0
  %v1324 = vmin.f32 %v1183, 0.0
  %v1325 = vmin.f32 %v1187, 0.0
  %v1326 = vmin.f32 %v1189, 0.0
  %v1327 = vmul.f32 %v1259, 1.442695
  %v1328 = vpow.pop %v1327
  %v1329 = vmul.f32 %v1260, 1.442695
  %v1330 = vpow.pop %v1329
  %v1331 = vmul.f32 %v1261, 1.442695
  %v1332 = vpow.pop %v1331
  %v1333 = vmul.f32 %v1262, 1.442695
  %v1334 = vpow.pop %v1333
  %v1335 = vmul.f32 %v1263, 1.442695
  %v1336 = vpow.pop %v1335
  %v1337 = vmul.f32 %v1264, 1.442695
  %v1338 = vpow.pop %v1337
  %v1339 = vmul.f32 %v1265, 1.442695
  %v1340 = vpow.pop %v1339
  %v1341 = vmul.f32 %v1266, 1.442695
  %v1342 = vpow.pop %v1341
  %v1343 = vmul.f32 %v1267, 1.442695
  %v1344 = vpow.pop %v1343
  %v1345 = vmul.f32 %v1268, 1.442695
  %v1346 = vpow.pop %v1345
  %v1347 = vmul.f32 %v1269, 1.442695
  %v1348 = vpow.pop %v1347
  %v1349 = vmul.f32 %v1270, 1.442695
  %v1350 = vpow.pop %v1349
  %v1351 = vmul.f32 %v1271, 1.442695
  %v1352 = vpow.pop %v1351
  %v1353 = vmul.f32 %v1272, 1.442695
  %v1354 = vpow.pop %v1353
  %v1355 = vmul.f32 %v1273, 1.442695
  %v1356 = vpow.pop %v1355
  %v1357 = vmul.f32 %v1274, 1.442695
  %v1358 = vpow.pop %v1357
  %v1359 = vmul.f32 %v1275, 1.442695
  %v1360 = vpow.pop %v1359
  %v1361 = vmul.f32 %v1276, 1.442695
  %v1362 = vpow.pop %v1361
  %v1363 = vmul.f32 %v1277, 1.442695
  %v1364 = vpow.pop %v1363
  %v1365 = vmul.f32 %v1278, 1.442695
  %v1366 = vpow.pop %v1365
  %v1367 = vmul.f32 %v1279, 1.442695
  %v1368 = vpow.pop %v1367
  %v1369 = vmul.f32 %v1280, 1.442695
  %v1370 = vpow.pop %v1369
  %v1371 = vmul.f32 %v1281, 1.442695
  %v1372 = vpow.pop %v1371
  %v1373 = vmul.f32 %v1282, 1.442695
  %v1374 = vpow.pop %v1373
  %v1375 = vmul.f32 %v1283, 1.442695
  %v1376 = vpow.pop %v1375
  %v1377 = vmul.f32 %v1284, 1.442695
  %v1378 = vpow.pop %v1377
  %v1379 = vmul.f32 %v1285, 1.442695
  %v1380 = vpow.pop %v1379
  %v1381 = vmul.f32 %v1286, 1.442695
  %v1382 = vpow.pop %v1381
  %v1383 = vmul.f32 %v1287, 1.442695
  %v1384 = vpow.pop %v1383
  %v1385 = vmul.f32 %v1288, 1.442695
  %v1386 = vpow.pop %v1385
  %v1387 = vmul.f32 %v1289, 1.442695
  %v1388 = vpow.pop %v1387
  %v1389 = vmul.f32 %v1290, 1.442695
  %v1390 = vpow.pop %v1389
  %v1391 = vmul.f32 %v1291, 1.442695
  %v1392 = vpow.pop %v1391
  %v1393 = vmul.f32 %v1292, 1.442695
  %v1394 = vpow.pop %v1393
  %v1395 = vmul.f32 %v1293, 1.442695
  %v1396 = vpow.pop %v1395
  %v1397 = vmul.f32 %v1294, 1.442695
  %v1398 = vpow.pop %v1397
  %v1399 = vmul.f32 %v1295, 1.442695
  %v1400 = vpow.pop %v1399
  %v1401 = vmul.f32 %v1296, 1.442695
  %v1402 = vpow.pop %v1401
  %v1403 = vmul.f32 %v1297, 1.442695
  %v1404 = vpow.pop %v1403
  %v1405 = vmul.f32 %v1298, 1.442695
  %v1406 = vpow.pop %v1405
  %v1407 = vmul.f32 %v1299, 1.442695
  %v1408 = vpow.pop %v1407
  %v1409 = vmul.f32 %v1300, 1.442695
  %v1410 = vpow.pop %v1409
  %v1411 = vmul.f32 %v1301, 1.442695
  %v1412 = vpow.pop %v1411
  %v1413 = vmul.f32 %v1302, 1.442695
  %v1414 = vpow.pop %v1413
  %v1415 = vmul.f32 %v1303, 1.442695
  %v1416 = vpow.pop %v1415
  %v1417 = vmul.f32 %v1304, 1.442695
  %v1418 = vpow.pop %v1417
  %v1419 = vmul.f32 %v1305, 1.442695
  %v1420 = vpow.pop %v1419
  %v1421 = vmul.f32 %v1306, 1.442695
  %v1422 = vpow.pop %v1421
  %v1423 = vmul.f32 %v1307, 1.442695
  %v1424 = vpow.pop %v1423
  %v1425 = vmul.f32 %v1308, 1.442695
  %v1426 = vpow.pop %v1425
  %v1427 = vmul.f32 %v1309, 1.442695
  %v1428 = vpow.pop %v1427
  %v1429 = vmul.f32 %v1310, 1.442695
  %v1430 = vpow.pop %v1429
  %v1431 = vmul.f32 %v1311, 1.442695
  %v1432 = vpow.pop %v1431
  %v1433 = vmul.f32 %v1312, 1.442695
  %v1434 = vpow.pop %v1433
  %v1435 = vmul.f32 %v1313, 1.442695
  %v1436 = vpow.pop %v1435
  %v1437 = vmul.f32 %v1314, 1.442695
  %v1438 = vpow.pop %v1437
  %v1439 = vmul.f32 %v1315, 1.442695
  %v1440 = vpow.pop %v1439
  %v1441 = vmul.f32 %v1316, 1.442695
  %v1442 = vpow.pop %v1441
  %v1443 = vmul.f32 %v1317, 1.442695
  %v1444 = vpow.pop %v1443
  %v1445 = vmul.f32 %v1318, 1.442695
  %v1446 = vpow.pop %v1445
  %v1447 = vmul.f32 %v1319, 1.442695
  %v1448 = vpow.pop %v1447
  %v1449 = vmul.f32 %v1320, 1.442695
  %v1450 = vpow.pop %v1449
  %v1451 = vmul.f32 %v1321, 1.442695
  %v1452 = vpow.pop %v1451
  %v1453 = vmul.f32 %v1322, 1.442695
  %v1454 = vpow.pop %v1453
  %v1455 = vmul.f32 %v1323, 1.442695
  %v1456 = vpow.pop %v1455
  %v1457 = vmul.f32 %v1324, 1.442695
  %v1458 = vpow.pop %v1457
  %v1459 = vmul.f32 %v1325, 1.442695
  %v1460 = vpow.pop %v1459
  %v1461 = vmul.f32 %v1326, 1.442695
  %v1462 = vpow.pop %v1461
  %v1463 = vsub.f32 %v1328, 1.0
  %v1464 = vsub.f32 %v1330, 1.0
  %v1465 = vsub.f32 %v1332, 1.0
  %v1466 = vsub.f32 %v1334, 1.0
  %v1467 = vsub.f32 %v1336, 1.0
  %v1468 = vsub.f32 %v1338, 1.0
  %v1469 = vsub.f32 %v1340, 1.0
  %v1470 = vsub.f32 %v1342, 1.0
  %v1471 = vsub.f32 %v1344, 1.0
  %v1472 = vsub.f32 %v1346, 1.0
  %v1473 = vsub.f32 %v1348, 1.0
  %v1474 = vsub.f32 %v1350, 1.0
  %v1475 = vsub.f32 %v1352, 1.0
  %v1476 = vsub.f32 %v1354, 1.0
  %v1477 = vsub.f32 %v1356, 1.0
  %v1478 = vsub.f32 %v1358, 1.0
  %v1479 = vsub.f32 %v1360, 1.0
  %v1480 = vsub.f32 %v1362, 1.0
  %v1481 = vsub.f32 %v1364, 1.0
  %v1482 = vsub.f32 %v1366, 1.0
  %v1483 = vsub.f32 %v1368, 1.0
  %v1484 = vsub.f32 %v1370, 1.0
  %v1485 = vsub.f32 %v1372, 1.0
  %v1486 = vsub.f32 %v1374, 1.0
  %v1487 = vsub.f32 %v1376, 1.0
  %v1488 = vsub.f32 %v1378, 1.0
  %v1489 = vsub.f32 %v1380, 1.0
  %v1490 = vsub.f32 %v1382, 1.0
  %v1491 = vsub.f32 %v1384, 1.0
  %v1492 = vsub.f32 %v1386, 1.0
  %v1493 = vsub.f32 %v1388, 1.0
  %v1494 = vsub.f32 %v1390, 1.0
  %v1495 = vsub.f32 %v1392, 1.0
  %v1496 = vsub.f32 %v1394, 1.0
  %v1497 = vsub.f32 %v1396, 1.0
  %v1498 = vsub.f32 %v1398, 1.0
  %v1499 = vsub.f32 %v1400, 1.0
  %v1500 = vsub.f32 %v1402, 1.0
  %v1501 = vsub.f32 %v1404, 1.0
  %v1502 = vsub.f32 %v1406, 1.0
  %v1503 = vsub.f32 %v1408, 1.0
  %v1504 = vsub.f32 %v1410, 1.0
  %v1505 = vsub.f32 %v1412, 1.0
  %v1506 = vsub.f32 %v1414, 1.0
  %v1507 = vsub.f32 %v1416, 1.0
  %v1508 = vsub.f32 %v1418, 1.0
  %v1509 = vsub.f32 %v1420, 1.0
  %v1510 = vsub.f32 %v1422, 1.0
  %v1511 = vsub.f32 %v1424, 1.0
  %v1512 = vsub.f32 %v1426, 1.0
  %v1513 = vsub.f32 %v1428, 1.0
  %v1514 = vsub.f32 %v1430, 1.0
  %v1515 = vsub.f32 %v1432, 1.0
  %v1516 = vsub.f32 %v1434, 1.0
  %v1517 = vsub.f32 %v1436, 1.0
  %v1518 = vsub.f32 %v1438, 1.0
  %v1519 = vsub.f32 %v1440, 1.0
  %v1520 = vsub.f32 %v1442, 1.0
  %v1521 = vsub.f32 %v1444, 1.0
  %v1522 = vsub.f32 %v1446, 1.0
  %v1523 = vsub.f32 %v1448, 1.0
  %v1524 = vsub.f32 %v1450, 1.0
  %v1525 = vsub.f32 %v1452, 1.0
  %v1526 = vsub.f32 %v1454, 1.0
  %v1527 = vsub.f32 %v1456, 1.0
  %v1528 = vsub.f32 %v1458, 1.0
  %v1529 = vsub.f32 %v1460, 1.0
  %v1530 = vsub.f32 %v1462, 1.0
  %v1531 = vsel %vm1191, %v989, %v1463
  %v1532 = vsel %vm1192, %v991, %v1464
  %v1533 = vsel %vm1193, %v995, %v1465
  %v1534 = vsel %vm1194, %v997, %v1466
  %v1535 = vsel %vm1195, %v1001, %v1467
  %v1536 = vsel %vm1196, %v1003, %v1468
  %v1537 = vsel %vm1197, %v1007, %v1469
  %v1538 = vsel %vm1198, %v1009, %v1470
  %v1539 = vsel %vm1199, %v1013, %v1471
  %v1540 = vsel %vm1200, %v1015, %v1472
  %v1541 = vsel %vm1201, %v1019, %v1473
  %v1542 = vsel %vm1202, %v1021, %v1474
  %v1543 = vsel %vm1203, %v1025, %v1475
  %v1544 = vsel %vm1204, %v1027, %v1476
  %v1545 = vsel %vm1205, %v1031, %v1477
  %v1546 = vsel %vm1206, %v1033, %v1478
  %v1547 = vsel %vm1207, %v1037, %v1479
  %v1548 = vsel %vm1208, %v1039, %v1480
  %v1549 = vsel %vm1209, %v1043, %v1481
  %v1550 = vsel %vm1210, %v1045, %v1482
  %v1551 = vsel %vm1211, %v1049, %v1483
  %v1552 = vsel %vm1212, %v1051, %v1484
  %v1553 = vsel %vm1213, %v1055, %v1485
  %v1554 = vsel %vm1214, %v1057, %v1486
  %v1555 = vsel %vm1215, %v1061, %v1487
  %v1556 = vsel %vm1216, %v1063, %v1488
  %v1557 = vsel %vm1217, %v1067, %v1489
  %v1558 = vsel %vm1218, %v1069, %v1490
  %v1559 = vsel %vm1219, %v1073, %v1491
  %v1560 = vsel %vm1220, %v1075, %v1492
  %v1561 = vsel %vm1221, %v1079, %v1493
  %v1562 = vsel %vm1222, %v1081, %v1494
  %v1563 = vsel %vm1223, %v1085, %v1495
  %v1564 = vsel %vm1224, %v1087, %v1496
  %v1565 = vsel %vm1225, %v1091, %v1497
  %v1566 = vsel %vm1226, %v1093, %v1498
  %v1567 = vsel %vm1227, %v1097, %v1499
  %v1568 = vsel %vm1228, %v1099, %v1500
  %v1569 = vsel %vm1229, %v1103, %v1501
  %v1570 = vsel %vm1230, %v1105, %v1502
  %v1571 = vsel %vm1231, %v1109, %v1503
  %v1572 = vsel %vm1232, %v1111, %v1504
  %v1573 = vsel %vm1233, %v1115, %v1505
  %v1574 = vsel %vm1234, %v1117, %v1506
  %v1575 = vsel %vm1235, %v1121, %v1507
  %v1576 = vsel %vm1236, %v1123, %v1508
  %v1577 = vsel %vm1237, %v1127, %v1509
  %v1578 = vsel %vm1238, %v1129, %v1510
  %v1579 = vsel %vm1239, %v1133, %v1511
  %v1580 = vsel %vm1240, %v1135, %v1512
  %v1581 = vsel %vm1241, %v1139, %v1513
  %v1582 = vsel %vm1242, %v1141, %v1514
  %v1583 = vsel %vm1243, %v1145, %v1515
  %v1584 = vsel %vm1244, %v1147, %v1516
  %v1585 = vsel %vm1245, %v1151, %v1517
  %v1586 = vsel %vm1246, %v1153, %v1518
  %v1587 = vsel %vm1247, %v1157, %v1519
  %v1588 = vsel %vm1248, %v1159, %v1520
  %v1589 = vsel %vm1249, %v1163, %v1521
  %v1590 = vsel %vm1250, %v1165, %v1522
  %v1591 = vsel %vm1251, %v1169, %v1523
  %v1592 = vsel %vm1252, %v1171, %v1524
  %v1593 = vsel %vm1253, %v1175, %v1525
  %v1594 = vsel %vm1254, %v1177, %v1526
  %v1595 = vsel %vm1255, %v1181, %v1527
  %v1596 = vsel %vm1256, %v1183, %v1528
  %v1597 = vsel %vm1257, %v1187, %v1529
  %v1598 = vsel %vm1258, %v1189, %v1530
  %v1599 = vld [vmem:[%s3] sm:$0xff]
  %v1600 = vld [vmem:[%s3 + $0x8] sm:$0xff]
  %v1601 = vld [vmem:[%s3 + $0x10] sm:$0xff]
  %v1602 = vld [vmem:[%s3 + $0x18] sm:$0xff]
  %v1603 = vld [vmem:[%s3 + $0x20] sm:$0xff]
  %v1604 = vld [vmem:[%s3 + $0x28] sm:$0xff]
  %v1605 = vld [vmem:[%s3 + $0x30] sm:$0xff]
  %v1606 = vld [vmem:[%s3 + $0x38] sm:$0xff]
  %v1607 = vld [vmem:[%s3 + $0x40] sm:$0xff]
  %v1608 = vld [vmem:[%s3 + $0x48] sm:$0xff]
  %v1609 = vld [vmem:[%s3 + $0x50] sm:$0xff]
  %v1610 = vld [vmem:[%s3 + $0x58] sm:$0xff]
  %v1611 = vld [vmem:[%s3 + $0x60] sm:$0xff]
  %v1612 = vld [vmem:[%s3 + $0x68] sm:$0xff]
  %v1613 = vld [vmem:[%s3 + $0x70] sm:$0xff]
  %v1614 = vld [vmem:[%s3 + $0x78] sm:$0xff]
  %v1615 = vld [vmem:[%s3 + $0x80] sm:$0xff]
  %v1616 = vld [vmem:[%s3 + $0x88] sm:$0xff]
  %v1617 = vld [vmem:[%s3 + $0x90] sm:$0xff]
  %v1618 = vld [vmem:[%s3 + $0x98] sm:$0xff]
  %v1619 = vld [vmem:[%s3 + $0xa0] sm:$0xff]
  %v1620 = vld [vmem:[%s3 + $0xa8] sm:$0xff]
  %v1621 = vld [vmem:[%s3 + $0xb0] sm:$0xff]
  %v1622 = vld [vmem:[%s3 + $0xb8] sm:$0xff]
  %v1623 = vld [vmem:[%s3 + $0xc0] sm:$0xff]
  %v1624 = vld [vmem:[%s3 + $0xc8] sm:$0xff]
  %v1625 = vld [vmem:[%s3 + $0xd0] sm:$0xff]
  %v1626 = vld [vmem:[%s3 + $0xd8] sm:$0xff]
  %v1627 = vld [vmem:[%s3 + $0xe0] sm:$0xff]
  %v1628 = vld [vmem:[%s3 + $0xe8] sm:$0xff]
  %v1629 = vld [vmem:[%s3 + $0xf0] sm:$0xff]
  %v1630 = vld [vmem:[%s3 + $0xf8] sm:$0xff]
  %v1631 = vld [vmem:[%s3 + $0x100] sm:$0xff]
  %v1632 = vld [vmem:[%s3 + $0x108] sm:$0xff]
  %v1633 = vld [vmem:[%s3 + $0x110] sm:$0xff]
  %v1634 = vld [vmem:[%s3 + $0x118] sm:$0xff]
  %v1635 = vld [vmem:[%s3 + $0x120] sm:$0xff]
  %v1636 = vld [vmem:[%s3 + $0x128] sm:$0xff]
  %v1637 = vld [vmem:[%s3 + $0x130] sm:$0xff]
  %v1638 = vld [vmem:[%s3 + $0x138] sm:$0xff]
  %v1639 = vld [vmem:[%s3 + $0x140] sm:$0xff]
  %v1640 = vld [vmem:[%s3 + $0x148] sm:$0xff]
  %v1641 = vld [vmem:[%s3 + $0x150] sm:$0xff]
  %v1642 = vld [vmem:[%s3 + $0x158] sm:$0xff]
  %v1643 = vld [vmem:[%s3 + $0x160] sm:$0xff]
  %v1644 = vld [vmem:[%s3 + $0x168] sm:$0xff]
  %v1645 = vld [vmem:[%s3 + $0x170] sm:$0xff]
  %v1646 = vld [vmem:[%s3 + $0x178] sm:$0xff]
  %v1647 = vld [vmem:[%s3 + $0x180] sm:$0xff]
  %v1648 = vld [vmem:[%s3 + $0x188] sm:$0xff]
  %v1649 = vld [vmem:[%s3 + $0x190] sm:$0xff]
  %v1650 = vld [vmem:[%s3 + $0x198] sm:$0xff]
  %v1651 = vld [vmem:[%s3 + $0x1a0] sm:$0xff]
  %v1652 = vld [vmem:[%s3 + $0x1a8] sm:$0xff]
  %v1653 = vld [vmem:[%s3 + $0x1b0] sm:$0xff]
  %v1654 = vld [vmem:[%s3 + $0x1b8] sm:$0xff]
  %v1655 = vld [vmem:[%s3 + $0x1c0] sm:$0xff]
  %v1656 = vld [vmem:[%s3 + $0x1c8] sm:$0xff]
  %v1657 = vld [vmem:[%s3 + $0x1d0] sm:$0xff]
  %v1658 = vld [vmem:[%s3 + $0x1d8] sm:$0xff]
  %v1659 = vld [vmem:[%s3 + $0x1e0] sm:$0xff]
  %v1660 = vld [vmem:[%s3 + $0x1e8] sm:$0xff]
  %v1661 = vld [vmem:[%s3 + $0x1f0] sm:$0xff]
  %v1662 = vld [vmem:[%s3 + $0x1f8] sm:$0xff]
  %v1663 = vlaneseq
  %v1664 = vshrl.u32 %v1663, 7
  %v1665 = vsub.s32 1, %v1664
  %v1666 = vrot.slane %v597, %v1665
  %v1667 = vlaneseq
  %v1668 = vshrl.u32 %v1667, 7
  %v1669 = vsub.s32 1, %v1668
  %v1670 = vrot.slane %v598, %v1669
  %1671 = vmatprep.subr.mxu0 %v1600
  %1672 = vmatpush1.msra.mxu0 %v1599
  %1673 = vmatprep.subr.mxu0 %v1602
  %1674 = vmatpush1.msra.mxu0 %v1601
  %1675 = vmatprep.subr.mxu0 %v1604
  %1676 = vmatpush1.msra.mxu0 %v1603
  %1677 = vmatprep.subr.mxu0 %v1606
  %1678 = vmatpush1.msra.mxu0 %v1605
  %1679 = vmatprep.subr.mxu0 %v1608
  %1680 = vmatpush1.msra.mxu0 %v1607
  %1681 = vmatprep.subr.mxu0 %v1610
  %1682 = vmatpush1.msra.mxu0 %v1609
  %1683 = vmatprep.subr.mxu0 %v1612
  %1684 = vmatpush1.msra.mxu0 %v1611
  %1685 = vmatprep.subr.mxu0 %v1614
  %1686 = vmatpush1.msra.mxu0 %v1613
  %1687 = vmatprep.subr.mxu0 %v1616
  %1688 = vmatpush1.msra.mxu0 %v1615
  %1689 = vmatprep.subr.mxu0 %v1618
  %1690 = vmatpush1.msra.mxu0 %v1617
  %1691 = vmatprep.subr.mxu0 %v1620
  %1692 = vmatpush1.msra.mxu0 %v1619
  %1693 = vmatprep.subr.mxu0 %v1622
  %1694 = vmatpush1.msra.mxu0 %v1621
  %1695 = vmatprep.subr.mxu0 %v1624
  %1696 = vmatpush1.msra.mxu0 %v1623
  %1697 = vmatprep.subr.mxu0 %v1626
  %1698 = vmatpush1.msra.mxu0 %v1625
  %1699 = vmatprep.subr.mxu0 %v1628
  %1700 = vmatpush1.msra.mxu0 %v1627
  %1701 = vmatprep.subr.mxu0 %v1630
  %1702 = vmatpush1.msra.mxu0 %v1629
  %1703 = vmatprep.subr.mxu0 %v1632
  %1704 = vmatpush1.msra.mxu0 %v1631
  %1705 = vmatprep.subr.mxu0 %v1634
  %1706 = vmatpush1.msra.mxu0 %v1633
  %1707 = vmatprep.subr.mxu0 %v1636
  %1708 = vmatpush1.msra.mxu0 %v1635
  %1709 = vmatprep.subr.mxu0 %v1638
  %1710 = vmatpush1.msra.mxu0 %v1637
  %1711 = vmatprep.subr.mxu0 %v1640
  %1712 = vmatpush1.msra.mxu0 %v1639
  %1713 = vmatprep.subr.mxu0 %v1642
  %1714 = vmatpush1.msra.mxu0 %v1641
  %1715 = vmatprep.subr.mxu0 %v1644
  %1716 = vmatpush1.msra.mxu0 %v1643
  %1717 = vmatprep.subr.mxu0 %v1646
  %1718 = vmatpush1.msra.mxu0 %v1645
  %1719 = vmatprep.subr.mxu0 %v1648
  %1720 = vmatpush1.msra.mxu0 %v1647
  %1721 = vmatprep.subr.mxu0 %v1650
  %1722 = vmatpush1.msra.mxu0 %v1649
  %1723 = vmatprep.subr.mxu0 %v1652
  %1724 = vmatpush1.msra.mxu0 %v1651
  %1725 = vmatprep.subr.mxu0 %v1654
  %1726 = vmatpush1.msra.mxu0 %v1653
  %1727 = vmatprep.subr.mxu0 %v1656
  %1728 = vmatpush1.msra.mxu0 %v1655
  %1729 = vmatprep.subr.mxu0 %v1658
  %1730 = vmatpush1.msra.mxu0 %v1657
  %1731 = vmatprep.subr.mxu0 %v1660
  %1732 = vmatpush1.msra.mxu0 %v1659
  %1733 = vmatprep.subr.mxu0 %v1662
  %1734 = vmatpush1.msra.mxu0 %v1661
  %1735 = vmatprep.mubr.f32.mxu0 %v1532
  %1736 = vmatmul.mubr.f32.gmra.mrb[0].mxu0 %v1531
  %v1737 = vpop.f32.mrb[0].mxu0
  %v1738 = vadd.f32 %v1666, %v1737
  %v1739 = vpop.f32.mrb[0].mxu0
  %v1740 = vadd.f32 %v1670, %v1739
  %1741 = vmatprep.mubr.f32.mxu0 %v1534
  %1742 = vmatmul.mubr.f32.gmra.mrb[0].mxu0 %v1533
  %v1743 = vpop.f32.mrb[0].mxu0
  %v1744 = vadd.f32 %v1666, %v1743
  %v1745 = vpop.f32.mrb[0].mxu0
  %v1746 = vadd.f32 %v1670, %v1745
  %1747 = vmatprep.mubr.f32.mxu0 %v1536
  %1748 = vmatmul.mubr.f32.gmra.mrb[0].mxu0 %v1535
  %v1749 = vpop.f32.mrb[0].mxu0
  %v1750 = vadd.f32 %v1666, %v1749
  %v1751 = vpop.f32.mrb[0].mxu0
  %v1752 = vadd.f32 %v1670, %v1751
  %1753 = vmatprep.mubr.f32.mxu0 %v1538
  %1754 = vmatmul.mubr.f32.gmra.mrb[0].mxu0 %v1537
  %v1755 = vpop.f32.mrb[0].mxu0
  %v1756 = vadd.f32 %v1666, %v1755
  %v1757 = vpop.f32.mrb[0].mxu0
  %v1758 = vadd.f32 %v1670, %v1757
  %1759 = vmatprep.mubr.f32.mxu0 %v1540
  %1760 = vmatmul.mubr.f32.gmra.mrb[0].mxu0 %v1539
  %v1761 = vpop.f32.mrb[0].mxu0
  %v1762 = vadd.f32 %v1666, %v1761
  %v1763 = vpop.f32.mrb[0].mxu0
  %v1764 = vadd.f32 %v1670, %v1763
  %1765 = vmatprep.mubr.f32.mxu0 %v1542
  %1766 = vmatmul.mubr.f32.gmra.mrb[0].mxu0 %v1541
  %v1767 = vpop.f32.mrb[0].mxu0
  %v1768 = vadd.f32 %v1666, %v1767
  %v1769 = vpop.f32.mrb[0].mxu0
  %v1770 = vadd.f32 %v1670, %v1769
  %1771 = vmatprep.mubr.f32.mxu0 %v1544
  %1772 = vmatmul.mubr.f32.gmra.mrb[0].mxu0 %v1543
  %v1773 = vpop.f32.mrb[0].mxu0
  %v1774 = vadd.f32 %v1666, %v1773
  %v1775 = vpop.f32.mrb[0].mxu0
  %v1776 = vadd.f32 %v1670, %v1775
  %1777 = vmatprep.mubr.f32.mxu0 %v1546
  %1778 = vmatmul.mubr.f32.gmra.mrb[0].mxu0 %v1545
  %v1779 = vpop.f32.mrb[0].mxu0
  %v1780 = vadd.f32 %v1666, %v1779
  %v1781 = vpop.f32.mrb[0].mxu0
  %v1782 = vadd.f32 %v1670, %v1781
  %1783 = vmatprep.mubr.f32.mxu0 %v1548
  %1784 = vmatmul.mubr.f32.gmra.mrb[0].mxu0 %v1547
  %v1785 = vpop.f32.mrb[0].mxu0
  %v1786 = vadd.f32 %v1666, %v1785
  %v1787 = vpop.f32.mrb[0].mxu0
  %v1788 = vadd.f32 %v1670, %v1787
  %1789 = vmatprep.mubr.f32.mxu0 %v1550
  %1790 = vmatmul.mubr.f32.gmra.mrb[0].mxu0 %v1549
  %v1791 = vpop.f32.mrb[0].mxu0
  %v1792 = vadd.f32 %v1666, %v1791
  %v1793 = vpop.f32.mrb[0].mxu0
  %v1794 = vadd.f32 %v1670, %v1793
  %1795 = vmatprep.mubr.f32.mxu0 %v1552
  %1796 = vmatmul.mubr.f32.gmra.mrb[0].mxu0 %v1551
  %v1797 = vpop.f32.mrb[0].mxu0
  %v1798 = vadd.f32 %v1666, %v1797
  %v1799 = vpop.f32.mrb[0].mxu0
  %v1800 = vadd.f32 %v1670, %v1799
  %1801 = vmatprep.mubr.f32.mxu0 %v1554
  %1802 = vmatmul.mubr.f32.gmra.mrb[0].mxu0 %v1553
  %v1803 = vpop.f32.mrb[0].mxu0
  %v1804 = vadd.f32 %v1666, %v1803
  %v1805 = vpop.f32.mrb[0].mxu0
  %v1806 = vadd.f32 %v1670, %v1805
  %1807 = vmatprep.mubr.f32.mxu0 %v1556
  %1808 = vmatmul.mubr.f32.gmra.mrb[0].mxu0 %v1555
  %v1809 = vpop.f32.mrb[0].mxu0
  %v1810 = vadd.f32 %v1666, %v1809
  %v1811 = vpop.f32.mrb[0].mxu0
  %v1812 = vadd.f32 %v1670, %v1811
  %1813 = vmatprep.mubr.f32.mxu0 %v1558
  %1814 = vmatmul.mubr.f32.gmra.mrb[0].mxu0 %v1557
  %v1815 = vpop.f32.mrb[0].mxu0
  %v1816 = vadd.f32 %v1666, %v1815
  %v1817 = vpop.f32.mrb[0].mxu0
  %v1818 = vadd.f32 %v1670, %v1817
  %1819 = vmatprep.mubr.f32.mxu0 %v1560
  %1820 = vmatmul.mubr.f32.gmra.mrb[0].mxu0 %v1559
  %v1821 = vpop.f32.mrb[0].mxu0
  %v1822 = vadd.f32 %v1666, %v1821
  %v1823 = vpop.f32.mrb[0].mxu0
  %v1824 = vadd.f32 %v1670, %v1823
  %1825 = vmatprep.mubr.f32.mxu0 %v1562
  %1826 = vmatmul.mubr.f32.gmra.mrb[0].mxu0 %v1561
  %v1827 = vpop.f32.mrb[0].mxu0
  %v1828 = vadd.f32 %v1666, %v1827
  %v1829 = vpop.f32.mrb[0].mxu0
  %v1830 = vadd.f32 %v1670, %v1829
  %1831 = vmatprep.mubr.f32.mxu0 %v1564
  %1832 = vmatmul.mubr.f32.gmra.mrb[0].mxu0 %v1563
  %v1833 = vpop.f32.mrb[0].mxu0
  %v1834 = vadd.f32 %v1666, %v1833
  %v1835 = vpop.f32.mrb[0].mxu0
  %v1836 = vadd.f32 %v1670, %v1835
  %1837 = vmatprep.mubr.f32.mxu0 %v1566
  %1838 = vmatmul.mubr.f32.gmra.mrb[0].mxu0 %v1565
  %v1839 = vpop.f32.mrb[0].mxu0
  %v1840 = vadd.f32 %v1666, %v1839
  %v1841 = vpop.f32.mrb[0].mxu0
  %v1842 = vadd.f32 %v1670, %v1841
  %1843 = vmatprep.mubr.f32.mxu0 %v1568
  %1844 = vmatmul.mubr.f32.gmra.mrb[0].mxu0 %v1567
  %v1845 = vpop.f32.mrb[0].mxu0
  %v1846 = vadd.f32 %v1666, %v1845
  %v1847 = vpop.f32.mrb[0].mxu0
  %v1848 = vadd.f32 %v1670, %v1847
  %1849 = vmatprep.mubr.f32.mxu0 %v1570
  %1850 = vmatmul.mubr.f32.gmra.mrb[0].mxu0 %v1569
  %v1851 = vpop.f32.mrb[0].mxu0
  %v1852 = vadd.f32 %v1666, %v1851
  %v1853 = vpop.f32.mrb[0].mxu0
  %v1854 = vadd.f32 %v1670, %v1853
  %1855 = vmatprep.mubr.f32.mxu0 %v1572
  %1856 = vmatmul.mubr.f32.gmra.mrb[0].mxu0 %v1571
  %v1857 = vpop.f32.mrb[0].mxu0
  %v1858 = vadd.f32 %v1666, %v1857
  %v1859 = vpop.f32.mrb[0].mxu0
  %v1860 = vadd.f32 %v1670, %v1859
  %1861 = vmatprep.mubr.f32.mxu0 %v1574
  %1862 = vmatmul.mubr.f32.gmra.mrb[0].mxu0 %v1573
  %v1863 = vpop.f32.mrb[0].mxu0
  %v1864 = vadd.f32 %v1666, %v1863
  %v1865 = vpop.f32.mrb[0].mxu0
  %v1866 = vadd.f32 %v1670, %v1865
  %1867 = vmatprep.mubr.f32.mxu0 %v1576
  %1868 = vmatmul.mubr.f32.gmra.mrb[0].mxu0 %v1575
  %v1869 = vpop.f32.mrb[0].mxu0
  %v1870 = vadd.f32 %v1666, %v1869
  %v1871 = vpop.f32.mrb[0].mxu0
  %v1872 = vadd.f32 %v1670, %v1871
  %1873 = vmatprep.mubr.f32.mxu0 %v1578
  %1874 = vmatmul.mubr.f32.gmra.mrb[0].mxu0 %v1577
  %v1875 = vpop.f32.mrb[0].mxu0
  %v1876 = vadd.f32 %v1666, %v1875
  %v1877 = vpop.f32.mrb[0].mxu0
  %v1878 = vadd.f32 %v1670, %v1877
  %1879 = vmatprep.mubr.f32.mxu0 %v1580
  %1880 = vmatmul.mubr.f32.gmra.mrb[0].mxu0 %v1579
  %v1881 = vpop.f32.mrb[0].mxu0
  %v1882 = vadd.f32 %v1666, %v1881
  %v1883 = vpop.f32.mrb[0].mxu0
  %v1884 = vadd.f32 %v1670, %v1883
  %1885 = vmatprep.mubr.f32.mxu0 %v1582
  %1886 = vmatmul.mubr.f32.gmra.mrb[0].mxu0 %v1581
  %v1887 = vpop.f32.mrb[0].mxu0
  %v1888 = vadd.f32 %v1666, %v1887
  %v1889 = vpop.f32.mrb[0].mxu0
  %v1890 = vadd.f32 %v1670, %v1889
  %1891 = vmatprep.mubr.f32.mxu0 %v1584
  %1892 = vmatmul.mubr.f32.gmra.mrb[0].mxu0 %v1583
  %v1893 = vpop.f32.mrb[0].mxu0
  %v1894 = vadd.f32 %v1666, %v1893
  %v1895 = vpop.f32.mrb[0].mxu0
  %v1896 = vadd.f32 %v1670, %v1895
  %1897 = vmatprep.mubr.f32.mxu0 %v1586
  %1898 = vmatmul.mubr.f32.gmra.mrb[0].mxu0 %v1585
  %v1899 = vpop.f32.mrb[0].mxu0
  %v1900 = vadd.f32 %v1666, %v1899
  %v1901 = vpop.f32.mrb[0].mxu0
  %v1902 = vadd.f32 %v1670, %v1901
  %1903 = vmatprep.mubr.f32.mxu0 %v1588
  %1904 = vmatmul.mubr.f32.gmra.mrb[0].mxu0 %v1587
  %v1905 = vpop.f32.mrb[0].mxu0
  %v1906 = vadd.f32 %v1666, %v1905
  %v1907 = vpop.f32.mrb[0].mxu0
  %v1908 = vadd.f32 %v1670, %v1907
  %1909 = vmatprep.mubr.f32.mxu0 %v1590
  %1910 = vmatmul.mubr.f32.gmra.mrb[0].mxu0 %v1589
  %v1911 = vpop.f32.mrb[0].mxu0
  %v1912 = vadd.f32 %v1666, %v1911
  %v1913 = vpop.f32.mrb[0].mxu0
  %v1914 = vadd.f32 %v1670, %v1913
  %1915 = vmatprep.mubr.f32.mxu0 %v1592
  %1916 = vmatmul.mubr.f32.gmra.mrb[0].mxu0 %v1591
  %v1917 = vpop.f32.mrb[0].mxu0
  %v1918 = vadd.f32 %v1666, %v1917
  %v1919 = vpop.f32.mrb[0].mxu0
  %v1920 = vadd.f32 %v1670, %v1919
  %1921 = vmatprep.mubr.f32.mxu0 %v1594
  %1922 = vmatmul.mubr.f32.gmra.mrb[0].mxu0 %v1593
  %v1923 = vpop.f32.mrb[0].mxu0
  %v1924 = vadd.f32 %v1666, %v1923
  %v1925 = vpop.f32.mrb[0].mxu0
  %v1926 = vadd.f32 %v1670, %v1925
  %1927 = vmatprep.mubr.f32.mxu0 %v1596
  %1928 = vmatmul.mubr.f32.gmra.mrb[0].mxu0 %v1595
  %v1929 = vpop.f32.mrb[0].mxu0
  %v1930 = vadd.f32 %v1666, %v1929
  %v1931 = vpop.f32.mrb[0].mxu0
  %v1932 = vadd.f32 %v1670, %v1931
  %1933 = vmatprep.mubr.f32.mxu0 %v1598
  %1934 = vmatmul.mubr.f32.gmra.mrb[0].mxu0 %v1597
  %v1935 = vpop.f32.mrb[0].mxu0
  %v1936 = vadd.f32 %v1666, %v1935
  %v1937 = vpop.f32.mrb[0].mxu0
  %v1938 = vadd.f32 %v1670, %v1937
  %1939 = vdwg.mxu0
  %vm1940 = vcmp.gt.f32.partialorder %v1738, 0.0
  %vm1941 = vcmp.gt.f32.partialorder %v1740, 0.0
  %vm1942 = vcmp.gt.f32.partialorder %v1744, 0.0
  %vm1943 = vcmp.gt.f32.partialorder %v1746, 0.0
  %vm1944 = vcmp.gt.f32.partialorder %v1750, 0.0
  %vm1945 = vcmp.gt.f32.partialorder %v1752, 0.0
  %vm1946 = vcmp.gt.f32.partialorder %v1756, 0.0
  %vm1947 = vcmp.gt.f32.partialorder %v1758, 0.0
  %vm1948 = vcmp.gt.f32.partialorder %v1762, 0.0
  %vm1949 = vcmp.gt.f32.partialorder %v1764, 0.0
  %vm1950 = vcmp.gt.f32.partialorder %v1768, 0.0
  %vm1951 = vcmp.gt.f32.partialorder %v1770, 0.0
  %vm1952 = vcmp.gt.f32.partialorder %v1774, 0.0
  %vm1953 = vcmp.gt.f32.partialorder %v1776, 0.0
  %vm1954 = vcmp.gt.f32.partialorder %v1780, 0.0
  %vm1955 = vcmp.gt.f32.partialorder %v1782, 0.0
  %vm1956 = vcmp.gt.f32.partialorder %v1786, 0.0
  %vm1957 = vcmp.gt.f32.partialorder %v1788, 0.0
  %vm1958 = vcmp.gt.f32.partialorder %v1792, 0.0
  %vm1959 = vcmp.gt.f32.partialorder %v1794, 0.0
  %vm1960 = vcmp.gt.f32.partialorder %v1798, 0.0
  %vm1961 = vcmp.gt.f32.partialorder %v1800, 0.0
  %vm1962 = vcmp.gt.f32.partialorder %v1804, 0.0
  %vm1963 = vcmp.gt.f32.partialorder %v1806, 0.0
  %vm1964 = vcmp.gt.f32.partialorder %v1810, 0.0
  %vm1965 = vcmp.gt.f32.partialorder %v1812, 0.0
  %vm1966 = vcmp.gt.f32.partialorder %v1816, 0.0
  %vm1967 = vcmp.gt.f32.partialorder %v1818, 0.0
  %vm1968 = vcmp.gt.f32.partialorder %v1822, 0.0
  %vm1969 = vcmp.gt.f32.partialorder %v1824, 0.0
  %vm1970 = vcmp.gt.f32.partialorder %v1828, 0.0
  %vm1971 = vcmp.gt.f32.partialorder %v1830, 0.0
  %vm1972 = vcmp.gt.f32.partialorder %v1834, 0.0
  %vm1973 = vcmp.gt.f32.partialorder %v1836, 0.0
  %vm1974 = vcmp.gt.f32.partialorder %v1840, 0.0
  %vm1975 = vcmp.gt.f32.partialorder %v1842, 0.0
  %vm1976 = vcmp.gt.f32.partialorder %v1846, 0.0
  %vm1977 = vcmp.gt.f32.partialorder %v1848, 0.0
  %vm1978 = vcmp.gt.f32.partialorder %v1852, 0.0
  %vm1979 = vcmp.gt.f32.partialorder %v1854, 0.0
  %vm1980 = vcmp.gt.f32.partialorder %v1858, 0.0
  %vm1981 = vcmp.gt.f32.partialorder %v1860, 0.0
  %vm1982 = vcmp.gt.f32.partialorder %v1864, 0.0
  %vm1983 = vcmp.gt.f32.partialorder %v1866, 0.0
  %vm1984 = vcmp.gt.f32.partialorder %v1870, 0.0
  %vm1985 = vcmp.gt.f32.partialorder %v1872, 0.0
  %vm1986 = vcmp.gt.f32.partialorder %v1876, 0.0
  %vm1987 = vcmp.gt.f32.partialorder %v1878, 0.0
  %vm1988 = vcmp.gt.f32.partialorder %v1882, 0.0
  %vm1989 = vcmp.gt.f32.partialorder %v1884, 0.0
  %vm1990 = vcmp.gt.f32.partialorder %v1888, 0.0
  %vm1991 = vcmp.gt.f32.partialorder %v1890, 0.0
  %vm1992 = vcmp.gt.f32.partialorder %v1894, 0.0
  %vm1993 = vcmp.gt.f32.partialorder %v1896, 0.0
  %vm1994 = vcmp.gt.f32.partialorder %v1900, 0.0
  %vm1995 = vcmp.gt.f32.partialorder %v1902, 0.0
  %vm1996 = vcmp.gt.f32.partialorder %v1906, 0.0
  %vm1997 = vcmp.gt.f32.partialorder %v1908, 0.0
  %vm1998 = vcmp.gt.f32.partialorder %v1912, 0.0
  %vm1999 = vcmp.gt.f32.partialorder %v1914, 0.0
  %vm2000 = vcmp.gt.f32.partialorder %v1918, 0.0
  %vm2001 = vcmp.gt.f32.partialorder %v1920, 0.0
  %vm2002 = vcmp.gt.f32.partialorder %v1924, 0.0
  %vm2003 = vcmp.gt.f32.partialorder %v1926, 0.0
  %vm2004 = vcmp.gt.f32.partialorder %v1930, 0.0
  %vm2005 = vcmp.gt.f32.partialorder %v1932, 0.0
  %vm2006 = vcmp.gt.f32.partialorder %v1936, 0.0
  %vm2007 = vcmp.gt.f32.partialorder %v1938, 0.0
  %v2008 = vmin.f32 %v1738, 0.0
  %v2009 = vmin.f32 %v1740, 0.0
  %v2010 = vmin.f32 %v1744, 0.0
  %v2011 = vmin.f32 %v1746, 0.0
  %v2012 = vmin.f32 %v1750, 0.0
  %v2013 = vmin.f32 %v1752, 0.0
  %v2014 = vmin.f32 %v1756, 0.0
  %v2015 = vmin.f32 %v1758, 0.0
  %v2016 = vmin.f32 %v1762, 0.0
  %v2017 = vmin.f32 %v1764, 0.0
  %v2018 = vmin.f32 %v1768, 0.0
  %v2019 = vmin.f32 %v1770, 0.0
  %v2020 = vmin.f32 %v1774, 0.0
  %v2021 = vmin.f32 %v1776, 0.0
  %v2022 = vmin.f32 %v1780, 0.0
  %v2023 = vmin.f32 %v1782, 0.0
  %v2024 = vmin.f32 %v1786, 0.0
  %v2025 = vmin.f32 %v1788, 0.0
  %v2026 = vmin.f32 %v1792, 0.0
  %v2027 = vmin.f32 %v1794, 0.0
  %v2028 = vmin.f32 %v1798, 0.0
  %v2029 = vmin.f32 %v1800, 0.0
  %v2030 = vmin.f32 %v1804, 0.0
  %v2031 = vmin.f32 %v1806, 0.0
  %v2032 = vmin.f32 %v1810, 0.0
  %v2033 = vmin.f32 %v1812, 0.0
  %v2034 = vmin.f32 %v1816, 0.0
  %v2035 = vmin.f32 %v1818, 0.0
  %v2036 = vmin.f32 %v1822, 0.0
  %v2037 = vmin.f32 %v1824, 0.0
  %v2038 = vmin.f32 %v1828, 0.0
  %v2039 = vmin.f32 %v1830, 0.0
  %v2040 = vmin.f32 %v1834, 0.0
  %v2041 = vmin.f32 %v1836, 0.0
  %v2042 = vmin.f32 %v1840, 0.0
  %v2043 = vmin.f32 %v1842, 0.0
  %v2044 = vmin.f32 %v1846, 0.0
  %v2045 = vmin.f32 %v1848, 0.0
  %v2046 = vmin.f32 %v1852, 0.0
  %v2047 = vmin.f32 %v1854, 0.0
  %v2048 = vmin.f32 %v1858, 0.0
  %v2049 = vmin.f32 %v1860, 0.0
  %v2050 = vmin.f32 %v1864, 0.0
  %v2051 = vmin.f32 %v1866, 0.0
  %v2052 = vmin.f32 %v1870, 0.0
  %v2053 = vmin.f32 %v1872, 0.0
  %v2054 = vmin.f32 %v1876, 0.0
  %v2055 = vmin.f32 %v1878, 0.0
  %v2056 = vmin.f32 %v1882, 0.0
  %v2057 = vmin.f32 %v1884, 0.0
  %v2058 = vmin.f32 %v1888, 0.0
  %v2059 = vmin.f32 %v1890, 0.0
  %v2060 = vmin.f32 %v1894, 0.0
  %v2061 = vmin.f32 %v1896, 0.0
  %v2062 = vmin.f32 %v1900, 0.0
  %v2063 = vmin.f32 %v1902, 0.0
  %v2064 = vmin.f32 %v1906, 0.0
  %v2065 = vmin.f32 %v1908, 0.0
  %v2066 = vmin.f32 %v1912, 0.0
  %v2067 = vmin.f32 %v1914, 0.0
  %v2068 = vmin.f32 %v1918, 0.0
  %v2069 = vmin.f32 %v1920, 0.0
  %v2070 = vmin.f32 %v1924, 0.0
  %v2071 = vmin.f32 %v1926, 0.0
  %v2072 = vmin.f32 %v1930, 0.0
  %v2073 = vmin.f32 %v1932, 0.0
  %v2074 = vmin.f32 %v1936, 0.0
  %v2075 = vmin.f32 %v1938, 0.0
  %v2076 = vmul.f32 %v2008, 1.442695
  %v2077 = vpow.pop %v2076
  %v2078 = vmul.f32 %v2009, 1.442695
  %v2079 = vpow.pop %v2078
  %v2080 = vmul.f32 %v2010, 1.442695
  %v2081 = vpow.pop %v2080
  %v2082 = vmul.f32 %v2011, 1.442695
  %v2083 = vpow.pop %v2082
  %v2084 = vmul.f32 %v2012, 1.442695
  %v2085 = vpow.pop %v2084
  %v2086 = vmul.f32 %v2013, 1.442695
  %v2087 = vpow.pop %v2086
  %v2088 = vmul.f32 %v2014, 1.442695
  %v2089 = vpow.pop %v2088
  %v2090 = vmul.f32 %v2015, 1.442695
  %v2091 = vpow.pop %v2090
  %v2092 = vmul.f32 %v2016, 1.442695
  %v2093 = vpow.pop %v2092
  %v2094 = vmul.f32 %v2017, 1.442695
  %v2095 = vpow.pop %v2094
  %v2096 = vmul.f32 %v2018, 1.442695
  %v2097 = vpow.pop %v2096
  %v2098 = vmul.f32 %v2019, 1.442695
  %v2099 = vpow.pop %v2098
  %v2100 = vmul.f32 %v2020, 1.442695
  %v2101 = vpow.pop %v2100
  %v2102 = vmul.f32 %v2021, 1.442695
  %v2103 = vpow.pop %v2102
  %v2104 = vmul.f32 %v2022, 1.442695
  %v2105 = vpow.pop %v2104
  %v2106 = vmul.f32 %v2023, 1.442695
  %v2107 = vpow.pop %v2106
  %v2108 = vmul.f32 %v2024, 1.442695
  %v2109 = vpow.pop %v2108
  %v2110 = vmul.f32 %v2025, 1.442695
  %v2111 = vpow.pop %v2110
  %v2112 = vmul.f32 %v2026, 1.442695
  %v2113 = vpow.pop %v2112
  %v2114 = vmul.f32 %v2027, 1.442695
  %v2115 = vpow.pop %v2114
  %v2116 = vmul.f32 %v2028, 1.442695
  %v2117 = vpow.pop %v2116
  %v2118 = vmul.f32 %v2029, 1.442695
  %v2119 = vpow.pop %v2118
  %v2120 = vmul.f32 %v2030, 1.442695
  %v2121 = vpow.pop %v2120
  %v2122 = vmul.f32 %v2031, 1.442695
  %v2123 = vpow.pop %v2122
  %v2124 = vmul.f32 %v2032, 1.442695
  %v2125 = vpow.pop %v2124
  %v2126 = vmul.f32 %v2033, 1.442695
  %v2127 = vpow.pop %v2126
  %v2128 = vmul.f32 %v2034, 1.442695
  %v2129 = vpow.pop %v2128
  %v2130 = vmul.f32 %v2035, 1.442695
  %v2131 = vpow.pop %v2130
  %v2132 = vmul.f32 %v2036, 1.442695
  %v2133 = vpow.pop %v2132
  %v2134 = vmul.f32 %v2037, 1.442695
  %v2135 = vpow.pop %v2134
  %v2136 = vmul.f32 %v2038, 1.442695
  %v2137 = vpow.pop %v2136
  %v2138 = vmul.f32 %v2039, 1.442695
  %v2139 = vpow.pop %v2138
  %v2140 = vmul.f32 %v2040, 1.442695
  %v2141 = vpow.pop %v2140
  %v2142 = vmul.f32 %v2041, 1.442695
  %v2143 = vpow.pop %v2142
  %v2144 = vmul.f32 %v2042, 1.442695
  %v2145 = vpow.pop %v2144
  %v2146 = vmul.f32 %v2043, 1.442695
  %v2147 = vpow.pop %v2146
  %v2148 = vmul.f32 %v2044, 1.442695
  %v2149 = vpow.pop %v2148
  %v2150 = vmul.f32 %v2045, 1.442695
  %v2151 = vpow.pop %v2150
  %v2152 = vmul.f32 %v2046, 1.442695
  %v2153 = vpow.pop %v2152
  %v2154 = vmul.f32 %v2047, 1.442695
  %v2155 = vpow.pop %v2154
  %v2156 = vmul.f32 %v2048, 1.442695
  %v2157 = vpow.pop %v2156
  %v2158 = vmul.f32 %v2049, 1.442695
  %v2159 = vpow.pop %v2158
  %v2160 = vmul.f32 %v2050, 1.442695
  %v2161 = vpow.pop %v2160
  %v2162 = vmul.f32 %v2051, 1.442695
  %v2163 = vpow.pop %v2162
  %v2164 = vmul.f32 %v2052, 1.442695
  %v2165 = vpow.pop %v2164
  %v2166 = vmul.f32 %v2053, 1.442695
  %v2167 = vpow.pop %v2166
  %v2168 = vmul.f32 %v2054, 1.442695
  %v2169 = vpow.pop %v2168
  %v2170 = vmul.f32 %v2055, 1.442695
  %v2171 = vpow.pop %v2170
  %v2172 = vmul.f32 %v2056, 1.442695
  %v2173 = vpow.pop %v2172
  %v2174 = vmul.f32 %v2057, 1.442695
  %v2175 = vpow.pop %v2174
  %v2176 = vmul.f32 %v2058, 1.442695
  %v2177 = vpow.pop %v2176
  %v2178 = vmul.f32 %v2059, 1.442695
  %v2179 = vpow.pop %v2178
  %v2180 = vmul.f32 %v2060, 1.442695
  %v2181 = vpow.pop %v2180
  %v2182 = vmul.f32 %v2061, 1.442695
  %v2183 = vpow.pop %v2182
  %v2184 = vmul.f32 %v2062, 1.442695
  %v2185 = vpow.pop %v2184
  %v2186 = vmul.f32 %v2063, 1.442695
  %v2187 = vpow.pop %v2186
  %v2188 = vmul.f32 %v2064, 1.442695
  %v2189 = vpow.pop %v2188
  %v2190 = vmul.f32 %v2065, 1.442695
  %v2191 = vpow.pop %v2190
  %v2192 = vmul.f32 %v2066, 1.442695
  %v2193 = vpow.pop %v2192
  %v2194 = vmul.f32 %v2067, 1.442695
  %v2195 = vpow.pop %v2194
  %v2196 = vmul.f32 %v2068, 1.442695
  %v2197 = vpow.pop %v2196
  %v2198 = vmul.f32 %v2069, 1.442695
  %v2199 = vpow.pop %v2198
  %v2200 = vmul.f32 %v2070, 1.442695
  %v2201 = vpow.pop %v2200
  %v2202 = vmul.f32 %v2071, 1.442695
  %v2203 = vpow.pop %v2202
  %v2204 = vmul.f32 %v2072, 1.442695
  %v2205 = vpow.pop %v2204
  %v2206 = vmul.f32 %v2073, 1.442695
  %v2207 = vpow.pop %v2206
  %v2208 = vmul.f32 %v2074, 1.442695
  %v2209 = vpow.pop %v2208
  %v2210 = vmul.f32 %v2075, 1.442695
  %v2211 = vpow.pop %v2210
  %v2212 = vsub.f32 %v2077, 1.0
  %v2213 = vsub.f32 %v2079, 1.0
  %v2214 = vsub.f32 %v2081, 1.0
  %v2215 = vsub.f32 %v2083, 1.0
  %v2216 = vsub.f32 %v2085, 1.0
  %v2217 = vsub.f32 %v2087, 1.0
  %v2218 = vsub.f32 %v2089, 1.0
  %v2219 = vsub.f32 %v2091, 1.0
  %v2220 = vsub.f32 %v2093, 1.0
  %v2221 = vsub.f32 %v2095, 1.0
  %v2222 = vsub.f32 %v2097, 1.0
  %v2223 = vsub.f32 %v2099, 1.0
  %v2224 = vsub.f32 %v2101, 1.0
  %v2225 = vsub.f32 %v2103, 1.0
  %v2226 = vsub.f32 %v2105, 1.0
  %v2227 = vsub.f32 %v2107, 1.0
  %v2228 = vsub.f32 %v2109, 1.0
  %v2229 = vsub.f32 %v2111, 1.0
  %v2230 = vsub.f32 %v2113, 1.0
  %v2231 = vsub.f32 %v2115, 1.0
  %v2232 = vsub.f32 %v2117, 1.0
  %v2233 = vsub.f32 %v2119, 1.0
  %v2234 = vsub.f32 %v2121, 1.0
  %v2235 = vsub.f32 %v2123, 1.0
  %v2236 = vsub.f32 %v2125, 1.0
  %v2237 = vsub.f32 %v2127, 1.0
  %v2238 = vsub.f32 %v2129, 1.0
  %v2239 = vsub.f32 %v2131, 1.0
  %v2240 = vsub.f32 %v2133, 1.0
  %v2241 = vsub.f32 %v2135, 1.0
  %v2242 = vsub.f32 %v2137, 1.0
  %v2243 = vsub.f32 %v2139, 1.0
  %v2244 = vsub.f32 %v2141, 1.0
  %v2245 = vsub.f32 %v2143, 1.0
  %v2246 = vsub.f32 %v2145, 1.0
  %v2247 = vsub.f32 %v2147, 1.0
  %v2248 = vsub.f32 %v2149, 1.0
  %v2249 = vsub.f32 %v2151, 1.0
  %v2250 = vsub.f32 %v2153, 1.0
  %v2251 = vsub.f32 %v2155, 1.0
  %v2252 = vsub.f32 %v2157, 1.0
  %v2253 = vsub.f32 %v2159, 1.0
  %v2254 = vsub.f32 %v2161, 1.0
  %v2255 = vsub.f32 %v2163, 1.0
  %v2256 = vsub.f32 %v2165, 1.0
  %v2257 = vsub.f32 %v2167, 1.0
  %v2258 = vsub.f32 %v2169, 1.0
  %v2259 = vsub.f32 %v2171, 1.0
  %v2260 = vsub.f32 %v2173, 1.0
  %v2261 = vsub.f32 %v2175, 1.0
  %v2262 = vsub.f32 %v2177, 1.0
  %v2263 = vsub.f32 %v2179, 1.0
  %v2264 = vsub.f32 %v2181, 1.0
  %v2265 = vsub.f32 %v2183, 1.0
  %v2266 = vsub.f32 %v2185, 1.0
  %v2267 = vsub.f32 %v2187, 1.0
  %v2268 = vsub.f32 %v2189, 1.0
  %v2269 = vsub.f32 %v2191, 1.0
  %v2270 = vsub.f32 %v2193, 1.0
  %v2271 = vsub.f32 %v2195, 1.0
  %v2272 = vsub.f32 %v2197, 1.0
  %v2273 = vsub.f32 %v2199, 1.0
  %v2274 = vsub.f32 %v2201, 1.0
  %v2275 = vsub.f32 %v2203, 1.0
  %v2276 = vsub.f32 %v2205, 1.0
  %v2277 = vsub.f32 %v2207, 1.0
  %v2278 = vsub.f32 %v2209, 1.0
  %v2279 = vsub.f32 %v2211, 1.0
  %v2280 = vsel %vm1940, %v1738, %v2212
  %v2281 = vsel %vm1941, %v1740, %v2213
  %v2282 = vsel %vm1942, %v1744, %v2214
  %v2283 = vsel %vm1943, %v1746, %v2215
  %v2284 = vsel %vm1944, %v1750, %v2216
  %v2285 = vsel %vm1945, %v1752, %v2217
  %v2286 = vsel %vm1946, %v1756, %v2218
  %v2287 = vsel %vm1947, %v1758, %v2219
  %v2288 = vsel %vm1948, %v1762, %v2220
  %v2289 = vsel %vm1949, %v1764, %v2221
  %v2290 = vsel %vm1950, %v1768, %v2222
  %v2291 = vsel %vm1951, %v1770, %v2223
  %v2292 = vsel %vm1952, %v1774, %v2224
  %v2293 = vsel %vm1953, %v1776, %v2225
  %v2294 = vsel %vm1954, %v1780, %v2226
  %v2295 = vsel %vm1955, %v1782, %v2227
  %v2296 = vsel %vm1956, %v1786, %v2228
  %v2297 = vsel %vm1957, %v1788, %v2229
  %v2298 = vsel %vm1958, %v1792, %v2230
  %v2299 = vsel %vm1959, %v1794, %v2231
  %v2300 = vsel %vm1960, %v1798, %v2232
  %v2301 = vsel %vm1961, %v1800, %v2233
  %v2302 = vsel %vm1962, %v1804, %v2234
  %v2303 = vsel %vm1963, %v1806, %v2235
  %v2304 = vsel %vm1964, %v1810, %v2236
  %v2305 = vsel %vm1965, %v1812, %v2237
  %v2306 = vsel %vm1966, %v1816, %v2238
  %v2307 = vsel %vm1967, %v1818, %v2239
  %v2308 = vsel %vm1968, %v1822, %v2240
  %v2309 = vsel %vm1969, %v1824, %v2241
  %v2310 = vsel %vm1970, %v1828, %v2242
  %v2311 = vsel %vm1971, %v1830, %v2243
  %v2312 = vsel %vm1972, %v1834, %v2244
  %v2313 = vsel %vm1973, %v1836, %v2245
  %v2314 = vsel %vm1974, %v1840, %v2246
  %v2315 = vsel %vm1975, %v1842, %v2247
  %v2316 = vsel %vm1976, %v1846, %v2248
  %v2317 = vsel %vm1977, %v1848, %v2249
  %v2318 = vsel %vm1978, %v1852, %v2250
  %v2319 = vsel %vm1979, %v1854, %v2251
  %v2320 = vsel %vm1980, %v1858, %v2252
  %v2321 = vsel %vm1981, %v1860, %v2253
  %v2322 = vsel %vm1982, %v1864, %v2254
  %v2323 = vsel %vm1983, %v1866, %v2255
  %v2324 = vsel %vm1984, %v1870, %v2256
  %v2325 = vsel %vm1985, %v1872, %v2257
  %v2326 = vsel %vm1986, %v1876, %v2258
  %v2327 = vsel %vm1987, %v1878, %v2259
  %v2328 = vsel %vm1988, %v1882, %v2260
  %v2329 = vsel %vm1989, %v1884, %v2261
  %v2330 = vsel %vm1990, %v1888, %v2262
  %v2331 = vsel %vm1991, %v1890, %v2263
  %v2332 = vsel %vm1992, %v1894, %v2264
  %v2333 = vsel %vm1993, %v1896, %v2265
  %v2334 = vsel %vm1994, %v1900, %v2266
  %v2335 = vsel %vm1995, %v1902, %v2267
  %v2336 = vsel %vm1996, %v1906, %v2268
  %v2337 = vsel %vm1997, %v1908, %v2269
  %v2338 = vsel %vm1998, %v1912, %v2270
  %v2339 = vsel %vm1999, %v1914, %v2271
  %v2340 = vsel %vm2000, %v1918, %v2272
  %v2341 = vsel %vm2001, %v1920, %v2273
  %v2342 = vsel %vm2002, %v1924, %v2274
  %v2343 = vsel %vm2003, %v1926, %v2275
  %v2344 = vsel %vm2004, %v1930, %v2276
  %v2345 = vsel %vm2005, %v1932, %v2277
  %v2346 = vsel %vm2006, %v1936, %v2278
  %v2347 = vsel %vm2007, %v1938, %v2279
  %s2348 = scalar_lea.vmem %s3, 512
  %v2349 = vld [vmem:[%s2348] sm:$0xff]
  %v2350 = vld [vmem:[%s2348 + $0x8] sm:$0xff]
  %v2351 = vld [vmem:[%s2348 + $0x10] sm:$0xff]
  %v2352 = vld [vmem:[%s2348 + $0x18] sm:$0xff]
  %v2353 = vld [vmem:[%s2348 + $0x20] sm:$0xff]
  %v2354 = vld [vmem:[%s2348 + $0x28] sm:$0xff]
  %v2355 = vld [vmem:[%s2348 + $0x30] sm:$0xff]
  %v2356 = vld [vmem:[%s2348 + $0x38] sm:$0xff]
  %v2357 = vld [vmem:[%s2348 + $0x40] sm:$0xff]
  %v2358 = vld [vmem:[%s2348 + $0x48] sm:$0xff]
  %v2359 = vld [vmem:[%s2348 + $0x50] sm:$0xff]
  %v2360 = vld [vmem:[%s2348 + $0x58] sm:$0xff]
  %v2361 = vld [vmem:[%s2348 + $0x60] sm:$0xff]
  %v2362 = vld [vmem:[%s2348 + $0x68] sm:$0xff]
  %v2363 = vld [vmem:[%s2348 + $0x70] sm:$0xff]
  %v2364 = vld [vmem:[%s2348 + $0x78] sm:$0xff]
  %v2365 = vld [vmem:[%s2348 + $0x80] sm:$0xff]
  %v2366 = vld [vmem:[%s2348 + $0x88] sm:$0xff]
  %v2367 = vld [vmem:[%s2348 + $0x90] sm:$0xff]
  %v2368 = vld [vmem:[%s2348 + $0x98] sm:$0xff]
  %v2369 = vld [vmem:[%s2348 + $0xa0] sm:$0xff]
  %v2370 = vld [vmem:[%s2348 + $0xa8] sm:$0xff]
  %v2371 = vld [vmem:[%s2348 + $0xb0] sm:$0xff]
  %v2372 = vld [vmem:[%s2348 + $0xb8] sm:$0xff]
  %v2373 = vld [vmem:[%s2348 + $0xc0] sm:$0xff]
  %v2374 = vld [vmem:[%s2348 + $0xc8] sm:$0xff]
  %v2375 = vld [vmem:[%s2348 + $0xd0] sm:$0xff]
  %v2376 = vld [vmem:[%s2348 + $0xd8] sm:$0xff]
  %v2377 = vld [vmem:[%s2348 + $0xe0] sm:$0xff]
  %v2378 = vld [vmem:[%s2348 + $0xe8] sm:$0xff]
  %v2379 = vld [vmem:[%s2348 + $0xf0] sm:$0xff]
  %v2380 = vld [vmem:[%s2348 + $0xf8] sm:$0xff]
  %v2381 = vld [vmem:[%s2348 + $0x100] sm:$0xff]
  %v2382 = vld [vmem:[%s2348 + $0x108] sm:$0xff]
  %v2383 = vld [vmem:[%s2348 + $0x110] sm:$0xff]
  %v2384 = vld [vmem:[%s2348 + $0x118] sm:$0xff]
  %v2385 = vld [vmem:[%s2348 + $0x120] sm:$0xff]
  %v2386 = vld [vmem:[%s2348 + $0x128] sm:$0xff]
  %v2387 = vld [vmem:[%s2348 + $0x130] sm:$0xff]
  %v2388 = vld [vmem:[%s2348 + $0x138] sm:$0xff]
  %v2389 = vld [vmem:[%s2348 + $0x140] sm:$0xff]
  %v2390 = vld [vmem:[%s2348 + $0x148] sm:$0xff]
  %v2391 = vld [vmem:[%s2348 + $0x150] sm:$0xff]
  %v2392 = vld [vmem:[%s2348 + $0x158] sm:$0xff]
  %v2393 = vld [vmem:[%s2348 + $0x160] sm:$0xff]
  %v2394 = vld [vmem:[%s2348 + $0x168] sm:$0xff]
  %v2395 = vld [vmem:[%s2348 + $0x170] sm:$0xff]
  %v2396 = vld [vmem:[%s2348 + $0x178] sm:$0xff]
  %v2397 = vld [vmem:[%s2348 + $0x180] sm:$0xff]
  %v2398 = vld [vmem:[%s2348 + $0x188] sm:$0xff]
  %v2399 = vld [vmem:[%s2348 + $0x190] sm:$0xff]
  %v2400 = vld [vmem:[%s2348 + $0x198] sm:$0xff]
  %v2401 = vld [vmem:[%s2348 + $0x1a0] sm:$0xff]
  %v2402 = vld [vmem:[%s2348 + $0x1a8] sm:$0xff]
  %v2403 = vld [vmem:[%s2348 + $0x1b0] sm:$0xff]
  %v2404 = vld [vmem:[%s2348 + $0x1b8] sm:$0xff]
  %v2405 = vld [vmem:[%s2348 + $0x1c0] sm:$0xff]
  %v2406 = vld [vmem:[%s2348 + $0x1c8] sm:$0xff]
  %v2407 = vld [vmem:[%s2348 + $0x1d0] sm:$0xff]
  %v2408 = vld [vmem:[%s2348 + $0x1d8] sm:$0xff]
  %v2409 = vld [vmem:[%s2348 + $0x1e0] sm:$0xff]
  %v2410 = vld [vmem:[%s2348 + $0x1e8] sm:$0xff]
  %v2411 = vld [vmem:[%s2348 + $0x1f0] sm:$0xff]
  %v2412 = vld [vmem:[%s2348 + $0x1f8] sm:$0xff]
  %v2413 = vlaneseq
  %v2414 = vshrl.u32 %v2413, 7
  %v2415 = vsub.s32 2, %v2414
  %v2416 = vrot.slane %v597, %v2415
  %v2417 = vlaneseq
  %v2418 = vshrl.u32 %v2417, 7
  %v2419 = vsub.s32 2, %v2418
  %v2420 = vrot.slane %v598, %v2419
  %2421 = vmatprep.subr.mxu0 %v2350
  %2422 = vmatpush1.msra.mxu0 %v2349
  %2423 = vmatprep.subr.mxu0 %v2352
  %2424 = vmatpush1.msra.mxu0 %v2351
  %2425 = vmatprep.subr.mxu0 %v2354
  %2426 = vmatpush1.msra.mxu0 %v2353
  %2427 = vmatprep.subr.mxu0 %v2356
  %2428 = vmatpush1.msra.mxu0 %v2355
  %2429 = vmatprep.subr.mxu0 %v2358
  %2430 = vmatpush1.msra.mxu0 %v2357
  %2431 = vmatprep.subr.mxu0 %v2360
  %2432 = vmatpush1.msra.mxu0 %v2359
  %2433 = vmatprep.subr.mxu0 %v2362
  %2434 = vmatpush1.msra.mxu0 %v2361
  %2435 = vmatprep.subr.mxu0 %v2364
  %2436 = vmatpush1.msra.mxu0 %v2363
  %2437 = vmatprep.subr.mxu0 %v2366
  %2438 = vmatpush1.msra.mxu0 %v2365
  %2439 = vmatprep.subr.mxu0 %v2368
  %2440 = vmatpush1.msra.mxu0 %v2367
  %2441 = vmatprep.subr.mxu0 %v2370
  %2442 = vmatpush1.msra.mxu0 %v2369
  %2443 = vmatprep.subr.mxu0 %v2372
  %2444 = vmatpush1.msra.mxu0 %v2371
  %2445 = vmatprep.subr.mxu0 %v2374
  %2446 = vmatpush1.msra.mxu0 %v2373
  %2447 = vmatprep.subr.mxu0 %v2376
  %2448 = vmatpush1.msra.mxu0 %v2375
  %2449 = vmatprep.subr.mxu0 %v2378
  %2450 = vmatpush1.msra.mxu0 %v2377
  %2451 = vmatprep.subr.mxu0 %v2380
  %2452 = vmatpush1.msra.mxu0 %v2379
  %2453 = vmatprep.subr.mxu0 %v2382
  %2454 = vmatpush1.msra.mxu0 %v2381
  %2455 = vmatprep.subr.mxu0 %v2384
  %2456 = vmatpush1.msra.mxu0 %v2383
  %2457 = vmatprep.subr.mxu0 %v2386
  %2458 = vmatpush1.msra.mxu0 %v2385
  %2459 = vmatprep.subr.mxu0 %v2388
  %2460 = vmatpush1.msra.mxu0 %v2387
  %2461 = vmatprep.subr.mxu0 %v2390
  %2462 = vmatpush1.msra.mxu0 %v2389
  %2463 = vmatprep.subr.mxu0 %v2392
  %2464 = vmatpush1.msra.mxu0 %v2391
  %2465 = vmatprep.subr.mxu0 %v2394
  %2466 = vmatpush1.msra.mxu0 %v2393
  %2467 = vmatprep.subr.mxu0 %v2396
  %2468 = vmatpush1.msra.mxu0 %v2395
  %2469 = vmatprep.subr.mxu0 %v2398
  %2470 = vmatpush1.msra.mxu0 %v2397
  %2471 = vmatprep.subr.mxu0 %v2400
  %2472 = vmatpush1.msra.mxu0 %v2399
  %2473 = vmatprep.subr.mxu0 %v2402
  %2474 = vmatpush1.msra.mxu0 %v2401
  %2475 = vmatprep.subr.mxu0 %v2404
  %2476 = vmatpush1.msra.mxu0 %v2403
  %2477 = vmatprep.subr.mxu0 %v2406
  %2478 = vmatpush1.msra.mxu0 %v2405
  %2479 = vmatprep.subr.mxu0 %v2408
  %2480 = vmatpush1.msra.mxu0 %v2407
  %2481 = vmatprep.subr.mxu0 %v2410
  %2482 = vmatpush1.msra.mxu0 %v2409
  %2483 = vmatprep.subr.mxu0 %v2412
  %2484 = vmatpush1.msra.mxu0 %v2411
  %2485 = vmatprep.mubr.f32.mxu0 %v2281
  %2486 = vmatmul.mubr.f32.gmra.mrb[0].mxu0 %v2280
  %v2487 = vpop.f32.mrb[0].mxu0
  %v2488 = vadd.f32 %v2416, %v2487
  %v2489 = vpop.f32.mrb[0].mxu0
  %v2490 = vadd.f32 %v2420, %v2489
  %2491 = vmatprep.mubr.f32.mxu0 %v2283
  %2492 = vmatmul.mubr.f32.gmra.mrb[0].mxu0 %v2282
  %v2493 = vpop.f32.mrb[0].mxu0
  %v2494 = vadd.f32 %v2416, %v2493
  %v2495 = vpop.f32.mrb[0].mxu0
  %v2496 = vadd.f32 %v2420, %v2495
  %2497 = vmatprep.mubr.f32.mxu0 %v2285
  %2498 = vmatmul.mubr.f32.gmra.mrb[0].mxu0 %v2284
  %v2499 = vpop.f32.mrb[0].mxu0
  %v2500 = vadd.f32 %v2416, %v2499
  %v2501 = vpop.f32.mrb[0].mxu0
  %v2502 = vadd.f32 %v2420, %v2501
  %2503 = vmatprep.mubr.f32.mxu0 %v2287
  %2504 = vmatmul.mubr.f32.gmra.mrb[0].mxu0 %v2286
  %v2505 = vpop.f32.mrb[0].mxu0
  %v2506 = vadd.f32 %v2416, %v2505
  %v2507 = vpop.f32.mrb[0].mxu0
  %v2508 = vadd.f32 %v2420, %v2507
  %2509 = vmatprep.mubr.f32.mxu0 %v2289
  %2510 = vmatmul.mubr.f32.gmra.mrb[0].mxu0 %v2288
  %v2511 = vpop.f32.mrb[0].mxu0
  %v2512 = vadd.f32 %v2416, %v2511
  %v2513 = vpop.f32.mrb[0].mxu0
  %v2514 = vadd.f32 %v2420, %v2513
  %2515 = vmatprep.mubr.f32.mxu0 %v2291
  %2516 = vmatmul.mubr.f32.gmra.mrb[0].mxu0 %v2290
  %v2517 = vpop.f32.mrb[0].mxu0
  %v2518 = vadd.f32 %v2416, %v2517
  %v2519 = vpop.f32.mrb[0].mxu0
  %v2520 = vadd.f32 %v2420, %v2519
  %2521 = vmatprep.mubr.f32.mxu0 %v2293
  %2522 = vmatmul.mubr.f32.gmra.mrb[0].mxu0 %v2292
  %v2523 = vpop.f32.mrb[0].mxu0
  %v2524 = vadd.f32 %v2416, %v2523
  %v2525 = vpop.f32.mrb[0].mxu0
  %v2526 = vadd.f32 %v2420, %v2525
  %2527 = vmatprep.mubr.f32.mxu0 %v2295
  %2528 = vmatmul.mubr.f32.gmra.mrb[0].mxu0 %v2294
  %v2529 = vpop.f32.mrb[0].mxu0
  %v2530 = vadd.f32 %v2416, %v2529
  %v2531 = vpop.f32.mrb[0].mxu0
  %v2532 = vadd.f32 %v2420, %v2531
  %2533 = vmatprep.mubr.f32.mxu0 %v2297
  %2534 = vmatmul.mubr.f32.gmra.mrb[0].mxu0 %v2296
  %v2535 = vpop.f32.mrb[0].mxu0
  %v2536 = vadd.f32 %v2416, %v2535
  %v2537 = vpop.f32.mrb[0].mxu0
  %v2538 = vadd.f32 %v2420, %v2537
  %2539 = vmatprep.mubr.f32.mxu0 %v2299
  %2540 = vmatmul.mubr.f32.gmra.mrb[0].mxu0 %v2298
  %v2541 = vpop.f32.mrb[0].mxu0
  %v2542 = vadd.f32 %v2416, %v2541
  %v2543 = vpop.f32.mrb[0].mxu0
  %v2544 = vadd.f32 %v2420, %v2543
  %2545 = vmatprep.mubr.f32.mxu0 %v2301
  %2546 = vmatmul.mubr.f32.gmra.mrb[0].mxu0 %v2300
  %v2547 = vpop.f32.mrb[0].mxu0
  %v2548 = vadd.f32 %v2416, %v2547
  %v2549 = vpop.f32.mrb[0].mxu0
  %v2550 = vadd.f32 %v2420, %v2549
  %2551 = vmatprep.mubr.f32.mxu0 %v2303
  %2552 = vmatmul.mubr.f32.gmra.mrb[0].mxu0 %v2302
  %v2553 = vpop.f32.mrb[0].mxu0
  %v2554 = vadd.f32 %v2416, %v2553
  %v2555 = vpop.f32.mrb[0].mxu0
  %v2556 = vadd.f32 %v2420, %v2555
  %2557 = vmatprep.mubr.f32.mxu0 %v2305
  %2558 = vmatmul.mubr.f32.gmra.mrb[0].mxu0 %v2304
  %v2559 = vpop.f32.mrb[0].mxu0
  %v2560 = vadd.f32 %v2416, %v2559
  %v2561 = vpop.f32.mrb[0].mxu0
  %v2562 = vadd.f32 %v2420, %v2561
  %2563 = vmatprep.mubr.f32.mxu0 %v2307
  %2564 = vmatmul.mubr.f32.gmra.mrb[0].mxu0 %v2306
  %v2565 = vpop.f32.mrb[0].mxu0
  %v2566 = vadd.f32 %v2416, %v2565
  %v2567 = vpop.f32.mrb[0].mxu0
  %v2568 = vadd.f32 %v2420, %v2567
  %2569 = vmatprep.mubr.f32.mxu0 %v2309
  %2570 = vmatmul.mubr.f32.gmra.mrb[0].mxu0 %v2308
  %v2571 = vpop.f32.mrb[0].mxu0
  %v2572 = vadd.f32 %v2416, %v2571
  %v2573 = vpop.f32.mrb[0].mxu0
  %v2574 = vadd.f32 %v2420, %v2573
  %2575 = vmatprep.mubr.f32.mxu0 %v2311
  %2576 = vmatmul.mubr.f32.gmra.mrb[0].mxu0 %v2310
  %v2577 = vpop.f32.mrb[0].mxu0
  %v2578 = vadd.f32 %v2416, %v2577
  %v2579 = vpop.f32.mrb[0].mxu0
  %v2580 = vadd.f32 %v2420, %v2579
  %2581 = vmatprep.mubr.f32.mxu0 %v2313
  %2582 = vmatmul.mubr.f32.gmra.mrb[0].mxu0 %v2312
  %v2583 = vpop.f32.mrb[0].mxu0
  %v2584 = vadd.f32 %v2416, %v2583
  %v2585 = vpop.f32.mrb[0].mxu0
  %v2586 = vadd.f32 %v2420, %v2585
  %2587 = vmatprep.mubr.f32.mxu0 %v2315
  %2588 = vmatmul.mubr.f32.gmra.mrb[0].mxu0 %v2314
  %v2589 = vpop.f32.mrb[0].mxu0
  %v2590 = vadd.f32 %v2416, %v2589
  %v2591 = vpop.f32.mrb[0].mxu0
  %v2592 = vadd.f32 %v2420, %v2591
  %2593 = vmatprep.mubr.f32.mxu0 %v2317
  %2594 = vmatmul.mubr.f32.gmra.mrb[0].mxu0 %v2316
  %v2595 = vpop.f32.mrb[0].mxu0
  %v2596 = vadd.f32 %v2416, %v2595
  %v2597 = vpop.f32.mrb[0].mxu0
  %v2598 = vadd.f32 %v2420, %v2597
  %2599 = vmatprep.mubr.f32.mxu0 %v2319
  %2600 = vmatmul.mubr.f32.gmra.mrb[0].mxu0 %v2318
  %v2601 = vpop.f32.mrb[0].mxu0
  %v2602 = vadd.f32 %v2416, %v2601
  %v2603 = vpop.f32.mrb[0].mxu0
  %v2604 = vadd.f32 %v2420, %v2603
  %2605 = vmatprep.mubr.f32.mxu0 %v2321
  %2606 = vmatmul.mubr.f32.gmra.mrb[0].mxu0 %v2320
  %v2607 = vpop.f32.mrb[0].mxu0
  %v2608 = vadd.f32 %v2416, %v2607
  %v2609 = vpop.f32.mrb[0].mxu0
  %v2610 = vadd.f32 %v2420, %v2609
  %2611 = vmatprep.mubr.f32.mxu0 %v2323
  %2612 = vmatmul.mubr.f32.gmra.mrb[0].mxu0 %v2322
  %v2613 = vpop.f32.mrb[0].mxu0
  %v2614 = vadd.f32 %v2416, %v2613
  %v2615 = vpop.f32.mrb[0].mxu0
  %v2616 = vadd.f32 %v2420, %v2615
  %2617 = vmatprep.mubr.f32.mxu0 %v2325
  %2618 = vmatmul.mubr.f32.gmra.mrb[0].mxu0 %v2324
  %v2619 = vpop.f32.mrb[0].mxu0
  %v2620 = vadd.f32 %v2416, %v2619
  %v2621 = vpop.f32.mrb[0].mxu0
  %v2622 = vadd.f32 %v2420, %v2621
  %2623 = vmatprep.mubr.f32.mxu0 %v2327
  %2624 = vmatmul.mubr.f32.gmra.mrb[0].mxu0 %v2326
  %v2625 = vpop.f32.mrb[0].mxu0
  %v2626 = vadd.f32 %v2416, %v2625
  %v2627 = vpop.f32.mrb[0].mxu0
  %v2628 = vadd.f32 %v2420, %v2627
  %2629 = vmatprep.mubr.f32.mxu0 %v2329
  %2630 = vmatmul.mubr.f32.gmra.mrb[0].mxu0 %v2328
  %v2631 = vpop.f32.mrb[0].mxu0
  %v2632 = vadd.f32 %v2416, %v2631
  %v2633 = vpop.f32.mrb[0].mxu0
  %v2634 = vadd.f32 %v2420, %v2633
  %2635 = vmatprep.mubr.f32.mxu0 %v2331
  %2636 = vmatmul.mubr.f32.gmra.mrb[0].mxu0 %v2330
  %v2637 = vpop.f32.mrb[0].mxu0
  %v2638 = vadd.f32 %v2416, %v2637
  %v2639 = vpop.f32.mrb[0].mxu0
  %v2640 = vadd.f32 %v2420, %v2639
  %2641 = vmatprep.mubr.f32.mxu0 %v2333
  %2642 = vmatmul.mubr.f32.gmra.mrb[0].mxu0 %v2332
  %v2643 = vpop.f32.mrb[0].mxu0
  %v2644 = vadd.f32 %v2416, %v2643
  %v2645 = vpop.f32.mrb[0].mxu0
  %v2646 = vadd.f32 %v2420, %v2645
  %2647 = vmatprep.mubr.f32.mxu0 %v2335
  %2648 = vmatmul.mubr.f32.gmra.mrb[0].mxu0 %v2334
  %v2649 = vpop.f32.mrb[0].mxu0
  %v2650 = vadd.f32 %v2416, %v2649
  %v2651 = vpop.f32.mrb[0].mxu0
  %v2652 = vadd.f32 %v2420, %v2651
  %2653 = vmatprep.mubr.f32.mxu0 %v2337
  %2654 = vmatmul.mubr.f32.gmra.mrb[0].mxu0 %v2336
  %v2655 = vpop.f32.mrb[0].mxu0
  %v2656 = vadd.f32 %v2416, %v2655
  %v2657 = vpop.f32.mrb[0].mxu0
  %v2658 = vadd.f32 %v2420, %v2657
  %2659 = vmatprep.mubr.f32.mxu0 %v2339
  %2660 = vmatmul.mubr.f32.gmra.mrb[0].mxu0 %v2338
  %v2661 = vpop.f32.mrb[0].mxu0
  %v2662 = vadd.f32 %v2416, %v2661
  %v2663 = vpop.f32.mrb[0].mxu0
  %v2664 = vadd.f32 %v2420, %v2663
  %2665 = vmatprep.mubr.f32.mxu0 %v2341
  %2666 = vmatmul.mubr.f32.gmra.mrb[0].mxu0 %v2340
  %v2667 = vpop.f32.mrb[0].mxu0
  %v2668 = vadd.f32 %v2416, %v2667
  %v2669 = vpop.f32.mrb[0].mxu0
  %v2670 = vadd.f32 %v2420, %v2669
  %2671 = vmatprep.mubr.f32.mxu0 %v2343
  %2672 = vmatmul.mubr.f32.gmra.mrb[0].mxu0 %v2342
  %v2673 = vpop.f32.mrb[0].mxu0
  %v2674 = vadd.f32 %v2416, %v2673
  %v2675 = vpop.f32.mrb[0].mxu0
  %v2676 = vadd.f32 %v2420, %v2675
  %2677 = vmatprep.mubr.f32.mxu0 %v2345
  %2678 = vmatmul.mubr.f32.gmra.mrb[0].mxu0 %v2344
  %v2679 = vpop.f32.mrb[0].mxu0
  %v2680 = vadd.f32 %v2416, %v2679
  %v2681 = vpop.f32.mrb[0].mxu0
  %v2682 = vadd.f32 %v2420, %v2681
  %2683 = vmatprep.mubr.f32.mxu0 %v2347
  %2684 = vmatmul.mubr.f32.gmra.mrb[0].mxu0 %v2346
  %v2685 = vpop.f32.mrb[0].mxu0
  %v2686 = vadd.f32 %v2416, %v2685
  %v2687 = vpop.f32.mrb[0].mxu0
  %v2688 = vadd.f32 %v2420, %v2687
  %2689 = vdwg.mxu0
  %vm2690 = vcmp.gt.f32.partialorder %v2488, 0.0
  %vm2691 = vcmp.gt.f32.partialorder %v2490, 0.0
  %vm2692 = vcmp.gt.f32.partialorder %v2494, 0.0
  %vm2693 = vcmp.gt.f32.partialorder %v2496, 0.0
  %vm2694 = vcmp.gt.f32.partialorder %v2500, 0.0
  %vm2695 = vcmp.gt.f32.partialorder %v2502, 0.0
  %vm2696 = vcmp.gt.f32.partialorder %v2506, 0.0
  %vm2697 = vcmp.gt.f32.partialorder %v2508, 0.0
  %vm2698 = vcmp.gt.f32.partialorder %v2512, 0.0
  %vm2699 = vcmp.gt.f32.partialorder %v2514, 0.0
  %vm2700 = vcmp.gt.f32.partialorder %v2518, 0.0
  %vm2701 = vcmp.gt.f32.partialorder %v2520, 0.0
  %vm2702 = vcmp.gt.f32.partialorder %v2524, 0.0
  %vm2703 = vcmp.gt.f32.partialorder %v2526, 0.0
  %vm2704 = vcmp.gt.f32.partialorder %v2530, 0.0
  %vm2705 = vcmp.gt.f32.partialorder %v2532, 0.0
  %vm2706 = vcmp.gt.f32.partialorder %v2536, 0.0
  %vm2707 = vcmp.gt.f32.partialorder %v2538, 0.0
  %vm2708 = vcmp.gt.f32.partialorder %v2542, 0.0
  %vm2709 = vcmp.gt.f32.partialorder %v2544, 0.0
  %vm2710 = vcmp.gt.f32.partialorder %v2548, 0.0
  %vm2711 = vcmp.gt.f32.partialorder %v2550, 0.0
  %vm2712 = vcmp.gt.f32.partialorder %v2554, 0.0
  %vm2713 = vcmp.gt.f32.partialorder %v2556, 0.0
  %vm2714 = vcmp.gt.f32.partialorder %v2560, 0.0
  %vm2715 = vcmp.gt.f32.partialorder %v2562, 0.0
  %vm2716 = vcmp.gt.f32.partialorder %v2566, 0.0
  %vm2717 = vcmp.gt.f32.partialorder %v2568, 0.0
  %vm2718 = vcmp.gt.f32.partialorder %v2572, 0.0
  %vm2719 = vcmp.gt.f32.partialorder %v2574, 0.0
  %vm2720 = vcmp.gt.f32.partialorder %v2578, 0.0
  %vm2721 = vcmp.gt.f32.partialorder %v2580, 0.0
  %vm2722 = vcmp.gt.f32.partialorder %v2584, 0.0
  %vm2723 = vcmp.gt.f32.partialorder %v2586, 0.0
  %vm2724 = vcmp.gt.f32.partialorder %v2590, 0.0
  %vm2725 = vcmp.gt.f32.partialorder %v2592, 0.0
  %vm2726 = vcmp.gt.f32.partialorder %v2596, 0.0
  %vm2727 = vcmp.gt.f32.partialorder %v2598, 0.0
  %vm2728 = vcmp.gt.f32.partialorder %v2602, 0.0
  %vm2729 = vcmp.gt.f32.partialorder %v2604, 0.0
  %vm2730 = vcmp.gt.f32.partialorder %v2608, 0.0
  %vm2731 = vcmp.gt.f32.partialorder %v2610, 0.0
  %vm2732 = vcmp.gt.f32.partialorder %v2614, 0.0
  %vm2733 = vcmp.gt.f32.partialorder %v2616, 0.0
  %vm2734 = vcmp.gt.f32.partialorder %v2620, 0.0
  %vm2735 = vcmp.gt.f32.partialorder %v2622, 0.0
  %vm2736 = vcmp.gt.f32.partialorder %v2626, 0.0
  %vm2737 = vcmp.gt.f32.partialorder %v2628, 0.0
  %vm2738 = vcmp.gt.f32.partialorder %v2632, 0.0
  %vm2739 = vcmp.gt.f32.partialorder %v2634, 0.0
  %vm2740 = vcmp.gt.f32.partialorder %v2638, 0.0
  %vm2741 = vcmp.gt.f32.partialorder %v2640, 0.0
  %vm2742 = vcmp.gt.f32.partialorder %v2644, 0.0
  %vm2743 = vcmp.gt.f32.partialorder %v2646, 0.0
  %vm2744 = vcmp.gt.f32.partialorder %v2650, 0.0
  %vm2745 = vcmp.gt.f32.partialorder %v2652, 0.0
  %vm2746 = vcmp.gt.f32.partialorder %v2656, 0.0
  %vm2747 = vcmp.gt.f32.partialorder %v2658, 0.0
  %vm2748 = vcmp.gt.f32.partialorder %v2662, 0.0
  %vm2749 = vcmp.gt.f32.partialorder %v2664, 0.0
  %vm2750 = vcmp.gt.f32.partialorder %v2668, 0.0
  %vm2751 = vcmp.gt.f32.partialorder %v2670, 0.0
  %vm2752 = vcmp.gt.f32.partialorder %v2674, 0.0
  %vm2753 = vcmp.gt.f32.partialorder %v2676, 0.0
  %vm2754 = vcmp.gt.f32.partialorder %v2680, 0.0
  %vm2755 = vcmp.gt.f32.partialorder %v2682, 0.0
  %vm2756 = vcmp.gt.f32.partialorder %v2686, 0.0
  %vm2757 = vcmp.gt.f32.partialorder %v2688, 0.0
  %v2758 = vmin.f32 %v2488, 0.0
  %v2759 = vmin.f32 %v2490, 0.0
  %v2760 = vmin.f32 %v2494, 0.0
  %v2761 = vmin.f32 %v2496, 0.0
  %v2762 = vmin.f32 %v2500, 0.0
  %v2763 = vmin.f32 %v2502, 0.0
  %v2764 = vmin.f32 %v2506, 0.0
  %v2765 = vmin.f32 %v2508, 0.0
  %v2766 = vmin.f32 %v2512, 0.0
  %v2767 = vmin.f32 %v2514, 0.0
  %v2768 = vmin.f32 %v2518, 0.0
  %v2769 = vmin.f32 %v2520, 0.0
  %v2770 = vmin.f32 %v2524, 0.0
  %v2771 = vmin.f32 %v2526, 0.0
  %v2772 = vmin.f32 %v2530, 0.0
  %v2773 = vmin.f32 %v2532, 0.0
  %v2774 = vmin.f32 %v2536, 0.0
  %v2775 = vmin.f32 %v2538, 0.0
  %v2776 = vmin.f32 %v2542, 0.0
  %v2777 = vmin.f32 %v2544, 0.0
  %v2778 = vmin.f32 %v2548, 0.0
  %v2779 = vmin.f32 %v2550, 0.0
  %v2780 = vmin.f32 %v2554, 0.0
  %v2781 = vmin.f32 %v2556, 0.0
  %v2782 = vmin.f32 %v2560, 0.0
  %v2783 = vmin.f32 %v2562, 0.0
  %v2784 = vmin.f32 %v2566, 0.0
  %v2785 = vmin.f32 %v2568, 0.0
  %v2786 = vmin.f32 %v2572, 0.0
  %v2787 = vmin.f32 %v2574, 0.0
  %v2788 = vmin.f32 %v2578, 0.0
  %v2789 = vmin.f32 %v2580, 0.0
  %v2790 = vmin.f32 %v2584, 0.0
  %v2791 = vmin.f32 %v2586, 0.0
  %v2792 = vmin.f32 %v2590, 0.0
  %v2793 = vmin.f32 %v2592, 0.0
  %v2794 = vmin.f32 %v2596, 0.0
  %v2795 = vmin.f32 %v2598, 0.0
  %v2796 = vmin.f32 %v2602, 0.0
  %v2797 = vmin.f32 %v2604, 0.0
  %v2798 = vmin.f32 %v2608, 0.0
  %v2799 = vmin.f32 %v2610, 0.0
  %v2800 = vmin.f32 %v2614, 0.0
  %v2801 = vmin.f32 %v2616, 0.0
  %v2802 = vmin.f32 %v2620, 0.0
  %v2803 = vmin.f32 %v2622, 0.0
  %v2804 = vmin.f32 %v2626, 0.0
  %v2805 = vmin.f32 %v2628, 0.0
  %v2806 = vmin.f32 %v2632, 0.0
  %v2807 = vmin.f32 %v2634, 0.0
  %v2808 = vmin.f32 %v2638, 0.0
  %v2809 = vmin.f32 %v2640, 0.0
  %v2810 = vmin.f32 %v2644, 0.0
  %v2811 = vmin.f32 %v2646, 0.0
  %v2812 = vmin.f32 %v2650, 0.0
  %v2813 = vmin.f32 %v2652, 0.0
  %v2814 = vmin.f32 %v2656, 0.0
  %v2815 = vmin.f32 %v2658, 0.0
  %v2816 = vmin.f32 %v2662, 0.0
  %v2817 = vmin.f32 %v2664, 0.0
  %v2818 = vmin.f32 %v2668, 0.0
  %v2819 = vmin.f32 %v2670, 0.0
  %v2820 = vmin.f32 %v2674, 0.0
  %v2821 = vmin.f32 %v2676, 0.0
  %v2822 = vmin.f32 %v2680, 0.0
  %v2823 = vmin.f32 %v2682, 0.0
  %v2824 = vmin.f32 %v2686, 0.0
  %v2825 = vmin.f32 %v2688, 0.0
  %v2826 = vmul.f32 %v2758, 1.442695
  %v2827 = vpow.pop %v2826
  %v2828 = vmul.f32 %v2759, 1.442695
  %v2829 = vpow.pop %v2828
  %v2830 = vmul.f32 %v2760, 1.442695
  %v2831 = vpow.pop %v2830
  %v2832 = vmul.f32 %v2761, 1.442695
  %v2833 = vpow.pop %v2832
  %v2834 = vmul.f32 %v2762, 1.442695
  %v2835 = vpow.pop %v2834
  %v2836 = vmul.f32 %v2763, 1.442695
  %v2837 = vpow.pop %v2836
  %v2838 = vmul.f32 %v2764, 1.442695
  %v2839 = vpow.pop %v2838
  %v2840 = vmul.f32 %v2765, 1.442695
  %v2841 = vpow.pop %v2840
  %v2842 = vmul.f32 %v2766, 1.442695
  %v2843 = vpow.pop %v2842
  %v2844 = vmul.f32 %v2767, 1.442695
  %v2845 = vpow.pop %v2844
  %v2846 = vmul.f32 %v2768, 1.442695
  %v2847 = vpow.pop %v2846
  %v2848 = vmul.f32 %v2769, 1.442695
  %v2849 = vpow.pop %v2848
  %v2850 = vmul.f32 %v2770, 1.442695
  %v2851 = vpow.pop %v2850
  %v2852 = vmul.f32 %v2771, 1.442695
  %v2853 = vpow.pop %v2852
  %v2854 = vmul.f32 %v2772, 1.442695
  %v2855 = vpow.pop %v2854
  %v2856 = vmul.f32 %v2773, 1.442695
  %v2857 = vpow.pop %v2856
  %v2858 = vmul.f32 %v2774, 1.442695
  %v2859 = vpow.pop %v2858
  %v2860 = vmul.f32 %v2775, 1.442695
  %v2861 = vpow.pop %v2860
  %v2862 = vmul.f32 %v2776, 1.442695
  %v2863 = vpow.pop %v2862
  %v2864 = vmul.f32 %v2777, 1.442695
  %v2865 = vpow.pop %v2864
  %v2866 = vmul.f32 %v2778, 1.442695
  %v2867 = vpow.pop %v2866
  %v2868 = vmul.f32 %v2779, 1.442695
  %v2869 = vpow.pop %v2868
  %v2870 = vmul.f32 %v2780, 1.442695
  %v2871 = vpow.pop %v2870
  %v2872 = vmul.f32 %v2781, 1.442695
  %v2873 = vpow.pop %v2872
  %v2874 = vmul.f32 %v2782, 1.442695
  %v2875 = vpow.pop %v2874
  %v2876 = vmul.f32 %v2783, 1.442695
  %v2877 = vpow.pop %v2876
  %v2878 = vmul.f32 %v2784, 1.442695
  %v2879 = vpow.pop %v2878
  %v2880 = vmul.f32 %v2785, 1.442695
  %v2881 = vpow.pop %v2880
  %v2882 = vmul.f32 %v2786, 1.442695
  %v2883 = vpow.pop %v2882
  %v2884 = vmul.f32 %v2787, 1.442695
  %v2885 = vpow.pop %v2884
  %v2886 = vmul.f32 %v2788, 1.442695
  %v2887 = vpow.pop %v2886
  %v2888 = vmul.f32 %v2789, 1.442695
  %v2889 = vpow.pop %v2888
  %v2890 = vmul.f32 %v2790, 1.442695
  %v2891 = vpow.pop %v2890
  %v2892 = vmul.f32 %v2791, 1.442695
  %v2893 = vpow.pop %v2892
  %v2894 = vmul.f32 %v2792, 1.442695
  %v2895 = vpow.pop %v2894
  %v2896 = vmul.f32 %v2793, 1.442695
  %v2897 = vpow.pop %v2896
  %v2898 = vmul.f32 %v2794, 1.442695
  %v2899 = vpow.pop %v2898
  %v2900 = vmul.f32 %v2795, 1.442695
  %v2901 = vpow.pop %v2900
  %v2902 = vmul.f32 %v2796, 1.442695
  %v2903 = vpow.pop %v2902
  %v2904 = vmul.f32 %v2797, 1.442695
  %v2905 = vpow.pop %v2904
  %v2906 = vmul.f32 %v2798, 1.442695
  %v2907 = vpow.pop %v2906
  %v2908 = vmul.f32 %v2799, 1.442695
  %v2909 = vpow.pop %v2908
  %v2910 = vmul.f32 %v2800, 1.442695
  %v2911 = vpow.pop %v2910
  %v2912 = vmul.f32 %v2801, 1.442695
  %v2913 = vpow.pop %v2912
  %v2914 = vmul.f32 %v2802, 1.442695
  %v2915 = vpow.pop %v2914
  %v2916 = vmul.f32 %v2803, 1.442695
  %v2917 = vpow.pop %v2916
  %v2918 = vmul.f32 %v2804, 1.442695
  %v2919 = vpow.pop %v2918
  %v2920 = vmul.f32 %v2805, 1.442695
  %v2921 = vpow.pop %v2920
  %v2922 = vmul.f32 %v2806, 1.442695
  %v2923 = vpow.pop %v2922
  %v2924 = vmul.f32 %v2807, 1.442695
  %v2925 = vpow.pop %v2924
  %v2926 = vmul.f32 %v2808, 1.442695
  %v2927 = vpow.pop %v2926
  %v2928 = vmul.f32 %v2809, 1.442695
  %v2929 = vpow.pop %v2928
  %v2930 = vmul.f32 %v2810, 1.442695
  %v2931 = vpow.pop %v2930
  %v2932 = vmul.f32 %v2811, 1.442695
  %v2933 = vpow.pop %v2932
  %v2934 = vmul.f32 %v2812, 1.442695
  %v2935 = vpow.pop %v2934
  %v2936 = vmul.f32 %v2813, 1.442695
  %v2937 = vpow.pop %v2936
  %v2938 = vmul.f32 %v2814, 1.442695
  %v2939 = vpow.pop %v2938
  %v2940 = vmul.f32 %v2815, 1.442695
  %v2941 = vpow.pop %v2940
  %v2942 = vmul.f32 %v2816, 1.442695
  %v2943 = vpow.pop %v2942
  %v2944 = vmul.f32 %v2817, 1.442695
  %v2945 = vpow.pop %v2944
  %v2946 = vmul.f32 %v2818, 1.442695
  %v2947 = vpow.pop %v2946
  %v2948 = vmul.f32 %v2819, 1.442695
  %v2949 = vpow.pop %v2948
  %v2950 = vmul.f32 %v2820, 1.442695
  %v2951 = vpow.pop %v2950
  %v2952 = vmul.f32 %v2821, 1.442695
  %v2953 = vpow.pop %v2952
  %v2954 = vmul.f32 %v2822, 1.442695
  %v2955 = vpow.pop %v2954
  %v2956 = vmul.f32 %v2823, 1.442695
  %v2957 = vpow.pop %v2956
  %v2958 = vmul.f32 %v2824, 1.442695
  %v2959 = vpow.pop %v2958
  %v2960 = vmul.f32 %v2825, 1.442695
  %v2961 = vpow.pop %v2960
  %v2962 = vsub.f32 %v2827, 1.0
  %v2963 = vsub.f32 %v2829, 1.0
  %v2964 = vsub.f32 %v2831, 1.0
  %v2965 = vsub.f32 %v2833, 1.0
  %v2966 = vsub.f32 %v2835, 1.0
  %v2967 = vsub.f32 %v2837, 1.0
  %v2968 = vsub.f32 %v2839, 1.0
  %v2969 = vsub.f32 %v2841, 1.0
  %v2970 = vsub.f32 %v2843, 1.0
  %v2971 = vsub.f32 %v2845, 1.0
  %v2972 = vsub.f32 %v2847, 1.0
  %v2973 = vsub.f32 %v2849, 1.0
  %v2974 = vsub.f32 %v2851, 1.0
  %v2975 = vsub.f32 %v2853, 1.0
  %v2976 = vsub.f32 %v2855, 1.0
  %v2977 = vsub.f32 %v2857, 1.0
  %v2978 = vsub.f32 %v2859, 1.0
  %v2979 = vsub.f32 %v2861, 1.0
  %v2980 = vsub.f32 %v2863, 1.0
  %v2981 = vsub.f32 %v2865, 1.0
  %v2982 = vsub.f32 %v2867, 1.0
  %v2983 = vsub.f32 %v2869, 1.0
  %v2984 = vsub.f32 %v2871, 1.0
  %v2985 = vsub.f32 %v2873, 1.0
  %v2986 = vsub.f32 %v2875, 1.0
  %v2987 = vsub.f32 %v2877, 1.0
  %v2988 = vsub.f32 %v2879, 1.0
  %v2989 = vsub.f32 %v2881, 1.0
  %v2990 = vsub.f32 %v2883, 1.0
  %v2991 = vsub.f32 %v2885, 1.0
  %v2992 = vsub.f32 %v2887, 1.0
  %v2993 = vsub.f32 %v2889, 1.0
  %v2994 = vsub.f32 %v2891, 1.0
  %v2995 = vsub.f32 %v2893, 1.0
  %v2996 = vsub.f32 %v2895, 1.0
  %v2997 = vsub.f32 %v2897, 1.0
  %v2998 = vsub.f32 %v2899, 1.0
  %v2999 = vsub.f32 %v2901, 1.0
  %v3000 = vsub.f32 %v2903, 1.0
  %v3001 = vsub.f32 %v2905, 1.0
  %v3002 = vsub.f32 %v2907, 1.0
  %v3003 = vsub.f32 %v2909, 1.0
  %v3004 = vsub.f32 %v2911, 1.0
  %v3005 = vsub.f32 %v2913, 1.0
  %v3006 = vsub.f32 %v2915, 1.0
  %v3007 = vsub.f32 %v2917, 1.0
  %v3008 = vsub.f32 %v2919, 1.0
  %v3009 = vsub.f32 %v2921, 1.0
  %v3010 = vsub.f32 %v2923, 1.0
  %v3011 = vsub.f32 %v2925, 1.0
  %v3012 = vsub.f32 %v2927, 1.0
  %v3013 = vsub.f32 %v2929, 1.0
  %v3014 = vsub.f32 %v2931, 1.0
  %v3015 = vsub.f32 %v2933, 1.0
  %v3016 = vsub.f32 %v2935, 1.0
  %v3017 = vsub.f32 %v2937, 1.0
  %v3018 = vsub.f32 %v2939, 1.0
  %v3019 = vsub.f32 %v2941, 1.0
  %v3020 = vsub.f32 %v2943, 1.0
  %v3021 = vsub.f32 %v2945, 1.0
  %v3022 = vsub.f32 %v2947, 1.0
  %v3023 = vsub.f32 %v2949, 1.0
  %v3024 = vsub.f32 %v2951, 1.0
  %v3025 = vsub.f32 %v2953, 1.0
  %v3026 = vsub.f32 %v2955, 1.0
  %v3027 = vsub.f32 %v2957, 1.0
  %v3028 = vsub.f32 %v2959, 1.0
  %v3029 = vsub.f32 %v2961, 1.0
  %v3030 = vsel %vm2690, %v2488, %v2962
  %v3031 = vsel %vm2691, %v2490, %v2963
  %v3032 = vsel %vm2692, %v2494, %v2964
  %v3033 = vsel %vm2693, %v2496, %v2965
  %v3034 = vsel %vm2694, %v2500, %v2966
  %v3035 = vsel %vm2695, %v2502, %v2967
  %v3036 = vsel %vm2696, %v2506, %v2968
  %v3037 = vsel %vm2697, %v2508, %v2969
  %v3038 = vsel %vm2698, %v2512, %v2970
  %v3039 = vsel %vm2699, %v2514, %v2971
  %v3040 = vsel %vm2700, %v2518, %v2972
  %v3041 = vsel %vm2701, %v2520, %v2973
  %v3042 = vsel %vm2702, %v2524, %v2974
  %v3043 = vsel %vm2703, %v2526, %v2975
  %v3044 = vsel %vm2704, %v2530, %v2976
  %v3045 = vsel %vm2705, %v2532, %v2977
  %v3046 = vsel %vm2706, %v2536, %v2978
  %v3047 = vsel %vm2707, %v2538, %v2979
  %v3048 = vsel %vm2708, %v2542, %v2980
  %v3049 = vsel %vm2709, %v2544, %v2981
  %v3050 = vsel %vm2710, %v2548, %v2982
  %v3051 = vsel %vm2711, %v2550, %v2983
  %v3052 = vsel %vm2712, %v2554, %v2984
  %v3053 = vsel %vm2713, %v2556, %v2985
  %v3054 = vsel %vm2714, %v2560, %v2986
  %v3055 = vsel %vm2715, %v2562, %v2987
  %v3056 = vsel %vm2716, %v2566, %v2988
  %v3057 = vsel %vm2717, %v2568, %v2989
  %v3058 = vsel %vm2718, %v2572, %v2990
  %v3059 = vsel %vm2719, %v2574, %v2991
  %v3060 = vsel %vm2720, %v2578, %v2992
  %v3061 = vsel %vm2721, %v2580, %v2993
  %v3062 = vsel %vm2722, %v2584, %v2994
  %v3063 = vsel %vm2723, %v2586, %v2995
  %v3064 = vsel %vm2724, %v2590, %v2996
  %v3065 = vsel %vm2725, %v2592, %v2997
  %v3066 = vsel %vm2726, %v2596, %v2998
  %v3067 = vsel %vm2727, %v2598, %v2999
  %v3068 = vsel %vm2728, %v2602, %v3000
  %v3069 = vsel %vm2729, %v2604, %v3001
  %v3070 = vsel %vm2730, %v2608, %v3002
  %v3071 = vsel %vm2731, %v2610, %v3003
  %v3072 = vsel %vm2732, %v2614, %v3004
  %v3073 = vsel %vm2733, %v2616, %v3005
  %v3074 = vsel %vm2734, %v2620, %v3006
  %v3075 = vsel %vm2735, %v2622, %v3007
  %v3076 = vsel %vm2736, %v2626, %v3008
  %v3077 = vsel %vm2737, %v2628, %v3009
  %v3078 = vsel %vm2738, %v2632, %v3010
  %v3079 = vsel %vm2739, %v2634, %v3011
  %v3080 = vsel %vm2740, %v2638, %v3012
  %v3081 = vsel %vm2741, %v2640, %v3013
  %v3082 = vsel %vm2742, %v2644, %v3014
  %v3083 = vsel %vm2743, %v2646, %v3015
  %v3084 = vsel %vm2744, %v2650, %v3016
  %v3085 = vsel %vm2745, %v2652, %v3017
  %v3086 = vsel %vm2746, %v2656, %v3018
  %v3087 = vsel %vm2747, %v2658, %v3019
  %v3088 = vsel %vm2748, %v2662, %v3020
  %v3089 = vsel %vm2749, %v2664, %v3021
  %v3090 = vsel %vm2750, %v2668, %v3022
  %v3091 = vsel %vm2751, %v2670, %v3023
  %v3092 = vsel %vm2752, %v2674, %v3024
  %v3093 = vsel %vm2753, %v2676, %v3025
  %v3094 = vsel %vm2754, %v2680, %v3026
  %v3095 = vsel %vm2755, %v2682, %v3027
  %v3096 = vsel %vm2756, %v2686, %v3028
  %v3097 = vsel %vm2757, %v2688, %v3029
  %s3098 = scalar_lea.vmem %s3, 1024
  %v3099 = vld [vmem:[%s3098] sm:$0xff]
  %v3100 = vld [vmem:[%s3098 + $0x8] sm:$0xff]
  %v3101 = vld [vmem:[%s3098 + $0x10] sm:$0xff]
  %v3102 = vld [vmem:[%s3098 + $0x18] sm:$0xff]
  %v3103 = vld [vmem:[%s3098 + $0x20] sm:$0xff]
  %v3104 = vld [vmem:[%s3098 + $0x28] sm:$0xff]
  %v3105 = vld [vmem:[%s3098 + $0x30] sm:$0xff]
  %v3106 = vld [vmem:[%s3098 + $0x38] sm:$0xff]
  %v3107 = vld [vmem:[%s3098 + $0x40] sm:$0xff]
  %v3108 = vld [vmem:[%s3098 + $0x48] sm:$0xff]
  %v3109 = vld [vmem:[%s3098 + $0x50] sm:$0xff]
  %v3110 = vld [vmem:[%s3098 + $0x58] sm:$0xff]
  %v3111 = vld [vmem:[%s3098 + $0x60] sm:$0xff]
  %v3112 = vld [vmem:[%s3098 + $0x68] sm:$0xff]
  %v3113 = vld [vmem:[%s3098 + $0x70] sm:$0xff]
  %v3114 = vld [vmem:[%s3098 + $0x78] sm:$0xff]
  %v3115 = vld [vmem:[%s3098 + $0x80] sm:$0xff]
  %v3116 = vld [vmem:[%s3098 + $0x88] sm:$0xff]
  %v3117 = vld [vmem:[%s3098 + $0x90] sm:$0xff]
  %v3118 = vld [vmem:[%s3098 + $0x98] sm:$0xff]
  %v3119 = vld [vmem:[%s3098 + $0xa0] sm:$0xff]
  %v3120 = vld [vmem:[%s3098 + $0xa8] sm:$0xff]
  %v3121 = vld [vmem:[%s3098 + $0xb0] sm:$0xff]
  %v3122 = vld [vmem:[%s3098 + $0xb8] sm:$0xff]
  %v3123 = vld [vmem:[%s3098 + $0xc0] sm:$0xff]
  %v3124 = vld [vmem:[%s3098 + $0xc8] sm:$0xff]
  %v3125 = vld [vmem:[%s3098 + $0xd0] sm:$0xff]
  %v3126 = vld [vmem:[%s3098 + $0xd8] sm:$0xff]
  %v3127 = vld [vmem:[%s3098 + $0xe0] sm:$0xff]
  %v3128 = vld [vmem:[%s3098 + $0xe8] sm:$0xff]
  %v3129 = vld [vmem:[%s3098 + $0xf0] sm:$0xff]
  %v3130 = vld [vmem:[%s3098 + $0xf8] sm:$0xff]
  %v3131 = vld [vmem:[%s3098 + $0x100] sm:$0xff]
  %v3132 = vld [vmem:[%s3098 + $0x108] sm:$0xff]
  %v3133 = vld [vmem:[%s3098 + $0x110] sm:$0xff]
  %v3134 = vld [vmem:[%s3098 + $0x118] sm:$0xff]
  %v3135 = vld [vmem:[%s3098 + $0x120] sm:$0xff]
  %v3136 = vld [vmem:[%s3098 + $0x128] sm:$0xff]
  %v3137 = vld [vmem:[%s3098 + $0x130] sm:$0xff]
  %v3138 = vld [vmem:[%s3098 + $0x138] sm:$0xff]
  %v3139 = vld [vmem:[%s3098 + $0x140] sm:$0xff]
  %v3140 = vld [vmem:[%s3098 + $0x148] sm:$0xff]
  %v3141 = vld [vmem:[%s3098 + $0x150] sm:$0xff]
  %v3142 = vld [vmem:[%s3098 + $0x158] sm:$0xff]
  %v3143 = vld [vmem:[%s3098 + $0x160] sm:$0xff]
  %v3144 = vld [vmem:[%s3098 + $0x168] sm:$0xff]
  %v3145 = vld [vmem:[%s3098 + $0x170] sm:$0xff]
  %v3146 = vld [vmem:[%s3098 + $0x178] sm:$0xff]
  %v3147 = vld [vmem:[%s3098 + $0x180] sm:$0xff]
  %v3148 = vld [vmem:[%s3098 + $0x188] sm:$0xff]
  %v3149 = vld [vmem:[%s3098 + $0x190] sm:$0xff]
  %v3150 = vld [vmem:[%s3098 + $0x198] sm:$0xff]
  %v3151 = vld [vmem:[%s3098 + $0x1a0] sm:$0xff]
  %v3152 = vld [vmem:[%s3098 + $0x1a8] sm:$0xff]
  %v3153 = vld [vmem:[%s3098 + $0x1b0] sm:$0xff]
  %v3154 = vld [vmem:[%s3098 + $0x1b8] sm:$0xff]
  %v3155 = vld [vmem:[%s3098 + $0x1c0] sm:$0xff]
  %v3156 = vld [vmem:[%s3098 + $0x1c8] sm:$0xff]
  %v3157 = vld [vmem:[%s3098 + $0x1d0] sm:$0xff]
  %v3158 = vld [vmem:[%s3098 + $0x1d8] sm:$0xff]
  %v3159 = vld [vmem:[%s3098 + $0x1e0] sm:$0xff]
  %v3160 = vld [vmem:[%s3098 + $0x1e8] sm:$0xff]
  %v3161 = vld [vmem:[%s3098 + $0x1f0] sm:$0xff]
  %v3162 = vld [vmem:[%s3098 + $0x1f8] sm:$0xff]
  %v3163 = vlaneseq
  %v3164 = vshrl.u32 %v3163, 7
  %v3165 = vsub.s32 3, %v3164
  %v3166 = vrot.slane %v597, %v3165
  %v3167 = vlaneseq
  %v3168 = vshrl.u32 %v3167, 7
  %v3169 = vsub.s32 3, %v3168
  %v3170 = vrot.slane %v598, %v3169
  %3171 = vmatprep.subr.mxu0 %v3100
  %3172 = vmatpush1.msra.mxu0 %v3099
  %3173 = vmatprep.subr.mxu0 %v3102
  %3174 = vmatpush1.msra.mxu0 %v3101
  %3175 = vmatprep.subr.mxu0 %v3104
  %3176 = vmatpush1.msra.mxu0 %v3103
  %3177 = vmatprep.subr.mxu0 %v3106
  %3178 = vmatpush1.msra.mxu0 %v3105
  %3179 = vmatprep.subr.mxu0 %v3108
  %3180 = vmatpush1.msra.mxu0 %v3107
  %3181 = vmatprep.subr.mxu0 %v3110
  %3182 = vmatpush1.msra.mxu0 %v3109
  %3183 = vmatprep.subr.mxu0 %v3112
  %3184 = vmatpush1.msra.mxu0 %v3111
  %3185 = vmatprep.subr.mxu0 %v3114
  %3186 = vmatpush1.msra.mxu0 %v3113
  %3187 = vmatprep.subr.mxu0 %v3116
  %3188 = vmatpush1.msra.mxu0 %v3115
  %3189 = vmatprep.subr.mxu0 %v3118
  %3190 = vmatpush1.msra.mxu0 %v3117
  %3191 = vmatprep.subr.mxu0 %v3120
  %3192 = vmatpush1.msra.mxu0 %v3119
  %3193 = vmatprep.subr.mxu0 %v3122
  %3194 = vmatpush1.msra.mxu0 %v3121
  %3195 = vmatprep.subr.mxu0 %v3124
  %3196 = vmatpush1.msra.mxu0 %v3123
  %3197 = vmatprep.subr.mxu0 %v3126
  %3198 = vmatpush1.msra.mxu0 %v3125
  %3199 = vmatprep.subr.mxu0 %v3128
  %3200 = vmatpush1.msra.mxu0 %v3127
  %3201 = vmatprep.subr.mxu0 %v3130
  %3202 = vmatpush1.msra.mxu0 %v3129
  %3203 = vmatprep.subr.mxu0 %v3132
  %3204 = vmatpush1.msra.mxu0 %v3131
  %3205 = vmatprep.subr.mxu0 %v3134
  %3206 = vmatpush1.msra.mxu0 %v3133
  %3207 = vmatprep.subr.mxu0 %v3136
  %3208 = vmatpush1.msra.mxu0 %v3135
  %3209 = vmatprep.subr.mxu0 %v3138
  %3210 = vmatpush1.msra.mxu0 %v3137
  %3211 = vmatprep.subr.mxu0 %v3140
  %3212 = vmatpush1.msra.mxu0 %v3139
  %3213 = vmatprep.subr.mxu0 %v3142
  %3214 = vmatpush1.msra.mxu0 %v3141
  %3215 = vmatprep.subr.mxu0 %v3144
  %3216 = vmatpush1.msra.mxu0 %v3143
  %3217 = vmatprep.subr.mxu0 %v3146
  %3218 = vmatpush1.msra.mxu0 %v3145
  %3219 = vmatprep.subr.mxu0 %v3148
  %3220 = vmatpush1.msra.mxu0 %v3147
  %3221 = vmatprep.subr.mxu0 %v3150
  %3222 = vmatpush1.msra.mxu0 %v3149
  %3223 = vmatprep.subr.mxu0 %v3152
  %3224 = vmatpush1.msra.mxu0 %v3151
  %3225 = vmatprep.subr.mxu0 %v3154
  %3226 = vmatpush1.msra.mxu0 %v3153
  %3227 = vmatprep.subr.mxu0 %v3156
  %3228 = vmatpush1.msra.mxu0 %v3155
  %3229 = vmatprep.subr.mxu0 %v3158
  %3230 = vmatpush1.msra.mxu0 %v3157
  %3231 = vmatprep.subr.mxu0 %v3160
  %3232 = vmatpush1.msra.mxu0 %v3159
  %3233 = vmatprep.subr.mxu0 %v3162
  %3234 = vmatpush1.msra.mxu0 %v3161
  %3235 = vmatprep.mubr.f32.mxu0 %v3031
  %3236 = vmatmul.mubr.f32.gmra.mrb[0].mxu0 %v3030
  %v3237 = vpop.f32.mrb[0].mxu0
  %v3238 = vadd.f32 %v3166, %v3237
  %v3239 = vpop.f32.mrb[0].mxu0
  %v3240 = vadd.f32 %v3170, %v3239
  %3241 = vmatprep.mubr.f32.mxu0 %v3033
  %3242 = vmatmul.mubr.f32.gmra.mrb[0].mxu0 %v3032
  %v3243 = vpop.f32.mrb[0].mxu0
  %v3244 = vadd.f32 %v3166, %v3243
  %v3245 = vpop.f32.mrb[0].mxu0
  %v3246 = vadd.f32 %v3170, %v3245
  %3247 = vmatprep.mubr.f32.mxu0 %v3035
  %3248 = vmatmul.mubr.f32.gmra.mrb[0].mxu0 %v3034
  %v3249 = vpop.f32.mrb[0].mxu0
  %v3250 = vadd.f32 %v3166, %v3249
  %v3251 = vpop.f32.mrb[0].mxu0
  %v3252 = vadd.f32 %v3170, %v3251
  %3253 = vmatprep.mubr.f32.mxu0 %v3037
  %3254 = vmatmul.mubr.f32.gmra.mrb[0].mxu0 %v3036
  %v3255 = vpop.f32.mrb[0].mxu0
  %v3256 = vadd.f32 %v3166, %v3255
  %v3257 = vpop.f32.mrb[0].mxu0
  %v3258 = vadd.f32 %v3170, %v3257
  %3259 = vmatprep.mubr.f32.mxu0 %v3039
  %3260 = vmatmul.mubr.f32.gmra.mrb[0].mxu0 %v3038
  %v3261 = vpop.f32.mrb[0].mxu0
  %v3262 = vadd.f32 %v3166, %v3261
  %v3263 = vpop.f32.mrb[0].mxu0
  %v3264 = vadd.f32 %v3170, %v3263
  %3265 = vmatprep.mubr.f32.mxu0 %v3041
  %3266 = vmatmul.mubr.f32.gmra.mrb[0].mxu0 %v3040
  %v3267 = vpop.f32.mrb[0].mxu0
  %v3268 = vadd.f32 %v3166, %v3267
  %v3269 = vpop.f32.mrb[0].mxu0
  %v3270 = vadd.f32 %v3170, %v3269
  %3271 = vmatprep.mubr.f32.mxu0 %v3043
  %3272 = vmatmul.mubr.f32.gmra.mrb[0].mxu0 %v3042
  %v3273 = vpop.f32.mrb[0].mxu0
  %v3274 = vadd.f32 %v3166, %v3273
  %v3275 = vpop.f32.mrb[0].mxu0
  %v3276 = vadd.f32 %v3170, %v3275
  %3277 = vmatprep.mubr.f32.mxu0 %v3045
  %3278 = vmatmul.mubr.f32.gmra.mrb[0].mxu0 %v3044
  %v3279 = vpop.f32.mrb[0].mxu0
  %v3280 = vadd.f32 %v3166, %v3279
  %v3281 = vpop.f32.mrb[0].mxu0
  %v3282 = vadd.f32 %v3170, %v3281
  %3283 = vmatprep.mubr.f32.mxu0 %v3047
  %3284 = vmatmul.mubr.f32.gmra.mrb[0].mxu0 %v3046
  %v3285 = vpop.f32.mrb[0].mxu0
  %v3286 = vadd.f32 %v3166, %v3285
  %v3287 = vpop.f32.mrb[0].mxu0
  %v3288 = vadd.f32 %v3170, %v3287
  %3289 = vmatprep.mubr.f32.mxu0 %v3049
  %3290 = vmatmul.mubr.f32.gmra.mrb[0].mxu0 %v3048
  %v3291 = vpop.f32.mrb[0].mxu0
  %v3292 = vadd.f32 %v3166, %v3291
  %v3293 = vpop.f32.mrb[0].mxu0
  %v3294 = vadd.f32 %v3170, %v3293
  %3295 = vmatprep.mubr.f32.mxu0 %v3051
  %3296 = vmatmul.mubr.f32.gmra.mrb[0].mxu0 %v3050
  %v3297 = vpop.f32.mrb[0].mxu0
  %v3298 = vadd.f32 %v3166, %v3297
  %v3299 = vpop.f32.mrb[0].mxu0
  %v3300 = vadd.f32 %v3170, %v3299
  %3301 = vmatprep.mubr.f32.mxu0 %v3053
  %3302 = vmatmul.mubr.f32.gmra.mrb[0].mxu0 %v3052
  %v3303 = vpop.f32.mrb[0].mxu0
  %v3304 = vadd.f32 %v3166, %v3303
  %v3305 = vpop.f32.mrb[0].mxu0
  %v3306 = vadd.f32 %v3170, %v3305
  %3307 = vmatprep.mubr.f32.mxu0 %v3055
  %3308 = vmatmul.mubr.f32.gmra.mrb[0].mxu0 %v3054
  %v3309 = vpop.f32.mrb[0].mxu0
  %v3310 = vadd.f32 %v3166, %v3309
  %v3311 = vpop.f32.mrb[0].mxu0
  %v3312 = vadd.f32 %v3170, %v3311
  %3313 = vmatprep.mubr.f32.mxu0 %v3057
  %3314 = vmatmul.mubr.f32.gmra.mrb[0].mxu0 %v3056
  %v3315 = vpop.f32.mrb[0].mxu0
  %v3316 = vadd.f32 %v3166, %v3315
  %v3317 = vpop.f32.mrb[0].mxu0
  %v3318 = vadd.f32 %v3170, %v3317
  %3319 = vmatprep.mubr.f32.mxu0 %v3059
  %3320 = vmatmul.mubr.f32.gmra.mrb[0].mxu0 %v3058
  %v3321 = vpop.f32.mrb[0].mxu0
  %v3322 = vadd.f32 %v3166, %v3321
  %v3323 = vpop.f32.mrb[0].mxu0
  %v3324 = vadd.f32 %v3170, %v3323
  %3325 = vmatprep.mubr.f32.mxu0 %v3061
  %3326 = vmatmul.mubr.f32.gmra.mrb[0].mxu0 %v3060
  %v3327 = vpop.f32.mrb[0].mxu0
  %v3328 = vadd.f32 %v3166, %v3327
  %v3329 = vpop.f32.mrb[0].mxu0
  %v3330 = vadd.f32 %v3170, %v3329
  %3331 = vmatprep.mubr.f32.mxu0 %v3063
  %3332 = vmatmul.mubr.f32.gmra.mrb[0].mxu0 %v3062
  %v3333 = vpop.f32.mrb[0].mxu0
  %v3334 = vadd.f32 %v3166, %v3333
  %v3335 = vpop.f32.mrb[0].mxu0
  %v3336 = vadd.f32 %v3170, %v3335
  %3337 = vmatprep.mubr.f32.mxu0 %v3065
  %3338 = vmatmul.mubr.f32.gmra.mrb[0].mxu0 %v3064
  %v3339 = vpop.f32.mrb[0].mxu0
  %v3340 = vadd.f32 %v3166, %v3339
  %v3341 = vpop.f32.mrb[0].mxu0
  %v3342 = vadd.f32 %v3170, %v3341
  %3343 = vmatprep.mubr.f32.mxu0 %v3067
  %3344 = vmatmul.mubr.f32.gmra.mrb[0].mxu0 %v3066
  %v3345 = vpop.f32.mrb[0].mxu0
  %v3346 = vadd.f32 %v3166, %v3345
  %v3347 = vpop.f32.mrb[0].mxu0
  %v3348 = vadd.f32 %v3170, %v3347
  %3349 = vmatprep.mubr.f32.mxu0 %v3069
  %3350 = vmatmul.mubr.f32.gmra.mrb[0].mxu0 %v3068
  %v3351 = vpop.f32.mrb[0].mxu0
  %v3352 = vadd.f32 %v3166, %v3351
  %v3353 = vpop.f32.mrb[0].mxu0
  %v3354 = vadd.f32 %v3170, %v3353
  %3355 = vmatprep.mubr.f32.mxu0 %v3071
  %3356 = vmatmul.mubr.f32.gmra.mrb[0].mxu0 %v3070
  %v3357 = vpop.f32.mrb[0].mxu0
  %v3358 = vadd.f32 %v3166, %v3357
  %v3359 = vpop.f32.mrb[0].mxu0
  %v3360 = vadd.f32 %v3170, %v3359
  %3361 = vmatprep.mubr.f32.mxu0 %v3073
  %3362 = vmatmul.mubr.f32.gmra.mrb[0].mxu0 %v3072
  %v3363 = vpop.f32.mrb[0].mxu0
  %v3364 = vadd.f32 %v3166, %v3363
  %v3365 = vpop.f32.mrb[0].mxu0
  %v3366 = vadd.f32 %v3170, %v3365
  %3367 = vmatprep.mubr.f32.mxu0 %v3075
  %3368 = vmatmul.mubr.f32.gmra.mrb[0].mxu0 %v3074
  %v3369 = vpop.f32.mrb[0].mxu0
  %v3370 = vadd.f32 %v3166, %v3369
  %v3371 = vpop.f32.mrb[0].mxu0
  %v3372 = vadd.f32 %v3170, %v3371
  %3373 = vmatprep.mubr.f32.mxu0 %v3077
  %3374 = vmatmul.mubr.f32.gmra.mrb[0].mxu0 %v3076
  %v3375 = vpop.f32.mrb[0].mxu0
  %v3376 = vadd.f32 %v3166, %v3375
  %v3377 = vpop.f32.mrb[0].mxu0
  %v3378 = vadd.f32 %v3170, %v3377
  %3379 = vmatprep.mubr.f32.mxu0 %v3079
  %3380 = vmatmul.mubr.f32.gmra.mrb[0].mxu0 %v3078
  %v3381 = vpop.f32.mrb[0].mxu0
  %v3382 = vadd.f32 %v3166, %v3381
  %v3383 = vpop.f32.mrb[0].mxu0
  %v3384 = vadd.f32 %v3170, %v3383
  %3385 = vmatprep.mubr.f32.mxu0 %v3081
  %3386 = vmatmul.mubr.f32.gmra.mrb[0].mxu0 %v3080
  %v3387 = vpop.f32.mrb[0].mxu0
  %v3388 = vadd.f32 %v3166, %v3387
  %v3389 = vpop.f32.mrb[0].mxu0
  %v3390 = vadd.f32 %v3170, %v3389
  %3391 = vmatprep.mubr.f32.mxu0 %v3083
  %3392 = vmatmul.mubr.f32.gmra.mrb[0].mxu0 %v3082
  %v3393 = vpop.f32.mrb[0].mxu0
  %v3394 = vadd.f32 %v3166, %v3393
  %v3395 = vpop.f32.mrb[0].mxu0
  %v3396 = vadd.f32 %v3170, %v3395
  %3397 = vmatprep.mubr.f32.mxu0 %v3085
  %3398 = vmatmul.mubr.f32.gmra.mrb[0].mxu0 %v3084
  %v3399 = vpop.f32.mrb[0].mxu0
  %v3400 = vadd.f32 %v3166, %v3399
  %v3401 = vpop.f32.mrb[0].mxu0
  %v3402 = vadd.f32 %v3170, %v3401
  %3403 = vmatprep.mubr.f32.mxu0 %v3087
  %3404 = vmatmul.mubr.f32.gmra.mrb[0].mxu0 %v3086
  %v3405 = vpop.f32.mrb[0].mxu0
  %v3406 = vadd.f32 %v3166, %v3405
  %v3407 = vpop.f32.mrb[0].mxu0
  %v3408 = vadd.f32 %v3170, %v3407
  %3409 = vmatprep.mubr.f32.mxu0 %v3089
  %3410 = vmatmul.mubr.f32.gmra.mrb[0].mxu0 %v3088
  %v3411 = vpop.f32.mrb[0].mxu0
  %v3412 = vadd.f32 %v3166, %v3411
  %v3413 = vpop.f32.mrb[0].mxu0
  %v3414 = vadd.f32 %v3170, %v3413
  %3415 = vmatprep.mubr.f32.mxu0 %v3091
  %3416 = vmatmul.mubr.f32.gmra.mrb[0].mxu0 %v3090
  %v3417 = vpop.f32.mrb[0].mxu0
  %v3418 = vadd.f32 %v3166, %v3417
  %v3419 = vpop.f32.mrb[0].mxu0
  %v3420 = vadd.f32 %v3170, %v3419
  %3421 = vmatprep.mubr.f32.mxu0 %v3093
  %3422 = vmatmul.mubr.f32.gmra.mrb[0].mxu0 %v3092
  %v3423 = vpop.f32.mrb[0].mxu0
  %v3424 = vadd.f32 %v3166, %v3423
  %v3425 = vpop.f32.mrb[0].mxu0
  %v3426 = vadd.f32 %v3170, %v3425
  %3427 = vmatprep.mubr.f32.mxu0 %v3095
  %3428 = vmatmul.mubr.f32.gmra.mrb[0].mxu0 %v3094
  %v3429 = vpop.f32.mrb[0].mxu0
  %v3430 = vadd.f32 %v3166, %v3429
  %v3431 = vpop.f32.mrb[0].mxu0
  %v3432 = vadd.f32 %v3170, %v3431
  %3433 = vmatprep.mubr.f32.mxu0 %v3097
  %3434 = vmatmul.mubr.f32.gmra.mrb[0].mxu0 %v3096
  %v3435 = vpop.f32.mrb[0].mxu0
  %v3436 = vadd.f32 %v3166, %v3435
  %v3437 = vpop.f32.mrb[0].mxu0
  %v3438 = vadd.f32 %v3170, %v3437
  %3439 = vdwg.mxu0
  %vm3440 = vcmp.gt.f32.partialorder %v3238, 0.0
  %vm3441 = vcmp.gt.f32.partialorder %v3240, 0.0
  %vm3442 = vcmp.gt.f32.partialorder %v3244, 0.0
  %vm3443 = vcmp.gt.f32.partialorder %v3246, 0.0
  %vm3444 = vcmp.gt.f32.partialorder %v3250, 0.0
  %vm3445 = vcmp.gt.f32.partialorder %v3252, 0.0
  %vm3446 = vcmp.gt.f32.partialorder %v3256, 0.0
  %vm3447 = vcmp.gt.f32.partialorder %v3258, 0.0
  %vm3448 = vcmp.gt.f32.partialorder %v3262, 0.0
  %vm3449 = vcmp.gt.f32.partialorder %v3264, 0.0
  %vm3450 = vcmp.gt.f32.partialorder %v3268, 0.0
  %vm3451 = vcmp.gt.f32.partialorder %v3270, 0.0
  %vm3452 = vcmp.gt.f32.partialorder %v3274, 0.0
  %vm3453 = vcmp.gt.f32.partialorder %v3276, 0.0
  %vm3454 = vcmp.gt.f32.partialorder %v3280, 0.0
  %vm3455 = vcmp.gt.f32.partialorder %v3282, 0.0
  %vm3456 = vcmp.gt.f32.partialorder %v3286, 0.0
  %vm3457 = vcmp.gt.f32.partialorder %v3288, 0.0
  %vm3458 = vcmp.gt.f32.partialorder %v3292, 0.0
  %vm3459 = vcmp.gt.f32.partialorder %v3294, 0.0
  %vm3460 = vcmp.gt.f32.partialorder %v3298, 0.0
  %vm3461 = vcmp.gt.f32.partialorder %v3300, 0.0
  %vm3462 = vcmp.gt.f32.partialorder %v3304, 0.0
  %vm3463 = vcmp.gt.f32.partialorder %v3306, 0.0
  %vm3464 = vcmp.gt.f32.partialorder %v3310, 0.0
  %vm3465 = vcmp.gt.f32.partialorder %v3312, 0.0
  %vm3466 = vcmp.gt.f32.partialorder %v3316, 0.0
  %vm3467 = vcmp.gt.f32.partialorder %v3318, 0.0
  %vm3468 = vcmp.gt.f32.partialorder %v3322, 0.0
  %vm3469 = vcmp.gt.f32.partialorder %v3324, 0.0
  %vm3470 = vcmp.gt.f32.partialorder %v3328, 0.0
  %vm3471 = vcmp.gt.f32.partialorder %v3330, 0.0
  %vm3472 = vcmp.gt.f32.partialorder %v3334, 0.0
  %vm3473 = vcmp.gt.f32.partialorder %v3336, 0.0
  %vm3474 = vcmp.gt.f32.partialorder %v3340, 0.0
  %vm3475 = vcmp.gt.f32.partialorder %v3342, 0.0
  %vm3476 = vcmp.gt.f32.partialorder %v3346, 0.0
  %vm3477 = vcmp.gt.f32.partialorder %v3348, 0.0
  %vm3478 = vcmp.gt.f32.partialorder %v3352, 0.0
  %vm3479 = vcmp.gt.f32.partialorder %v3354, 0.0
  %vm3480 = vcmp.gt.f32.partialorder %v3358, 0.0
  %vm3481 = vcmp.gt.f32.partialorder %v3360, 0.0
  %vm3482 = vcmp.gt.f32.partialorder %v3364, 0.0
  %vm3483 = vcmp.gt.f32.partialorder %v3366, 0.0
  %vm3484 = vcmp.gt.f32.partialorder %v3370, 0.0
  %vm3485 = vcmp.gt.f32.partialorder %v3372, 0.0
  %vm3486 = vcmp.gt.f32.partialorder %v3376, 0.0
  %vm3487 = vcmp.gt.f32.partialorder %v3378, 0.0
  %vm3488 = vcmp.gt.f32.partialorder %v3382, 0.0
  %vm3489 = vcmp.gt.f32.partialorder %v3384, 0.0
  %vm3490 = vcmp.gt.f32.partialorder %v3388, 0.0
  %vm3491 = vcmp.gt.f32.partialorder %v3390, 0.0
  %vm3492 = vcmp.gt.f32.partialorder %v3394, 0.0
  %vm3493 = vcmp.gt.f32.partialorder %v3396, 0.0
  %vm3494 = vcmp.gt.f32.partialorder %v3400, 0.0
  %vm3495 = vcmp.gt.f32.partialorder %v3402, 0.0
  %vm3496 = vcmp.gt.f32.partialorder %v3406, 0.0
  %vm3497 = vcmp.gt.f32.partialorder %v3408, 0.0
  %vm3498 = vcmp.gt.f32.partialorder %v3412, 0.0
  %vm3499 = vcmp.gt.f32.partialorder %v3414, 0.0
  %vm3500 = vcmp.gt.f32.partialorder %v3418, 0.0
  %vm3501 = vcmp.gt.f32.partialorder %v3420, 0.0
  %vm3502 = vcmp.gt.f32.partialorder %v3424, 0.0
  %vm3503 = vcmp.gt.f32.partialorder %v3426, 0.0
  %vm3504 = vcmp.gt.f32.partialorder %v3430, 0.0
  %vm3505 = vcmp.gt.f32.partialorder %v3432, 0.0
  %vm3506 = vcmp.gt.f32.partialorder %v3436, 0.0
  %vm3507 = vcmp.gt.f32.partialorder %v3438, 0.0
  %v3508 = vmin.f32 %v3238, 0.0
  %v3509 = vmin.f32 %v3240, 0.0
  %v3510 = vmin.f32 %v3244, 0.0
  %v3511 = vmin.f32 %v3246, 0.0
  %v3512 = vmin.f32 %v3250, 0.0
  %v3513 = vmin.f32 %v3252, 0.0
  %v3514 = vmin.f32 %v3256, 0.0
  %v3515 = vmin.f32 %v3258, 0.0
  %v3516 = vmin.f32 %v3262, 0.0
  %v3517 = vmin.f32 %v3264, 0.0
  %v3518 = vmin.f32 %v3268, 0.0
  %v3519 = vmin.f32 %v3270, 0.0
  %v3520 = vmin.f32 %v3274, 0.0
  %v3521 = vmin.f32 %v3276, 0.0
  %v3522 = vmin.f32 %v3280, 0.0
  %v3523 = vmin.f32 %v3282, 0.0
  %v3524 = vmin.f32 %v3286, 0.0
  %v3525 = vmin.f32 %v3288, 0.0
  %v3526 = vmin.f32 %v3292, 0.0
  %v3527 = vmin.f32 %v3294, 0.0
  %v3528 = vmin.f32 %v3298, 0.0
  %v3529 = vmin.f32 %v3300, 0.0
  %v3530 = vmin.f32 %v3304, 0.0
  %v3531 = vmin.f32 %v3306, 0.0
  %v3532 = vmin.f32 %v3310, 0.0
  %v3533 = vmin.f32 %v3312, 0.0
  %v3534 = vmin.f32 %v3316, 0.0
  %v3535 = vmin.f32 %v3318, 0.0
  %v3536 = vmin.f32 %v3322, 0.0
  %v3537 = vmin.f32 %v3324, 0.0
  %v3538 = vmin.f32 %v3328, 0.0
  %v3539 = vmin.f32 %v3330, 0.0
  %v3540 = vmin.f32 %v3334, 0.0
  %v3541 = vmin.f32 %v3336, 0.0
  %v3542 = vmin.f32 %v3340, 0.0
  %v3543 = vmin.f32 %v3342, 0.0
  %v3544 = vmin.f32 %v3346, 0.0
  %v3545 = vmin.f32 %v3348, 0.0
  %v3546 = vmin.f32 %v3352, 0.0
  %v3547 = vmin.f32 %v3354, 0.0
  %v3548 = vmin.f32 %v3358, 0.0
  %v3549 = vmin.f32 %v3360, 0.0
  %v3550 = vmin.f32 %v3364, 0.0
  %v3551 = vmin.f32 %v3366, 0.0
  %v3552 = vmin.f32 %v3370, 0.0
  %v3553 = vmin.f32 %v3372, 0.0
  %v3554 = vmin.f32 %v3376, 0.0
  %v3555 = vmin.f32 %v3378, 0.0
  %v3556 = vmin.f32 %v3382, 0.0
  %v3557 = vmin.f32 %v3384, 0.0
  %v3558 = vmin.f32 %v3388, 0.0
  %v3559 = vmin.f32 %v3390, 0.0
  %v3560 = vmin.f32 %v3394, 0.0
  %v3561 = vmin.f32 %v3396, 0.0
  %v3562 = vmin.f32 %v3400, 0.0
  %v3563 = vmin.f32 %v3402, 0.0
  %v3564 = vmin.f32 %v3406, 0.0
  %v3565 = vmin.f32 %v3408, 0.0
  %v3566 = vmin.f32 %v3412, 0.0
  %v3567 = vmin.f32 %v3414, 0.0
  %v3568 = vmin.f32 %v3418, 0.0
  %v3569 = vmin.f32 %v3420, 0.0
  %v3570 = vmin.f32 %v3424, 0.0
  %v3571 = vmin.f32 %v3426, 0.0
  %v3572 = vmin.f32 %v3430, 0.0
  %v3573 = vmin.f32 %v3432, 0.0
  %v3574 = vmin.f32 %v3436, 0.0
  %v3575 = vmin.f32 %v3438, 0.0
  %v3576 = vmul.f32 %v3508, 1.442695
  %v3577 = vpow.pop %v3576
  %v3578 = vmul.f32 %v3509, 1.442695
  %v3579 = vpow.pop %v3578
  %v3580 = vmul.f32 %v3510, 1.442695
  %v3581 = vpow.pop %v3580
  %v3582 = vmul.f32 %v3511, 1.442695
  %v3583 = vpow.pop %v3582
  %v3584 = vmul.f32 %v3512, 1.442695
  %v3585 = vpow.pop %v3584
  %v3586 = vmul.f32 %v3513, 1.442695
  %v3587 = vpow.pop %v3586
  %v3588 = vmul.f32 %v3514, 1.442695
  %v3589 = vpow.pop %v3588
  %v3590 = vmul.f32 %v3515, 1.442695
  %v3591 = vpow.pop %v3590
  %v3592 = vmul.f32 %v3516, 1.442695
  %v3593 = vpow.pop %v3592
  %v3594 = vmul.f32 %v3517, 1.442695
  %v3595 = vpow.pop %v3594
  %v3596 = vmul.f32 %v3518, 1.442695
  %v3597 = vpow.pop %v3596
  %v3598 = vmul.f32 %v3519, 1.442695
  %v3599 = vpow.pop %v3598
  %v3600 = vmul.f32 %v3520, 1.442695
  %v3601 = vpow.pop %v3600
  %v3602 = vmul.f32 %v3521, 1.442695
  %v3603 = vpow.pop %v3602
  %v3604 = vmul.f32 %v3522, 1.442695
  %v3605 = vpow.pop %v3604
  %v3606 = vmul.f32 %v3523, 1.442695
  %v3607 = vpow.pop %v3606
  %v3608 = vmul.f32 %v3524, 1.442695
  %v3609 = vpow.pop %v3608
  %v3610 = vmul.f32 %v3525, 1.442695
  %v3611 = vpow.pop %v3610
  %v3612 = vmul.f32 %v3526, 1.442695
  %v3613 = vpow.pop %v3612
  %v3614 = vmul.f32 %v3527, 1.442695
  %v3615 = vpow.pop %v3614
  %v3616 = vmul.f32 %v3528, 1.442695
  %v3617 = vpow.pop %v3616
  %v3618 = vmul.f32 %v3529, 1.442695
  %v3619 = vpow.pop %v3618
  %v3620 = vmul.f32 %v3530, 1.442695
  %v3621 = vpow.pop %v3620
  %v3622 = vmul.f32 %v3531, 1.442695
  %v3623 = vpow.pop %v3622
  %v3624 = vmul.f32 %v3532, 1.442695
  %v3625 = vpow.pop %v3624
  %v3626 = vmul.f32 %v3533, 1.442695
  %v3627 = vpow.pop %v3626
  %v3628 = vmul.f32 %v3534, 1.442695
  %v3629 = vpow.pop %v3628
  %v3630 = vmul.f32 %v3535, 1.442695
  %v3631 = vpow.pop %v3630
  %v3632 = vmul.f32 %v3536, 1.442695
  %v3633 = vpow.pop %v3632
  %v3634 = vmul.f32 %v3537, 1.442695
  %v3635 = vpow.pop %v3634
  %v3636 = vmul.f32 %v3538, 1.442695
  %v3637 = vpow.pop %v3636
  %v3638 = vmul.f32 %v3539, 1.442695
  %v3639 = vpow.pop %v3638
  %v3640 = vmul.f32 %v3540, 1.442695
  %v3641 = vpow.pop %v3640
  %v3642 = vmul.f32 %v3541, 1.442695
  %v3643 = vpow.pop %v3642
  %v3644 = vmul.f32 %v3542, 1.442695
  %v3645 = vpow.pop %v3644
  %v3646 = vmul.f32 %v3543, 1.442695
  %v3647 = vpow.pop %v3646
  %v3648 = vmul.f32 %v3544, 1.442695
  %v3649 = vpow.pop %v3648
  %v3650 = vmul.f32 %v3545, 1.442695
  %v3651 = vpow.pop %v3650
  %v3652 = vmul.f32 %v3546, 1.442695
  %v3653 = vpow.pop %v3652
  %v3654 = vmul.f32 %v3547, 1.442695
  %v3655 = vpow.pop %v3654
  %v3656 = vmul.f32 %v3548, 1.442695
  %v3657 = vpow.pop %v3656
  %v3658 = vmul.f32 %v3549, 1.442695
  %v3659 = vpow.pop %v3658
  %v3660 = vmul.f32 %v3550, 1.442695
  %v3661 = vpow.pop %v3660
  %v3662 = vmul.f32 %v3551, 1.442695
  %v3663 = vpow.pop %v3662
  %v3664 = vmul.f32 %v3552, 1.442695
  %v3665 = vpow.pop %v3664
  %v3666 = vmul.f32 %v3553, 1.442695
  %v3667 = vpow.pop %v3666
  %v3668 = vmul.f32 %v3554, 1.442695
  %v3669 = vpow.pop %v3668
  %v3670 = vmul.f32 %v3555, 1.442695
  %v3671 = vpow.pop %v3670
  %v3672 = vmul.f32 %v3556, 1.442695
  %v3673 = vpow.pop %v3672
  %v3674 = vmul.f32 %v3557, 1.442695
  %v3675 = vpow.pop %v3674
  %v3676 = vmul.f32 %v3558, 1.442695
  %v3677 = vpow.pop %v3676
  %v3678 = vmul.f32 %v3559, 1.442695
  %v3679 = vpow.pop %v3678
  %v3680 = vmul.f32 %v3560, 1.442695
  %v3681 = vpow.pop %v3680
  %v3682 = vmul.f32 %v3561, 1.442695
  %v3683 = vpow.pop %v3682
  %v3684 = vmul.f32 %v3562, 1.442695
  %v3685 = vpow.pop %v3684
  %v3686 = vmul.f32 %v3563, 1.442695
  %v3687 = vpow.pop %v3686
  %v3688 = vmul.f32 %v3564, 1.442695
  %v3689 = vpow.pop %v3688
  %v3690 = vmul.f32 %v3565, 1.442695
  %v3691 = vpow.pop %v3690
  %v3692 = vmul.f32 %v3566, 1.442695
  %v3693 = vpow.pop %v3692
  %v3694 = vmul.f32 %v3567, 1.442695
  %v3695 = vpow.pop %v3694
  %v3696 = vmul.f32 %v3568, 1.442695
  %v3697 = vpow.pop %v3696
  %v3698 = vmul.f32 %v3569, 1.442695
  %v3699 = vpow.pop %v3698
  %v3700 = vmul.f32 %v3570, 1.442695
  %v3701 = vpow.pop %v3700
  %v3702 = vmul.f32 %v3571, 1.442695
  %v3703 = vpow.pop %v3702
  %v3704 = vmul.f32 %v3572, 1.442695
  %v3705 = vpow.pop %v3704
  %v3706 = vmul.f32 %v3573, 1.442695
  %v3707 = vpow.pop %v3706
  %v3708 = vmul.f32 %v3574, 1.442695
  %v3709 = vpow.pop %v3708
  %v3710 = vmul.f32 %v3575, 1.442695
  %v3711 = vpow.pop %v3710
  %v3712 = vsub.f32 %v3577, 1.0
  %v3713 = vsub.f32 %v3579, 1.0
  %v3714 = vsub.f32 %v3581, 1.0
  %v3715 = vsub.f32 %v3583, 1.0
  %v3716 = vsub.f32 %v3585, 1.0
  %v3717 = vsub.f32 %v3587, 1.0
  %v3718 = vsub.f32 %v3589, 1.0
  %v3719 = vsub.f32 %v3591, 1.0
  %v3720 = vsub.f32 %v3593, 1.0
  %v3721 = vsub.f32 %v3595, 1.0
  %v3722 = vsub.f32 %v3597, 1.0
  %v3723 = vsub.f32 %v3599, 1.0
  %v3724 = vsub.f32 %v3601, 1.0
  %v3725 = vsub.f32 %v3603, 1.0
  %v3726 = vsub.f32 %v3605, 1.0
  %v3727 = vsub.f32 %v3607, 1.0
  %v3728 = vsub.f32 %v3609, 1.0
  %v3729 = vsub.f32 %v3611, 1.0
  %v3730 = vsub.f32 %v3613, 1.0
  %v3731 = vsub.f32 %v3615, 1.0
  %v3732 = vsub.f32 %v3617, 1.0
  %v3733 = vsub.f32 %v3619, 1.0
  %v3734 = vsub.f32 %v3621, 1.0
  %v3735 = vsub.f32 %v3623, 1.0
  %v3736 = vsub.f32 %v3625, 1.0
  %v3737 = vsub.f32 %v3627, 1.0
  %v3738 = vsub.f32 %v3629, 1.0
  %v3739 = vsub.f32 %v3631, 1.0
  %v3740 = vsub.f32 %v3633, 1.0
  %v3741 = vsub.f32 %v3635, 1.0
  %v3742 = vsub.f32 %v3637, 1.0
  %v3743 = vsub.f32 %v3639, 1.0
  %v3744 = vsub.f32 %v3641, 1.0
  %v3745 = vsub.f32 %v3643, 1.0
  %v3746 = vsub.f32 %v3645, 1.0
  %v3747 = vsub.f32 %v3647, 1.0
  %v3748 = vsub.f32 %v3649, 1.0
  %v3749 = vsub.f32 %v3651, 1.0
  %v3750 = vsub.f32 %v3653, 1.0
  %v3751 = vsub.f32 %v3655, 1.0
  %v3752 = vsub.f32 %v3657, 1.0
  %v3753 = vsub.f32 %v3659, 1.0
  %v3754 = vsub.f32 %v3661, 1.0
  %v3755 = vsub.f32 %v3663, 1.0
  %v3756 = vsub.f32 %v3665, 1.0
  %v3757 = vsub.f32 %v3667, 1.0
  %v3758 = vsub.f32 %v3669, 1.0
  %v3759 = vsub.f32 %v3671, 1.0
  %v3760 = vsub.f32 %v3673, 1.0
  %v3761 = vsub.f32 %v3675, 1.0
  %v3762 = vsub.f32 %v3677, 1.0
  %v3763 = vsub.f32 %v3679, 1.0
  %v3764 = vsub.f32 %v3681, 1.0
  %v3765 = vsub.f32 %v3683, 1.0
  %v3766 = vsub.f32 %v3685, 1.0
  %v3767 = vsub.f32 %v3687, 1.0
  %v3768 = vsub.f32 %v3689, 1.0
  %v3769 = vsub.f32 %v3691, 1.0
  %v3770 = vsub.f32 %v3693, 1.0
  %v3771 = vsub.f32 %v3695, 1.0
  %v3772 = vsub.f32 %v3697, 1.0
  %v3773 = vsub.f32 %v3699, 1.0
  %v3774 = vsub.f32 %v3701, 1.0
  %v3775 = vsub.f32 %v3703, 1.0
  %v3776 = vsub.f32 %v3705, 1.0
  %v3777 = vsub.f32 %v3707, 1.0
  %v3778 = vsub.f32 %v3709, 1.0
  %v3779 = vsub.f32 %v3711, 1.0
  %v3780 = vsel %vm3440, %v3238, %v3712
  %v3781 = vsel %vm3441, %v3240, %v3713
  %v3782 = vsel %vm3442, %v3244, %v3714
  %v3783 = vsel %vm3443, %v3246, %v3715
  %v3784 = vsel %vm3444, %v3250, %v3716
  %v3785 = vsel %vm3445, %v3252, %v3717
  %v3786 = vsel %vm3446, %v3256, %v3718
  %v3787 = vsel %vm3447, %v3258, %v3719
  %v3788 = vsel %vm3448, %v3262, %v3720
  %v3789 = vsel %vm3449, %v3264, %v3721
  %v3790 = vsel %vm3450, %v3268, %v3722
  %v3791 = vsel %vm3451, %v3270, %v3723
  %v3792 = vsel %vm3452, %v3274, %v3724
  %v3793 = vsel %vm3453, %v3276, %v3725
  %v3794 = vsel %vm3454, %v3280, %v3726
  %v3795 = vsel %vm3455, %v3282, %v3727
  %v3796 = vsel %vm3456, %v3286, %v3728
  %v3797 = vsel %vm3457, %v3288, %v3729
  %v3798 = vsel %vm3458, %v3292, %v3730
  %v3799 = vsel %vm3459, %v3294, %v3731
  %v3800 = vsel %vm3460, %v3298, %v3732
  %v3801 = vsel %vm3461, %v3300, %v3733
  %v3802 = vsel %vm3462, %v3304, %v3734
  %v3803 = vsel %vm3463, %v3306, %v3735
  %v3804 = vsel %vm3464, %v3310, %v3736
  %v3805 = vsel %vm3465, %v3312, %v3737
  %v3806 = vsel %vm3466, %v3316, %v3738
  %v3807 = vsel %vm3467, %v3318, %v3739
  %v3808 = vsel %vm3468, %v3322, %v3740
  %v3809 = vsel %vm3469, %v3324, %v3741
  %v3810 = vsel %vm3470, %v3328, %v3742
  %v3811 = vsel %vm3471, %v3330, %v3743
  %v3812 = vsel %vm3472, %v3334, %v3744
  %v3813 = vsel %vm3473, %v3336, %v3745
  %v3814 = vsel %vm3474, %v3340, %v3746
  %v3815 = vsel %vm3475, %v3342, %v3747
  %v3816 = vsel %vm3476, %v3346, %v3748
  %v3817 = vsel %vm3477, %v3348, %v3749
  %v3818 = vsel %vm3478, %v3352, %v3750
  %v3819 = vsel %vm3479, %v3354, %v3751
  %v3820 = vsel %vm3480, %v3358, %v3752
  %v3821 = vsel %vm3481, %v3360, %v3753
  %v3822 = vsel %vm3482, %v3364, %v3754
  %v3823 = vsel %vm3483, %v3366, %v3755
  %v3824 = vsel %vm3484, %v3370, %v3756
  %v3825 = vsel %vm3485, %v3372, %v3757
  %v3826 = vsel %vm3486, %v3376, %v3758
  %v3827 = vsel %vm3487, %v3378, %v3759
  %v3828 = vsel %vm3488, %v3382, %v3760
  %v3829 = vsel %vm3489, %v3384, %v3761
  %v3830 = vsel %vm3490, %v3388, %v3762
  %v3831 = vsel %vm3491, %v3390, %v3763
  %v3832 = vsel %vm3492, %v3394, %v3764
  %v3833 = vsel %vm3493, %v3396, %v3765
  %v3834 = vsel %vm3494, %v3400, %v3766
  %v3835 = vsel %vm3495, %v3402, %v3767
  %v3836 = vsel %vm3496, %v3406, %v3768
  %v3837 = vsel %vm3497, %v3408, %v3769
  %v3838 = vsel %vm3498, %v3412, %v3770
  %v3839 = vsel %vm3499, %v3414, %v3771
  %v3840 = vsel %vm3500, %v3418, %v3772
  %v3841 = vsel %vm3501, %v3420, %v3773
  %v3842 = vsel %vm3502, %v3424, %v3774
  %v3843 = vsel %vm3503, %v3426, %v3775
  %v3844 = vsel %vm3504, %v3430, %v3776
  %v3845 = vsel %vm3505, %v3432, %v3777
  %v3846 = vsel %vm3506, %v3436, %v3778
  %v3847 = vsel %vm3507, %v3438, %v3779
  %v3848 = vld [vmem:[%s2 + $0xf0] sm:$0xff]
  %v3849 = vld [vmem:[%s2 + $0x108] sm:$0xff]
  %v3850 = vld [vmem:[%s2 + $0x120] sm:$0xff]
  %v3851 = vld [vmem:[%s2 + $0x138] sm:$0xff]
  %v3852 = vld [vmem:[%s2 + $0x150] sm:$0xff]
  %v3853 = vld [vmem:[%s2 + $0x168] sm:$0xff]
  %v3854 = vld [vmem:[%s2 + $0x180] sm:$0xff]
  %v3855 = vld [vmem:[%s2 + $0x198] sm:$0xff]
  %v3856 = vld [vmem:[%s2 + $0x1b0] sm:$0xff]
  %v3857 = vld [vmem:[%s2 + $0x1c8] sm:$0xff]
  %v3858 = vld [vmem:[%s2 + $0x1e0] sm:$0xff]
  %v3859 = vld [vmem:[%s2 + $0x1f8] sm:$0xff]
  %v3860 = vld [vmem:[%s2 + $0x210] sm:$0xff]
  %v3861 = vld [vmem:[%s2 + $0x228] sm:$0xff]
  %v3862 = vld [vmem:[%s2 + $0x240] sm:$0xff]
  %v3863 = vld [vmem:[%s2 + $0x258] sm:$0xff]
  %v3864 = vld [vmem:[%s2 + $0x270] sm:$0xff]
  %v3865 = vld [vmem:[%s2 + $0x288] sm:$0xff]
  %v3866 = vld [vmem:[%s2 + $0x2a0] sm:$0xff]
  %v3867 = vld [vmem:[%s2 + $0x2b8] sm:$0xff]
  %v3868 = vld [vmem:[%s2 + $0x2d0] sm:$0xff]
  %v3869 = vld [vmem:[%s2 + $0x2e8] sm:$0xff]
  %v3870 = vld [vmem:[%s2 + $0x300] sm:$0xff]
  %v3871 = vld [vmem:[%s2 + $0x318] sm:$0xff]
  %v3872 = vld [vmem:[%s2 + $0x330] sm:$0xff]
  %v3873 = vld [vmem:[%s2 + $0x348] sm:$0xff]
  %v3874 = vld [vmem:[%s2 + $0x360] sm:$0xff]
  %v3875 = vld [vmem:[%s2 + $0x378] sm:$0xff]
  %v3876 = vld [vmem:[%s2 + $0x390] sm:$0xff]
  %v3877 = vld [vmem:[%s2 + $0x3a8] sm:$0xff]
  %v3878 = vld [vmem:[%s2 + $0x3c0] sm:$0xff]
  %v3879 = vld [vmem:[%s2 + $0x3d8] sm:$0xff]
  %v3880 = vld [vmem:[%s2 + $0x3f0] ss:$0 sm:$0xff]
  %3881 = vmatprep.subr.mxu0 0.0
  %3882 = vmatpush1.msra.mxu0 %v3848
  %3883 = vmatprep.subr.mxu0 0.0
  %3884 = vmatpush1.msra.mxu0 %v3849
  %3885 = vmatprep.subr.mxu0 0.0
  %3886 = vmatpush1.msra.mxu0 %v3850
  %3887 = vmatprep.subr.mxu0 0.0
  %3888 = vmatpush1.msra.mxu0 %v3851
  %3889 = vmatprep.subr.mxu0 0.0
  %3890 = vmatpush1.msra.mxu0 %v3852
  %3891 = vmatprep.subr.mxu0 0.0
  %3892 = vmatpush1.msra.mxu0 %v3853
  %3893 = vmatprep.subr.mxu0 0.0
  %3894 = vmatpush1.msra.mxu0 %v3854
  %3895 = vmatprep.subr.mxu0 0.0
  %3896 = vmatpush1.msra.mxu0 %v3855
  %3897 = vmatprep.subr.mxu0 0.0
  %3898 = vmatpush1.msra.mxu0 %v3856
  %3899 = vmatprep.subr.mxu0 0.0
  %3900 = vmatpush1.msra.mxu0 %v3857
  %3901 = vmatprep.subr.mxu0 0.0
  %3902 = vmatpush1.msra.mxu0 %v3858
  %3903 = vmatprep.subr.mxu0 0.0
  %3904 = vmatpush1.msra.mxu0 %v3859
  %3905 = vmatprep.subr.mxu0 0.0
  %3906 = vmatpush1.msra.mxu0 %v3860
  %3907 = vmatprep.subr.mxu0 0.0
  %3908 = vmatpush1.msra.mxu0 %v3861
  %3909 = vmatprep.subr.mxu0 0.0
  %3910 = vmatpush1.msra.mxu0 %v3862
  %3911 = vmatprep.subr.mxu0 0.0
  %3912 = vmatpush1.msra.mxu0 %v3863
  %3913 = vmatprep.subr.mxu0 0.0
  %3914 = vmatpush1.msra.mxu0 %v3864
  %3915 = vmatprep.subr.mxu0 0.0
  %3916 = vmatpush1.msra.mxu0 %v3865
  %3917 = vmatprep.subr.mxu0 0.0
  %3918 = vmatpush1.msra.mxu0 %v3866
  %3919 = vmatprep.subr.mxu0 0.0
  %3920 = vmatpush1.msra.mxu0 %v3867
  %3921 = vmatprep.subr.mxu0 0.0
  %3922 = vmatpush1.msra.mxu0 %v3868
  %3923 = vmatprep.subr.mxu0 0.0
  %3924 = vmatpush1.msra.mxu0 %v3869
  %3925 = vmatprep.subr.mxu0 0.0
  %3926 = vmatpush1.msra.mxu0 %v3870
  %3927 = vmatprep.subr.mxu0 0.0
  %3928 = vmatpush1.msra.mxu0 %v3871
  %3929 = vmatprep.subr.mxu0 0.0
  %3930 = vmatpush1.msra.mxu0 %v3872
  %3931 = vmatprep.subr.mxu0 0.0
  %3932 = vmatpush1.msra.mxu0 %v3873
  %3933 = vmatprep.subr.mxu0 0.0
  %3934 = vmatpush1.msra.mxu0 %v3874
  %3935 = vmatprep.subr.mxu0 0.0
  %3936 = vmatpush1.msra.mxu0 %v3875
  %3937 = vmatprep.subr.mxu0 0.0
  %3938 = vmatpush1.msra.mxu0 %v3876
  %3939 = vmatprep.subr.mxu0 0.0
  %3940 = vmatpush1.msra.mxu0 %v3877
  %3941 = vmatprep.subr.mxu0 0.0
  %3942 = vmatpush1.msra.mxu0 %v3878
  %3943 = vmatprep.subr.mxu0 0.0
  %3944 = vmatpush1.msra.mxu0 %v3879
  %3945 = vmatprep.mubr.f32.mxu0 %v3781
  %3946 = vmatmul.mubr.f32.gmra.mrb[0].mxu0 %v3780
  %v3947 = vpop.f32.mrb[0].mxu0
  %v3948 = vadd.f32 %v3880, %v3947
  %v3949 = vpop.f32.mrb[0].mxu0
  %3950 = vmatprep.mubr.f32.mxu0 %v3783
  %3951 = vmatmul.mubr.f32.gmra.mrb[0].mxu0 %v3782
  %v3952 = vpop.f32.mrb[0].mxu0
  %v3953 = vadd.f32 %v3880, %v3952
  %v3954 = vpop.f32.mrb[0].mxu0
  %3955 = vmatprep.mubr.f32.mxu0 %v3785
  %3956 = vmatmul.mubr.f32.gmra.mrb[0].mxu0 %v3784
  %v3957 = vpop.f32.mrb[0].mxu0
  %v3958 = vadd.f32 %v3880, %v3957
  %v3959 = vpop.f32.mrb[0].mxu0
  %3960 = vmatprep.mubr.f32.mxu0 %v3787
  %3961 = vmatmul.mubr.f32.gmra.mrb[0].mxu0 %v3786
  %v3962 = vpop.f32.mrb[0].mxu0
  %v3963 = vadd.f32 %v3880, %v3962
  %v3964 = vpop.f32.mrb[0].mxu0
  %3965 = vmatprep.mubr.f32.mxu0 %v3789
  %3966 = vmatmul.mubr.f32.gmra.mrb[0].mxu0 %v3788
  %v3967 = vpop.f32.mrb[0].mxu0
  %v3968 = vadd.f32 %v3880, %v3967
  %v3969 = vpop.f32.mrb[0].mxu0
  %3970 = vmatprep.mubr.f32.mxu0 %v3791
  %3971 = vmatmul.mubr.f32.gmra.mrb[0].mxu0 %v3790
  %v3972 = vpop.f32.mrb[0].mxu0
  %v3973 = vadd.f32 %v3880, %v3972
  %v3974 = vpop.f32.mrb[0].mxu0
  %3975 = vmatprep.mubr.f32.mxu0 %v3793
  %3976 = vmatmul.mubr.f32.gmra.mrb[0].mxu0 %v3792
  %v3977 = vpop.f32.mrb[0].mxu0
  %v3978 = vadd.f32 %v3880, %v3977
  %v3979 = vpop.f32.mrb[0].mxu0
  %3980 = vmatprep.mubr.f32.mxu0 %v3795
  %3981 = vmatmul.mubr.f32.gmra.mrb[0].mxu0 %v3794
  %v3982 = vpop.f32.mrb[0].mxu0
  %v3983 = vadd.f32 %v3880, %v3982
  %v3984 = vpop.f32.mrb[0].mxu0
  %3985 = vmatprep.mubr.f32.mxu0 %v3797
  %3986 = vmatmul.mubr.f32.gmra.mrb[0].mxu0 %v3796
  %v3987 = vpop.f32.mrb[0].mxu0
  %v3988 = vadd.f32 %v3880, %v3987
  %v3989 = vpop.f32.mrb[0].mxu0
  %3990 = vmatprep.mubr.f32.mxu0 %v3799
  %3991 = vmatmul.mubr.f32.gmra.mrb[0].mxu0 %v3798
  %v3992 = vpop.f32.mrb[0].mxu0
  %v3993 = vadd.f32 %v3880, %v3992
  %v3994 = vpop.f32.mrb[0].mxu0
  %3995 = vmatprep.mubr.f32.mxu0 %v3801
  %3996 = vmatmul.mubr.f32.gmra.mrb[0].mxu0 %v3800
  %v3997 = vpop.f32.mrb[0].mxu0
  %v3998 = vadd.f32 %v3880, %v3997
  %v3999 = vpop.f32.mrb[0].mxu0
  %4000 = vmatprep.mubr.f32.mxu0 %v3803
  %4001 = vmatmul.mubr.f32.gmra.mrb[0].mxu0 %v3802
  %v4002 = vpop.f32.mrb[0].mxu0
  %v4003 = vadd.f32 %v3880, %v4002
  %v4004 = vpop.f32.mrb[0].mxu0
  %4005 = vmatprep.mubr.f32.mxu0 %v3805
  %4006 = vmatmul.mubr.f32.gmra.mrb[0].mxu0 %v3804
  %v4007 = vpop.f32.mrb[0].mxu0
  %v4008 = vadd.f32 %v3880, %v4007
  %v4009 = vpop.f32.mrb[0].mxu0
  %4010 = vmatprep.mubr.f32.mxu0 %v3807
  %4011 = vmatmul.mubr.f32.gmra.mrb[0].mxu0 %v3806
  %v4012 = vpop.f32.mrb[0].mxu0
  %v4013 = vadd.f32 %v3880, %v4012
  %v4014 = vpop.f32.mrb[0].mxu0
  %4015 = vmatprep.mubr.f32.mxu0 %v3809
  %4016 = vmatmul.mubr.f32.gmra.mrb[0].mxu0 %v3808
  %v4017 = vpop.f32.mrb[0].mxu0
  %v4018 = vadd.f32 %v3880, %v4017
  %v4019 = vpop.f32.mrb[0].mxu0
  %4020 = vmatprep.mubr.f32.mxu0 %v3811
  %4021 = vmatmul.mubr.f32.gmra.mrb[0].mxu0 %v3810
  %v4022 = vpop.f32.mrb[0].mxu0
  %v4023 = vadd.f32 %v3880, %v4022
  %v4024 = vpop.f32.mrb[0].mxu0
  %4025 = vmatprep.mubr.f32.mxu0 %v3813
  %4026 = vmatmul.mubr.f32.gmra.mrb[0].mxu0 %v3812
  %v4027 = vpop.f32.mrb[0].mxu0
  %v4028 = vadd.f32 %v3880, %v4027
  %v4029 = vpop.f32.mrb[0].mxu0
  %4030 = vmatprep.mubr.f32.mxu0 %v3815
  %4031 = vmatmul.mubr.f32.gmra.mrb[0].mxu0 %v3814
  %v4032 = vpop.f32.mrb[0].mxu0
  %v4033 = vadd.f32 %v3880, %v4032
  %v4034 = vpop.f32.mrb[0].mxu0
  %4035 = vmatprep.mubr.f32.mxu0 %v3817
  %4036 = vmatmul.mubr.f32.gmra.mrb[0].mxu0 %v3816
  %v4037 = vpop.f32.mrb[0].mxu0
  %v4038 = vadd.f32 %v3880, %v4037
  %v4039 = vpop.f32.mrb[0].mxu0
  %4040 = vmatprep.mubr.f32.mxu0 %v3819
  %4041 = vmatmul.mubr.f32.gmra.mrb[0].mxu0 %v3818
  %v4042 = vpop.f32.mrb[0].mxu0
  %v4043 = vadd.f32 %v3880, %v4042
  %v4044 = vpop.f32.mrb[0].mxu0
  %4045 = vmatprep.mubr.f32.mxu0 %v3821
  %4046 = vmatmul.mubr.f32.gmra.mrb[0].mxu0 %v3820
  %v4047 = vpop.f32.mrb[0].mxu0
  %v4048 = vadd.f32 %v3880, %v4047
  %v4049 = vpop.f32.mrb[0].mxu0
  %4050 = vmatprep.mubr.f32.mxu0 %v3823
  %4051 = vmatmul.mubr.f32.gmra.mrb[0].mxu0 %v3822
  %v4052 = vpop.f32.mrb[0].mxu0
  %v4053 = vadd.f32 %v3880, %v4052
  %v4054 = vpop.f32.mrb[0].mxu0
  %4055 = vmatprep.mubr.f32.mxu0 %v3825
  %4056 = vmatmul.mubr.f32.gmra.mrb[0].mxu0 %v3824
  %v4057 = vpop.f32.mrb[0].mxu0
  %v4058 = vadd.f32 %v3880, %v4057
  %v4059 = vpop.f32.mrb[0].mxu0
  %4060 = vmatprep.mubr.f32.mxu0 %v3827
  %4061 = vmatmul.mubr.f32.gmra.mrb[0].mxu0 %v3826
  %v4062 = vpop.f32.mrb[0].mxu0
  %v4063 = vadd.f32 %v3880, %v4062
  %v4064 = vpop.f32.mrb[0].mxu0
  %4065 = vmatprep.mubr.f32.mxu0 %v3829
  %4066 = vmatmul.mubr.f32.gmra.mrb[0].mxu0 %v3828
  %v4067 = vpop.f32.mrb[0].mxu0
  %v4068 = vadd.f32 %v3880, %v4067
  %v4069 = vpop.f32.mrb[0].mxu0
  %4070 = vmatprep.mubr.f32.mxu0 %v3831
  %4071 = vmatmul.mubr.f32.gmra.mrb[0].mxu0 %v3830
  %v4072 = vpop.f32.mrb[0].mxu0
  %v4073 = vadd.f32 %v3880, %v4072
  %v4074 = vpop.f32.mrb[0].mxu0
  %4075 = vmatprep.mubr.f32.mxu0 %v3833
  %4076 = vmatmul.mubr.f32.gmra.mrb[0].mxu0 %v3832
  %v4077 = vpop.f32.mrb[0].mxu0
  %v4078 = vadd.f32 %v3880, %v4077
  %v4079 = vpop.f32.mrb[0].mxu0
  %4080 = vmatprep.mubr.f32.mxu0 %v3835
  %4081 = vmatmul.mubr.f32.gmra.mrb[0].mxu0 %v3834
  %v4082 = vpop.f32.mrb[0].mxu0
  %v4083 = vadd.f32 %v3880, %v4082
  %v4084 = vpop.f32.mrb[0].mxu0
  %4085 = vmatprep.mubr.f32.mxu0 %v3837
  %4086 = vmatmul.mubr.f32.gmra.mrb[0].mxu0 %v3836
  %v4087 = vpop.f32.mrb[0].mxu0
  %v4088 = vadd.f32 %v3880, %v4087
  %v4089 = vpop.f32.mrb[0].mxu0
  %4090 = vmatprep.mubr.f32.mxu0 %v3839
  %4091 = vmatmul.mubr.f32.gmra.mrb[0].mxu0 %v3838
  %v4092 = vpop.f32.mrb[0].mxu0
  %v4093 = vadd.f32 %v3880, %v4092
  %v4094 = vpop.f32.mrb[0].mxu0
  %4095 = vmatprep.mubr.f32.mxu0 %v3841
  %4096 = vmatmul.mubr.f32.gmra.mrb[0].mxu0 %v3840
  %v4097 = vpop.f32.mrb[0].mxu0
  %v4098 = vadd.f32 %v3880, %v4097
  %v4099 = vpop.f32.mrb[0].mxu0
  %4100 = vmatprep.mubr.f32.mxu0 %v3843
  %4101 = vmatmul.mubr.f32.gmra.mrb[0].mxu0 %v3842
  %v4102 = vpop.f32.mrb[0].mxu0
  %v4103 = vadd.f32 %v3880, %v4102
  %v4104 = vpop.f32.mrb[0].mxu0
  %4105 = vmatprep.mubr.f32.mxu0 %v3845
  %4106 = vmatmul.mubr.f32.gmra.mrb[0].mxu0 %v3844
  %v4107 = vpop.f32.mrb[0].mxu0
  %v4108 = vadd.f32 %v3880, %v4107
  %v4109 = vpop.f32.mrb[0].mxu0
  %4110 = vmatprep.mubr.f32.mxu0 %v3847
  %4111 = vmatmul.mubr.f32.gmra.mrb[0].mxu0 %v3846
  %v4112 = vpop.f32.mrb[0].mxu0
  %v4113 = vadd.f32 %v3880, %v4112
  %v4114 = vpop.f32.mrb[0].mxu0
  %4115 = vdwg.mxu0
  %vm4116 = vcmp.gt.f32.partialorder %v3948, 0.0
  %vm4117 = vcmp.gt.f32.partialorder %v3953, 0.0
  %vm4118 = vcmp.gt.f32.partialorder %v3958, 0.0
  %vm4119 = vcmp.gt.f32.partialorder %v3963, 0.0
  %vm4120 = vcmp.gt.f32.partialorder %v3968, 0.0
  %vm4121 = vcmp.gt.f32.partialorder %v3973, 0.0
  %vm4122 = vcmp.gt.f32.partialorder %v3978, 0.0
  %vm4123 = vcmp.gt.f32.partialorder %v3983, 0.0
  %vm4124 = vcmp.gt.f32.partialorder %v3988, 0.0
  %vm4125 = vcmp.gt.f32.partialorder %v3993, 0.0
  %vm4126 = vcmp.gt.f32.partialorder %v3998, 0.0
  %vm4127 = vcmp.gt.f32.partialorder %v4003, 0.0
  %vm4128 = vcmp.gt.f32.partialorder %v4008, 0.0
  %vm4129 = vcmp.gt.f32.partialorder %v4013, 0.0
  %vm4130 = vcmp.gt.f32.partialorder %v4018, 0.0
  %vm4131 = vcmp.gt.f32.partialorder %v4023, 0.0
  %vm4132 = vcmp.gt.f32.partialorder %v4028, 0.0
  %vm4133 = vcmp.gt.f32.partialorder %v4033, 0.0
  %vm4134 = vcmp.gt.f32.partialorder %v4038, 0.0
  %vm4135 = vcmp.gt.f32.partialorder %v4043, 0.0
  %vm4136 = vcmp.gt.f32.partialorder %v4048, 0.0
  %vm4137 = vcmp.gt.f32.partialorder %v4053, 0.0
  %vm4138 = vcmp.gt.f32.partialorder %v4058, 0.0
  %vm4139 = vcmp.gt.f32.partialorder %v4063, 0.0
  %vm4140 = vcmp.gt.f32.partialorder %v4068, 0.0
  %vm4141 = vcmp.gt.f32.partialorder %v4073, 0.0
  %vm4142 = vcmp.gt.f32.partialorder %v4078, 0.0
  %vm4143 = vcmp.gt.f32.partialorder %v4083, 0.0
  %vm4144 = vcmp.gt.f32.partialorder %v4088, 0.0
  %vm4145 = vcmp.gt.f32.partialorder %v4093, 0.0
  %vm4146 = vcmp.gt.f32.partialorder %v4098, 0.0
  %vm4147 = vcmp.gt.f32.partialorder %v4103, 0.0
  %vm4148 = vcmp.gt.f32.partialorder %v4108, 0.0
  %vm4149 = vcmp.gt.f32.partialorder %v4113, 0.0
  %v4150 = vmin.f32 %v3948, 0.0
  %v4151 = vmin.f32 %v3953, 0.0
  %v4152 = vmin.f32 %v3958, 0.0
  %v4153 = vmin.f32 %v3963, 0.0
  %v4154 = vmin.f32 %v3968, 0.0
  %v4155 = vmin.f32 %v3973, 0.0
  %v4156 = vmin.f32 %v3978, 0.0
  %v4157 = vmin.f32 %v3983, 0.0
  %v4158 = vmin.f32 %v3988, 0.0
  %v4159 = vmin.f32 %v3993, 0.0
  %v4160 = vmin.f32 %v3998, 0.0
  %v4161 = vmin.f32 %v4003, 0.0
  %v4162 = vmin.f32 %v4008, 0.0
  %v4163 = vmin.f32 %v4013, 0.0
  %v4164 = vmin.f32 %v4018, 0.0
  %v4165 = vmin.f32 %v4023, 0.0
  %v4166 = vmin.f32 %v4028, 0.0
  %v4167 = vmin.f32 %v4033, 0.0
  %v4168 = vmin.f32 %v4038, 0.0
  %v4169 = vmin.f32 %v4043, 0.0
  %v4170 = vmin.f32 %v4048, 0.0
  %v4171 = vmin.f32 %v4053, 0.0
  %v4172 = vmin.f32 %v4058, 0.0
  %v4173 = vmin.f32 %v4063, 0.0
  %v4174 = vmin.f32 %v4068, 0.0
  %v4175 = vmin.f32 %v4073, 0.0
  %v4176 = vmin.f32 %v4078, 0.0
  %v4177 = vmin.f32 %v4083, 0.0
  %v4178 = vmin.f32 %v4088, 0.0
  %v4179 = vmin.f32 %v4093, 0.0
  %v4180 = vmin.f32 %v4098, 0.0
  %v4181 = vmin.f32 %v4103, 0.0
  %v4182 = vmin.f32 %v4108, 0.0
  %v4183 = vmin.f32 %v4113, 0.0
  %v4184 = vmul.f32 %v4150, 1.442695
  %v4185 = vpow.pop %v4184
  %v4186 = vmul.f32 %v4151, 1.442695
  %v4187 = vpow.pop %v4186
  %v4188 = vmul.f32 %v4152, 1.442695
  %v4189 = vpow.pop %v4188
  %v4190 = vmul.f32 %v4153, 1.442695
  %v4191 = vpow.pop %v4190
  %v4192 = vmul.f32 %v4154, 1.442695
  %v4193 = vpow.pop %v4192
  %v4194 = vmul.f32 %v4155, 1.442695
  %v4195 = vpow.pop %v4194
  %v4196 = vmul.f32 %v4156, 1.442695
  %v4197 = vpow.pop %v4196
  %v4198 = vmul.f32 %v4157, 1.442695
  %v4199 = vpow.pop %v4198
  %v4200 = vmul.f32 %v4158, 1.442695
  %v4201 = vpow.pop %v4200
  %v4202 = vmul.f32 %v4159, 1.442695
  %v4203 = vpow.pop %v4202
  %v4204 = vmul.f32 %v4160, 1.442695
  %v4205 = vpow.pop %v4204
  %v4206 = vmul.f32 %v4161, 1.442695
  %v4207 = vpow.pop %v4206
  %v4208 = vmul.f32 %v4162, 1.442695
  %v4209 = vpow.pop %v4208
  %v4210 = vmul.f32 %v4163, 1.442695
  %v4211 = vpow.pop %v4210
  %v4212 = vmul.f32 %v4164, 1.442695
  %v4213 = vpow.pop %v4212
  %v4214 = vmul.f32 %v4165, 1.442695
  %v4215 = vpow.pop %v4214
  %v4216 = vmul.f32 %v4166, 1.442695
  %v4217 = vpow.pop %v4216
  %v4218 = vmul.f32 %v4167, 1.442695
  %v4219 = vpow.pop %v4218
  %v4220 = vmul.f32 %v4168, 1.442695
  %v4221 = vpow.pop %v4220
  %v4222 = vmul.f32 %v4169, 1.442695
  %v4223 = vpow.pop %v4222
  %v4224 = vmul.f32 %v4170, 1.442695
  %v4225 = vpow.pop %v4224
  %v4226 = vmul.f32 %v4171, 1.442695
  %v4227 = vpow.pop %v4226
  %v4228 = vmul.f32 %v4172, 1.442695
  %v4229 = vpow.pop %v4228
  %v4230 = vmul.f32 %v4173, 1.442695
  %v4231 = vpow.pop %v4230
  %v4232 = vmul.f32 %v4174, 1.442695
  %v4233 = vpow.pop %v4232
  %v4234 = vmul.f32 %v4175, 1.442695
  %v4235 = vpow.pop %v4234
  %v4236 = vmul.f32 %v4176, 1.442695
  %v4237 = vpow.pop %v4236
  %v4238 = vmul.f32 %v4177, 1.442695
  %v4239 = vpow.pop %v4238
  %v4240 = vmul.f32 %v4178, 1.442695
  %v4241 = vpow.pop %v4240
  %v4242 = vmul.f32 %v4179, 1.442695
  %v4243 = vpow.pop %v4242
  %v4244 = vmul.f32 %v4180, 1.442695
  %v4245 = vpow.pop %v4244
  %v4246 = vmul.f32 %v4181, 1.442695
  %v4247 = vpow.pop %v4246
  %v4248 = vmul.f32 %v4182, 1.442695
  %v4249 = vpow.pop %v4248
  %v4250 = vmul.f32 %v4183, 1.442695
  %v4251 = vpow.pop %v4250
  %v4252 = vsub.f32 %v4185, 1.0
  %v4253 = vsub.f32 %v4187, 1.0
  %v4254 = vsub.f32 %v4189, 1.0
  %v4255 = vsub.f32 %v4191, 1.0
  %v4256 = vsub.f32 %v4193, 1.0
  %v4257 = vsub.f32 %v4195, 1.0
  %v4258 = vsub.f32 %v4197, 1.0
  %v4259 = vsub.f32 %v4199, 1.0
  %v4260 = vsub.f32 %v4201, 1.0
  %v4261 = vsub.f32 %v4203, 1.0
  %v4262 = vsub.f32 %v4205, 1.0
  %v4263 = vsub.f32 %v4207, 1.0
  %v4264 = vsub.f32 %v4209, 1.0
  %v4265 = vsub.f32 %v4211, 1.0
  %v4266 = vsub.f32 %v4213, 1.0
  %v4267 = vsub.f32 %v4215, 1.0
  %v4268 = vsub.f32 %v4217, 1.0
  %v4269 = vsub.f32 %v4219, 1.0
  %v4270 = vsub.f32 %v4221, 1.0
  %v4271 = vsub.f32 %v4223, 1.0
  %v4272 = vsub.f32 %v4225, 1.0
  %v4273 = vsub.f32 %v4227, 1.0
  %v4274 = vsub.f32 %v4229, 1.0
  %v4275 = vsub.f32 %v4231, 1.0
  %v4276 = vsub.f32 %v4233, 1.0
  %v4277 = vsub.f32 %v4235, 1.0
  %v4278 = vsub.f32 %v4237, 1.0
  %v4279 = vsub.f32 %v4239, 1.0
  %v4280 = vsub.f32 %v4241, 1.0
  %v4281 = vsub.f32 %v4243, 1.0
  %v4282 = vsub.f32 %v4245, 1.0
  %v4283 = vsub.f32 %v4247, 1.0
  %v4284 = vsub.f32 %v4249, 1.0
  %v4285 = vsub.f32 %v4251, 1.0
  %v4286 = vsel %vm4116, %v3948, %v4252
  %v4287 = vsel %vm4117, %v3953, %v4253
  %v4288 = vsel %vm4118, %v3958, %v4254
  %v4289 = vsel %vm4119, %v3963, %v4255
  %v4290 = vsel %vm4120, %v3968, %v4256
  %v4291 = vsel %vm4121, %v3973, %v4257
  %v4292 = vsel %vm4122, %v3978, %v4258
  %v4293 = vsel %vm4123, %v3983, %v4259
  %v4294 = vsel %vm4124, %v3988, %v4260
  %v4295 = vsel %vm4125, %v3993, %v4261
  %v4296 = vsel %vm4126, %v3998, %v4262
  %v4297 = vsel %vm4127, %v4003, %v4263
  %v4298 = vsel %vm4128, %v4008, %v4264
  %v4299 = vsel %vm4129, %v4013, %v4265
  %v4300 = vsel %vm4130, %v4018, %v4266
  %v4301 = vsel %vm4131, %v4023, %v4267
  %v4302 = vsel %vm4132, %v4028, %v4268
  %v4303 = vsel %vm4133, %v4033, %v4269
  %v4304 = vsel %vm4134, %v4038, %v4270
  %v4305 = vsel %vm4135, %v4043, %v4271
  %v4306 = vsel %vm4136, %v4048, %v4272
  %v4307 = vsel %vm4137, %v4053, %v4273
  %v4308 = vsel %vm4138, %v4058, %v4274
  %v4309 = vsel %vm4139, %v4063, %v4275
  %v4310 = vsel %vm4140, %v4068, %v4276
  %v4311 = vsel %vm4141, %v4073, %v4277
  %v4312 = vsel %vm4142, %v4078, %v4278
  %v4313 = vsel %vm4143, %v4083, %v4279
  %v4314 = vsel %vm4144, %v4088, %v4280
  %v4315 = vsel %vm4145, %v4093, %v4281
  %v4316 = vsel %vm4146, %v4098, %v4282
  %v4317 = vsel %vm4147, %v4103, %v4283
  %v4318 = vsel %vm4148, %v4108, %v4284
  %v4319 = vsel %vm4149, %v4113, %v4285
  %v4320 = vadd.f32 %v4286, 1.0
  %v4321 = vadd.f32 %v4287, 1.0
  %v4322 = vadd.f32 %v4288, 1.0
  %v4323 = vadd.f32 %v4289, 1.0
  %v4324 = vadd.f32 %v4290, 1.0
  %v4325 = vadd.f32 %v4291, 1.0
  %v4326 = vadd.f32 %v4292, 1.0
  %v4327 = vadd.f32 %v4293, 1.0
  %v4328 = vadd.f32 %v4294, 1.0
  %v4329 = vadd.f32 %v4295, 1.0
  %v4330 = vadd.f32 %v4296, 1.0
  %v4331 = vadd.f32 %v4297, 1.0
  %v4332 = vadd.f32 %v4298, 1.0
  %v4333 = vadd.f32 %v4299, 1.0
  %v4334 = vadd.f32 %v4300, 1.0
  %v4335 = vadd.f32 %v4301, 1.0
  %v4336 = vadd.f32 %v4302, 1.0
  %v4337 = vadd.f32 %v4303, 1.0
  %v4338 = vadd.f32 %v4304, 1.0
  %v4339 = vadd.f32 %v4305, 1.0
  %v4340 = vadd.f32 %v4306, 1.0
  %v4341 = vadd.f32 %v4307, 1.0
  %v4342 = vadd.f32 %v4308, 1.0
  %v4343 = vadd.f32 %v4309, 1.0
  %v4344 = vadd.f32 %v4310, 1.0
  %v4345 = vadd.f32 %v4311, 1.0
  %v4346 = vadd.f32 %v4312, 1.0
  %v4347 = vadd.f32 %v4313, 1.0
  %v4348 = vadd.f32 %v4314, 1.0
  %v4349 = vadd.f32 %v4315, 1.0
  %v4350 = vadd.f32 %v4316, 1.0
  %v4351 = vadd.f32 %v4317, 1.0
  %v4352 = vadd.f32 %v4318, 1.0
  %v4353 = vadd.f32 %v4319, 1.0
  %v4354 = vld [vmem:[%s2 + $0x408] sm:$0xff]
  %v4355 = vld [vmem:[%s2 + $0x410] sm:$0xff]
  %v4356 = vld [vmem:[%s2 + $0x418] sm:$0xff]
  %v4357 = vld [vmem:[%s2 + $0x420] sm:$0xff]
  %v4358 = vld [vmem:[%s2 + $0x428] sm:$0xff]
  %v4359 = vld [vmem:[%s2 + $0x430] sm:$0xff]
  %vm4360 = vcmask 130048
  %v4362 = vsel %vm4360, %v4356, 0
  %v4365 = vsel %vm4360, %v4359, 0
  %4367 = vmatprep.subr.mxu0 0.0
  %4368 = vmatpush1.msra.mxu0 %v4320
  %4369 = vmatprep.subr.mxu0 0.0
  %4370 = vmatpush1.msra.mxu0 %v4321
  %4371 = vmatprep.subr.mxu0 0.0
  %4372 = vmatpush1.msra.mxu0 %v4322
  %4373 = vmatprep.subr.mxu0 0.0
  %4374 = vmatpush1.msra.mxu0 %v4323
  %4375 = vmatprep.subr.mxu0 0.0
  %4376 = vmatpush1.msra.mxu0 %v4324
  %4377 = vmatprep.subr.mxu0 0.0
  %4378 = vmatpush1.msra.mxu0 %v4325
  %4379 = vmatprep.subr.mxu0 0.0
  %4380 = vmatpush1.msra.mxu0 %v4326
  %4381 = vmatprep.subr.mxu0 0.0
  %4382 = vmatpush1.msra.mxu0 %v4327
  %4383 = vmatprep.subr.mxu0 0.0
  %4384 = vmatpush1.msra.mxu0 %v4328
  %4385 = vmatprep.subr.mxu0 0.0
  %4386 = vmatpush1.msra.mxu0 %v4329
  %4387 = vmatprep.subr.mxu0 0.0
  %4388 = vmatpush1.msra.mxu0 %v4330
  %4389 = vmatprep.subr.mxu0 0.0
  %4390 = vmatpush1.msra.mxu0 %v4331
  %4391 = vmatprep.subr.mxu0 0.0
  %4392 = vmatpush1.msra.mxu0 %v4332
  %4393 = vmatprep.subr.mxu0 0.0
  %4394 = vmatpush1.msra.mxu0 %v4333
  %4395 = vmatprep.subr.mxu0 0.0
  %4396 = vmatpush1.msra.mxu0 %v4334
  %4397 = vmatprep.subr.mxu0 0.0
  %4398 = vmatpush1.msra.mxu0 %v4335
  %4399 = vmatprep.subr.mxu0 0.0
  %4400 = vmatpush1.msra.mxu0 %v4336
  %4401 = vmatprep.subr.mxu0 0.0
  %4402 = vmatpush1.msra.mxu0 %v4337
  %4403 = vmatprep.subr.mxu0 0.0
  %4404 = vmatpush1.msra.mxu0 %v4338
  %4405 = vmatprep.subr.mxu0 0.0
  %4406 = vmatpush1.msra.mxu0 %v4339
  %4407 = vmatprep.subr.mxu0 0.0
  %4408 = vmatpush1.msra.mxu0 %v4340
  %4409 = vmatprep.subr.mxu0 0.0
  %4410 = vmatpush1.msra.mxu0 %v4341
  %4411 = vmatprep.subr.mxu0 0.0
  %4412 = vmatpush1.msra.mxu0 %v4342
  %4413 = vmatprep.subr.mxu0 0.0
  %4414 = vmatpush1.msra.mxu0 %v4343
  %4415 = vmatprep.subr.mxu0 0.0
  %4416 = vmatpush1.msra.mxu0 %v4344
  %4417 = vmatprep.subr.mxu0 0.0
  %4418 = vmatpush1.msra.mxu0 %v4345
  %4419 = vmatprep.subr.mxu0 0.0
  %4420 = vmatpush1.msra.mxu0 %v4346
  %4421 = vmatprep.subr.mxu0 0.0
  %4422 = vmatpush1.msra.mxu0 %v4347
  %4423 = vmatprep.subr.mxu0 0.0
  %4424 = vmatpush1.msra.mxu0 %v4348
  %4425 = vmatprep.subr.mxu0 0.0
  %4426 = vmatpush1.msra.mxu0 %v4349
  %4427 = vmatprep.subr.mxu0 0.0
  %4428 = vmatpush1.msra.mxu0 %v4350
  %4429 = vmatprep.subr.mxu0 0.0
  %4430 = vmatpush1.msra.mxu0 %v4351
  %4431 = vmatprep.mubr.f32.mxu0 %v4355
  %4432 = vmatmul.mubr.f32.gmra.mrb[0].mxu0 %v4354
  %v4433 = vpop.f32.mrb[0].mxu0
  %v4434 = vadd.f32 0.0, %v4433
  %v4435 = vpop.f32.mrb[0].mxu0
  %4436 = vmatprep.mubr.f32.mxu0 %v4358
  %4437 = vmatmul.mubr.f32.gmra.mrb[0].mxu0 %v4357
  %v4438 = vpop.f32.mrb[0].mxu0
  %v4439 = vadd.f32 0.0, %v4438
  %v4440 = vpop.f32.mrb[0].mxu0
  %4441 = vdwg.mxu0
  %4442 = vmatprep.subr.mxu0 0.0
  %4443 = vmatpush1.msra.mxu0 %v4352
  %4444 = vmatprep.subr.mxu0 0.0
  %4445 = vmatpush1.msra.mxu0 %v4353
  %4446 = vmatprep.subr.mxu0 0.0
  %4447 = vmatpush1.msra.mxu0 0.0
  %4448 = vmatprep.subr.mxu0 0.0
  %4449 = vmatpush1.msra.mxu0 0.0
  %4450 = vmatprep.subr.mxu0 0.0
  %4451 = vmatpush1.msra.mxu0 0.0
  %4452 = vmatprep.subr.mxu0 0.0
  %4453 = vmatpush1.msra.mxu0 0.0
  %4454 = vmatprep.subr.mxu0 0.0
  %4455 = vmatpush1.msra.mxu0 0.0
  %4456 = vmatprep.subr.mxu0 0.0
  %4457 = vmatpush1.msra.mxu0 0.0
  %4458 = vmatprep.subr.mxu0 0.0
  %4459 = vmatpush1.msra.mxu0 0.0
  %4460 = vmatprep.subr.mxu0 0.0
  %4461 = vmatpush1.msra.mxu0 0.0
  %4462 = vmatprep.subr.mxu0 0.0
  %4463 = vmatpush1.msra.mxu0 0.0
  %4464 = vmatprep.subr.mxu0 0.0
  %4465 = vmatpush1.msra.mxu0 0.0
  %4466 = vmatprep.subr.mxu0 0.0
  %4467 = vmatpush1.msra.mxu0 0.0
  %4468 = vmatprep.subr.mxu0 0.0
  %4469 = vmatpush1.msra.mxu0 0.0
  %4470 = vmatprep.subr.mxu0 0.0
  %4471 = vmatpush1.msra.mxu0 0.0
  %4472 = vmatprep.subr.mxu0 0.0
  %4473 = vmatpush1.msra.mxu0 0.0
  %4474 = vmatprep.subr.mxu0 0.0
  %4475 = vmatpush1.msra.mxu0 0.0
  %4476 = vmatprep.subr.mxu0 0.0
  %4477 = vmatpush1.msra.mxu0 0.0
  %4478 = vmatprep.subr.mxu0 0.0
  %4479 = vmatpush1.msra.mxu0 0.0
  %4480 = vmatprep.subr.mxu0 0.0
  %4481 = vmatpush1.msra.mxu0 0.0
  %4482 = vmatprep.subr.mxu0 0.0
  %4483 = vmatpush1.msra.mxu0 0.0
  %4484 = vmatprep.subr.mxu0 0.0
  %4485 = vmatpush1.msra.mxu0 0.0
  %4486 = vmatprep.subr.mxu0 0.0
  %4487 = vmatpush1.msra.mxu0 0.0
  %4488 = vmatprep.subr.mxu0 0.0
  %4489 = vmatpush1.msra.mxu0 0.0
  %4490 = vmatprep.subr.mxu0 0.0
  %4491 = vmatpush1.msra.mxu0 0.0
  %4492 = vmatprep.subr.mxu0 0.0
  %4493 = vmatpush1.msra.mxu0 0.0
  %4494 = vmatprep.subr.mxu0 0.0
  %4495 = vmatpush1.msra.mxu0 0.0
  %4496 = vmatprep.subr.mxu0 0.0
  %4497 = vmatpush1.msra.mxu0 0.0
  %4498 = vmatprep.subr.mxu0 0.0
  %4499 = vmatpush1.msra.mxu0 0.0
  %4500 = vmatprep.subr.mxu0 0.0
  %4501 = vmatpush1.msra.mxu0 0.0
  %4502 = vmatprep.subr.mxu0 0.0
  %4503 = vmatpush1.msra.mxu0 0.0
  %4504 = vmatprep.subr.mxu0 0.0
  %4505 = vmatpush1.msra.mxu0 0.0
  %4506 = vmatprep.mubr.f32.mxu0 0.0
  %4507 = vmatmul.mubr.f32.gmra.mrb[0].mxu0 %v4362
  %v4508 = vpop.f32.mrb[0].mxu0
  %v4509 = vadd.f32 %v4434, %v4508
  %v4510 = vpop.f32.mrb[0].mxu0
  %4511 = vmatprep.mubr.f32.mxu0 0.0
  %4512 = vmatmul.mubr.f32.gmra.mrb[0].mxu0 %v4365
  %v4513 = vpop.f32.mrb[0].mxu0
  %v4514 = vadd.f32 %v4439, %v4513
  %v4515 = vpop.f32.mrb[0].mxu0
  %4516 = vdwg.mxu0
  %v4517 = vmul.f32 %v17, %v4509
  %v4518 = vmul.f32 %v18, %v4514
  %v4519 = vadd.f32 %v589, %v4517
  %v4520 = vadd.f32 %v594, %v4518
  %4521 = vst.msk [vmem:[%s4] sm:$0xff] %vm25, %v4519
  %4522 = vst.msk [vmem:[%s4 + $0x8] sm:$0xff] %vm25, %v4520
  // Predicated region
  $region18: #{umnnmaf_flow_forward.1} parent=0 // pred_check
    _
  $region19: #{umnnmaf_flow_forward.1} parent=0 // pred_check_branch
    %4524 = sbr.rel (0) target = $region21
  $region20: #{umnnmaf_flow_forward.1} parent=0 // pred_region
    _
  $region21: #{umnnmaf_flow_forward.1} parent=0 // pred_fallthru
    _
  // Predicated region
  $region22: #{umnnmaf_flow_forward.1} parent=0 // pred_check
    _
  $region23: #{umnnmaf_flow_forward.1} parent=0 // pred_check_branch
    %4526 = sbr.rel (0) target = $region25
  $region24: #{umnnmaf_flow_forward.1} parent=0 // pred_region
    _
  $region25: #{umnnmaf_flow_forward.1} parent=0 // pred_fallthru
    _

</llo_original>
